<compile_context>
chip_gen: v5e
topology: v5e:2x2
jax: 0.10.0
libtpu: 0.0.40
codegen_flags: <defaults>
</compile_context>

<pallas_src>
import functools

import jax
import jax.numpy as jnp
from jax.experimental import pallas as pl
from jax.experimental.pallas import tpu as pltpu

C_PAD = 128  # lane-dense padded class dimension


# ----------------------------------------------------------------------------
# Fused forward kernel
# ----------------------------------------------------------------------------
def fused_forward_kernel(x_ref, pe_ref, bias_ref,
                         wqkv_ref, bqkv_ref, wo_ref, bo_ref,
                         ln1_g_ref, ln1_b_ref, w1_ref, b1_ref,
                         w2_ref, b2_ref, ln2_g_ref, ln2_b_ref,
                         wout_ref, bout_ref, o_ref,
                         *, nhead, num_layers, B, S, D):
    hd = D // nhead
    scale = 1.0 / float(hd) ** 0.5
    R = B * S
    eps = 1e-5

    # Positional encoding fused into the prologue (pe pre-broadcast to rows).
    x = x_ref[...] + pe_ref[...]                      # (R, D) f32
    bias = bias_ref[...]                              # (R, R) block-diag mask bias

    for l in range(num_layers):                       # static unroll: weights resident
        # ---- multi-head self-attention over batch-folded rows ---------------
        qkv = jnp.dot(x.astype(jnp.bfloat16), wqkv_ref[l],
                      preferred_element_type=jnp.float32) + bqkv_ref[l]  # (R, 3D)
        wo_l = wo_ref[l]                                                 # (D, D) bf16
        attn = jnp.zeros((R, D), jnp.float32)
        for h in range(nhead):
            qh = qkv[:, h * hd:(h + 1) * hd].astype(jnp.bfloat16)
            kh = qkv[:, D + h * hd:D + (h + 1) * hd].astype(jnp.bfloat16)
            vh = qkv[:, 2 * D + h * hd:2 * D + (h + 1) * hd].astype(jnp.bfloat16)
            # scores = q @ k^T (contract last dims; no explicit transpose)
            s = jax.lax.dot_general(qh, kh, (((1,), (1,)), ((), ())),
                                    preferred_element_type=jnp.float32)
            s = s * scale + bias                      # mask cross-batch attention
            s = s - jnp.max(s, axis=-1, keepdims=True)
            p = jnp.exp(s)
            p = p * pl.reciprocal(jnp.sum(p, axis=-1, keepdims=True), approx=True)
            hv = jnp.dot(p.astype(jnp.bfloat16), vh,
                         preferred_element_type=jnp.float32)             # (R, hd)
            # Fold the concat-of-heads into the output projection.
            attn = attn + jnp.dot(hv.astype(jnp.bfloat16),
                                  wo_l[h * hd:(h + 1) * hd, :],
                                  preferred_element_type=jnp.float32)
        attn = attn + bo_ref[l]

        # ---- residual + LayerNorm 1 (post-LN) --------------------------------
        h1 = x + attn
        mu = jnp.mean(h1, axis=-1, keepdims=True)
        var = jnp.mean((h1 - mu) ** 2, axis=-1, keepdims=True)
        h1 = (h1 - mu) * jax.lax.rsqrt(var + eps) * ln1_g_ref[l] + ln1_b_ref[l]

        # ---- feed-forward (ReLU) ---------------------------------------------
        f = jnp.dot(h1.astype(jnp.bfloat16), w1_ref[l],
                    preferred_element_type=jnp.float32) + b1_ref[l]
        f = jnp.maximum(f, 0.0)
        f = jnp.dot(f.astype(jnp.bfloat16), w2_ref[l],
                    preferred_element_type=jnp.float32) + b2_ref[l]

        # ---- residual + LayerNorm 2 ------------------------------------------
        h2 = h1 + f
        mu2 = jnp.mean(h2, axis=-1, keepdims=True)
        var2 = jnp.mean((h2 - mu2) ** 2, axis=-1, keepdims=True)
        x = (h2 - mu2) * jax.lax.rsqrt(var2 + eps) * ln2_g_ref[l] + ln2_b_ref[l]

    # ---- flatten + output linear (lane-dense, classes padded to C_PAD) -------
    # out[b] = sum_s x[b*S+s, :] @ Wout[s]  ==  flatten(x[b]) @ Wout_flat
    Cp = o_ref.shape[1]
    rows = []
    for b in range(B):
        acc = jnp.zeros((1, Cp), jnp.float32)
        for si in range(S):
            r = b * S + si
            acc = acc + jnp.dot(x[r:r + 1, :].astype(jnp.bfloat16), wout_ref[si],
                                preferred_element_type=jnp.float32)
        rows.append(acc)
    # single unmasked lane-dense store
    o_ref[...] = jnp.concatenate(rows, axis=0) + bout_ref[...]


# ----------------------------------------------------------------------------
# Wrapper
# ----------------------------------------------------------------------------
def _full_spec(shape):
    n = len(shape)
    return pl.BlockSpec(shape, lambda *_: (0,) * n)


def fused_forward(x2, pe2, bias, params, nhead, B, S, D):
    L = params["wqkv"].shape[0]
    Cp = params["out_w3"].shape[-1]
    args = (x2, pe2, bias,
            params["wqkv"], params["bqkv"], params["wo"], params["bo"],
            params["ln1_g"], params["ln1_b"], params["w1"], params["b1"],
            params["w2"], params["b2"], params["ln2_g"], params["ln2_b"],
            params["out_w3"], params["out_b"])
    kernel = functools.partial(fused_forward_kernel, nhead=nhead,
                               num_layers=L, B=B, S=S, D=D)
    return pl.pallas_call(
        kernel,
        out_shape=jax.ShapeDtypeStruct((B, Cp), jnp.float32),
        grid=(1,),
        in_specs=[_full_spec(a.shape) for a in args],
        out_specs=_full_spec((B, Cp)),
        compiler_params=pltpu.CompilerParams(
            dimension_semantics=("arbitrary",),
            vmem_limit_bytes=64 << 20),
    )(*args)


def modelo_forward(params, tokens, nhead, num_classes):
    B, S = tokens.shape
    D = params["embedding"].shape[1]
    # Embedding gather stays in plain JAX (data-dependent gather).
    x = jnp.take(params["embedding"], tokens, axis=0)              # (B, S, D)
    # Reference-module quirk: pe indexed by x.size(0) == batch, broadcast over seq.
    pe = jnp.broadcast_to(params["pe"][:B], (B, S, D))
    x2 = x.reshape(B * S, D)
    pe2 = pe.reshape(B * S, D)
    # Block-diagonal additive bias so batch-folded attention stays per-sample.
    rb = jnp.arange(B * S, dtype=jnp.int32)[:, None] // S
    cb = jnp.arange(B * S, dtype=jnp.int32)[None, :] // S
    bias = jnp.where(rb == cb, 0.0, -1e30).astype(jnp.float32)
    out = fused_forward(x2, pe2, bias, params, nhead, B, S, D)     # (B, C_PAD)
    return out[:, :num_classes]


# ----------------------------------------------------------------------------
# Parameter construction
# ----------------------------------------------------------------------------
def make_positional_encoding(d_model, max_len=5000):
    position = jnp.arange(0, max_len, dtype=jnp.float32)[:, None]
    div_term = jnp.exp(jnp.arange(0, d_model, 2, dtype=jnp.float32)
                       * -(jnp.log(10000.0) / d_model))
    pe = jnp.zeros((max_len, 1, d_model), dtype=jnp.float32)
    pe = pe.at[:, 0, 0::2].set(jnp.sin(position * div_term))
    pe = pe.at[:, 0, 1::2].set(jnp.cos(position * div_term))
    return pe


def init_params(key, vocab_size, d_model, nhead, num_layers, num_tokens,
                num_classes, dim_feedforward=2048, c_pad=C_PAD):
    D, F, L, S = d_model, dim_feedforward, num_layers, num_tokens
    assert num_classes <= c_pad
    assert D % nhead == 0
    keys = iter(jax.random.split(key, 4 * L + 2))
    scale = 0.02

    def rnd(shape):
        return jax.random.normal(next(keys), shape, jnp.float32) * scale

    emb = rnd((vocab_size, D))
    wqkv = jnp.stack([rnd((D, 3 * D)) for _ in range(L)]).astype(jnp.bfloat16)
    wo = jnp.stack([rnd((D, D)) for _ in range(L)]).astype(jnp.bfloat16)
    w1 = jnp.stack([rnd((D, F)) for _ in range(L)]).astype(jnp.bfloat16)
    w2 = jnp.stack([rnd((F, D)) for _ in range(L)]).astype(jnp.bfloat16)

    out_w = rnd((S * D, num_classes))
    out_w_p = jnp.zeros((S * D, c_pad), jnp.float32).at[:, :num_classes].set(out_w)

    return {
        "embedding": emb,
        "wqkv": wqkv,
        "bqkv": jnp.zeros((L, 1, 3 * D), jnp.float32),
        "wo": wo,
        "bo": jnp.zeros((L, 1, D), jnp.float32),
        "ln1_g": jnp.ones((L, 1, D), jnp.float32),
        "ln1_b": jnp.zeros((L, 1, D), jnp.float32),
        "w1": w1,
        "b1": jnp.zeros((L, 1, F), jnp.float32),
        "w2": w2,
        "b2": jnp.zeros((L, 1, D), jnp.float32),
        "ln2_g": jnp.ones((L, 1, D), jnp.float32),
        "ln2_b": jnp.zeros((L, 1, D), jnp.float32),
        "out_w3": out_w_p.reshape(S, D, c_pad).astype(jnp.bfloat16),  # (S, D, Cp)
        "out_b": jnp.zeros((1, c_pad), jnp.float32),
        "pe": make_positional_encoding(D),
    }


# ----------------------------------------------------------------------------
if __name__ == "__main__":
    vocab_size = 50
    d_model = 32        # embedding_dim == d_model (required by the module)
    nhead = 4
    num_layers = 2
    num_tokens = 8      # sequence length
    num_classes = 10
    batch = 2

    key = jax.random.PRNGKey(0)
    pkey, dkey = jax.random.split(key)
    params = init_params(pkey, vocab_size, d_model, nhead, num_layers,
                         num_tokens, num_classes)
    tokens = jax.random.randint(dkey, (batch, num_tokens), 0, vocab_size,
                                dtype=jnp.int32)

    fwd = jax.jit(functools.partial(modelo_forward, nhead=nhead,
                                    num_classes=num_classes))
    logits = fwd(params, tokens)
    jax.block_until_ready(logits)
    assert logits.shape == (batch, num_classes)
    assert bool(jnp.all(jnp.isfinite(logits)))
    print("KERNEL_OK")
</pallas_src>

<mosaic_0001>
module attributes {stable_mosaic.version = 11 : i64} {
  func.func @fused_forward_kernel(%arg0: i32, %arg1: memref<16x32xf32, #tpu.memory_space<vmem>>, %arg2: memref<16x32xf32, #tpu.memory_space<vmem>>, %arg3: memref<16x16xf32, #tpu.memory_space<vmem>>, %arg4: memref<2x32x96xbf16, #tpu.memory_space<vmem>>, %arg5: memref<2x1x96xf32, #tpu.memory_space<vmem>>, %arg6: memref<2x32x32xbf16, #tpu.memory_space<vmem>>, %arg7: memref<2x1x32xf32, #tpu.memory_space<vmem>>, %arg8: memref<2x1x32xf32, #tpu.memory_space<vmem>>, %arg9: memref<2x1x32xf32, #tpu.memory_space<vmem>>, %arg10: memref<2x32x2048xbf16, #tpu.memory_space<vmem>>, %arg11: memref<2x1x2048xf32, #tpu.memory_space<vmem>>, %arg12: memref<2x2048x32xbf16, #tpu.memory_space<vmem>>, %arg13: memref<2x1x32xf32, #tpu.memory_space<vmem>>, %arg14: memref<2x1x32xf32, #tpu.memory_space<vmem>>, %arg15: memref<2x1x32xf32, #tpu.memory_space<vmem>>, %arg16: memref<8x32x128xbf16, #tpu.memory_space<vmem>>, %arg17: memref<1x128xf32, #tpu.memory_space<vmem>>, %arg18: memref<2x128xf32, #tpu.memory_space<vmem>>) attributes {dimension_semantics = [#tpu.dimension_semantics<arbitrary>], iteration_bounds = array<i64: 1>, scalar_prefetch = 0 : i64, scratch_operands = 0 : i64, tpu.core_type = #tpu.core_type<tc>, window_params = [{pipeline_mode = #tpu.pipeline_mode<synchronous>, transform_indices = @transform_0, window_bounds = array<i64: 16, 32>}, {pipeline_mode = #tpu.pipeline_mode<synchronous>, transform_indices = @transform_1, window_bounds = array<i64: 16, 32>}, {pipeline_mode = #tpu.pipeline_mode<synchronous>, transform_indices = @transform_2, window_bounds = array<i64: 16, 16>}, {pipeline_mode = #tpu.pipeline_mode<synchronous>, transform_indices = @transform_3, window_bounds = array<i64: 2, 32, 96>}, {pipeline_mode = #tpu.pipeline_mode<synchronous>, transform_indices = @transform_4, window_bounds = array<i64: 2, 1, 96>}, {pipeline_mode = #tpu.pipeline_mode<synchronous>, transform_indices = @transform_5, window_bounds = array<i64: 2, 32, 32>}, {pipeline_mode = #tpu.pipeline_mode<synchronous>, transform_indices = @transform_6, window_bounds = array<i64: 2, 1, 32>}, {pipeline_mode = #tpu.pipeline_mode<synchronous>, transform_indices = @transform_7, window_bounds = array<i64: 2, 1, 32>}, {pipeline_mode = #tpu.pipeline_mode<synchronous>, transform_indices = @transform_8, window_bounds = array<i64: 2, 1, 32>}, {pipeline_mode = #tpu.pipeline_mode<synchronous>, transform_indices = @transform_9, window_bounds = array<i64: 2, 32, 2048>}, {pipeline_mode = #tpu.pipeline_mode<synchronous>, transform_indices = @transform_10, window_bounds = array<i64: 2, 1, 2048>}, {pipeline_mode = #tpu.pipeline_mode<synchronous>, transform_indices = @transform_11, window_bounds = array<i64: 2, 2048, 32>}, {pipeline_mode = #tpu.pipeline_mode<synchronous>, transform_indices = @transform_12, window_bounds = array<i64: 2, 1, 32>}, {pipeline_mode = #tpu.pipeline_mode<synchronous>, transform_indices = @transform_13, window_bounds = array<i64: 2, 1, 32>}, {pipeline_mode = #tpu.pipeline_mode<synchronous>, transform_indices = @transform_14, window_bounds = array<i64: 2, 1, 32>}, {pipeline_mode = #tpu.pipeline_mode<synchronous>, transform_indices = @transform_15, window_bounds = array<i64: 8, 32, 128>}, {pipeline_mode = #tpu.pipeline_mode<synchronous>, transform_indices = @transform_16, window_bounds = array<i64: 1, 128>}, {pipeline_mode = #tpu.pipeline_mode<synchronous>, transform_indices = @transform_17, window_bounds = array<i64: 2, 128>}]} {
    %c0 = arith.constant 0 : index
    %c0_0 = arith.constant 0 : index
    %0 = vector.load %arg1[%c0, %c0_0] : memref<16x32xf32, #tpu.memory_space<vmem>>, vector<16x32xf32>
    %c0_1 = arith.constant 0 : index
    %c0_2 = arith.constant 0 : index
    %1 = vector.load %arg2[%c0_1, %c0_2] : memref<16x32xf32, #tpu.memory_space<vmem>>, vector<16x32xf32>
    %2 = arith.addf %0, %1 : vector<16x32xf32>
    %c0_3 = arith.constant 0 : index
    %c0_4 = arith.constant 0 : index
    %3 = vector.load %arg3[%c0_3, %c0_4] : memref<16x16xf32, #tpu.memory_space<vmem>>, vector<16x16xf32>
    %4 = arith.truncf %2 : vector<16x32xf32> to vector<16x32xbf16>
    %c0_5 = arith.constant 0 : index
    %c0_6 = arith.constant 0 : index
    %c0_7 = arith.constant 0 : index
    %5 = vector.load %arg4[%c0_5, %c0_6, %c0_7] : memref<2x32x96xbf16, #tpu.memory_space<vmem>>, vector<1x32x96xbf16>
    %6 = vector.shape_cast %5 : vector<1x32x96xbf16> to vector<32x96xbf16>
    %cst = arith.constant dense<0.000000e+00> : vector<16x96xf32>
    %7 = tpu.matmul %4, %6, %cst {dimension_numbers = #tpu.dot_dimension_numbers<[1], [0], [0], [1], [0, 0, 1, 1], [], []>} : vector<16x32xbf16>, vector<32x96xbf16>, vector<16x96xf32> -> vector<16x96xf32>
    %c0_8 = arith.constant 0 : index
    %c0_9 = arith.constant 0 : index
    %c0_10 = arith.constant 0 : index
    %8 = vector.load %arg5[%c0_8, %c0_9, %c0_10] : memref<2x1x96xf32, #tpu.memory_space<vmem>>, vector<1x1x96xf32>
    %9 = vector.shape_cast %8 : vector<1x1x96xf32> to vector<1x96xf32>
    %10 = vector.broadcast %9 : vector<1x96xf32> to vector<16x96xf32>
    %11 = arith.addf %7, %10 : vector<16x96xf32>
    %c0_11 = arith.constant 0 : index
    %c0_12 = arith.constant 0 : index
    %c0_13 = arith.constant 0 : index
    %12 = vector.load %arg6[%c0_11, %c0_12, %c0_13] : memref<2x32x32xbf16, #tpu.memory_space<vmem>>, vector<1x32x32xbf16>
    %13 = vector.shape_cast %12 : vector<1x32x32xbf16> to vector<32x32xbf16>
    %cst_14 = arith.constant 0.000000e+00 : f32
    %14 = vector.broadcast %cst_14 : f32 to vector<16x32xf32>
    %15 = vector.extract_strided_slice %11 {offsets = [0, 0], sizes = [16, 8], strides = [1, 1]} : vector<16x96xf32> to vector<16x8xf32>
    %16 = arith.truncf %15 : vector<16x8xf32> to vector<16x8xbf16>
    %17 = vector.extract_strided_slice %11 {offsets = [0, 32], sizes = [16, 8], strides = [1, 1]} : vector<16x96xf32> to vector<16x8xf32>
    %18 = arith.truncf %17 : vector<16x8xf32> to vector<16x8xbf16>
    %19 = vector.extract_strided_slice %11 {offsets = [0, 64], sizes = [16, 8], strides = [1, 1]} : vector<16x96xf32> to vector<16x8xf32>
    %20 = arith.truncf %19 : vector<16x8xf32> to vector<16x8xbf16>
    %cst_15 = arith.constant dense<0.000000e+00> : vector<16x16xf32>
    %21 = tpu.matmul %16, %18, %cst_15 {dimension_numbers = #tpu.dot_dimension_numbers<[1], [1], [0], [0], [0, 0, 1, 0], [], []>} : vector<16x8xbf16>, vector<16x8xbf16>, vector<16x16xf32> -> vector<16x16xf32>
    %cst_16 = arith.constant 0.353553385 : f32
    %22 = vector.broadcast %cst_16 : f32 to vector<16x16xf32>
    %23 = arith.mulf %21, %22 : vector<16x16xf32>
    %24 = arith.addf %23, %3 : vector<16x16xf32>
    %cst_17 = arith.constant dense<0xFF800000> : vector<16xf32>
    %25 = vector.multi_reduction <maximumf>, %24, %cst_17 [1] : vector<16x16xf32> to vector<16xf32>
    %26 = vector.shape_cast %25 : vector<16xf32> to vector<16x1xf32>
    %27 = vector.broadcast %26 : vector<16x1xf32> to vector<16x16xf32>
    %28 = arith.subf %24, %27 : vector<16x16xf32>
    %29 = math.exp %28 : vector<16x16xf32>
    %cst_18 = arith.constant dense<0.000000e+00> : vector<16xf32>
    %30 = vector.multi_reduction <add>, %29, %cst_18 [1] : vector<16x16xf32> to vector<16xf32>
    %31 = vector.shape_cast %30 : vector<16xf32> to vector<16x1xf32>
    %32 = tpu.reciprocal %31 {approx = true} : vector<16x1xf32> -> vector<16x1xf32>
    %33 = vector.broadcast %32 : vector<16x1xf32> to vector<16x16xf32>
    %34 = arith.mulf %29, %33 : vector<16x16xf32>
    %35 = arith.truncf %34 : vector<16x16xf32> to vector<16x16xbf16>
    %cst_19 = arith.constant dense<0.000000e+00> : vector<16x8xf32>
    %36 = tpu.matmul %35, %20, %cst_19 {dimension_numbers = #tpu.dot_dimension_numbers<[1], [0], [0], [1], [0, 0, 1, 1], [], []>} : vector<16x16xbf16>, vector<16x8xbf16>, vector<16x8xf32> -> vector<16x8xf32>
    %37 = arith.truncf %36 : vector<16x8xf32> to vector<16x8xbf16>
    %38 = vector.extract_strided_slice %13 {offsets = [0, 0], sizes = [8, 32], strides = [1, 1]} : vector<32x32xbf16> to vector<8x32xbf16>
    %cst_20 = arith.constant dense<0.000000e+00> : vector<16x32xf32>
    %39 = tpu.matmul %37, %38, %cst_20 {dimension_numbers = #tpu.dot_dimension_numbers<[1], [0], [0], [1], [0, 0, 1, 1], [], []>} : vector<16x8xbf16>, vector<8x32xbf16>, vector<16x32xf32> -> vector<16x32xf32>
    %40 = arith.addf %14, %39 : vector<16x32xf32>
    %41 = vector.extract_strided_slice %11 {offsets = [0, 8], sizes = [16, 8], strides = [1, 1]} : vector<16x96xf32> to vector<16x8xf32>
    %42 = arith.truncf %41 : vector<16x8xf32> to vector<16x8xbf16>
    %43 = vector.extract_strided_slice %11 {offsets = [0, 40], sizes = [16, 8], strides = [1, 1]} : vector<16x96xf32> to vector<16x8xf32>
    %44 = arith.truncf %43 : vector<16x8xf32> to vector<16x8xbf16>
    %45 = vector.extract_strided_slice %11 {offsets = [0, 72], sizes = [16, 8], strides = [1, 1]} : vector<16x96xf32> to vector<16x8xf32>
    %46 = arith.truncf %45 : vector<16x8xf32> to vector<16x8xbf16>
    %cst_21 = arith.constant dense<0.000000e+00> : vector<16x16xf32>
    %47 = tpu.matmul %42, %44, %cst_21 {dimension_numbers = #tpu.dot_dimension_numbers<[1], [1], [0], [0], [0, 0, 1, 0], [], []>} : vector<16x8xbf16>, vector<16x8xbf16>, vector<16x16xf32> -> vector<16x16xf32>
    %cst_22 = arith.constant 0.353553385 : f32
    %48 = vector.broadcast %cst_22 : f32 to vector<16x16xf32>
    %49 = arith.mulf %47, %48 : vector<16x16xf32>
    %50 = arith.addf %49, %3 : vector<16x16xf32>
    %cst_23 = arith.constant dense<0xFF800000> : vector<16xf32>
    %51 = vector.multi_reduction <maximumf>, %50, %cst_23 [1] : vector<16x16xf32> to vector<16xf32>
    %52 = vector.shape_cast %51 : vector<16xf32> to vector<16x1xf32>
    %53 = vector.broadcast %52 : vector<16x1xf32> to vector<16x16xf32>
    %54 = arith.subf %50, %53 : vector<16x16xf32>
    %55 = math.exp %54 : vector<16x16xf32>
    %cst_24 = arith.constant dense<0.000000e+00> : vector<16xf32>
    %56 = vector.multi_reduction <add>, %55, %cst_24 [1] : vector<16x16xf32> to vector<16xf32>
    %57 = vector.shape_cast %56 : vector<16xf32> to vector<16x1xf32>
    %58 = tpu.reciprocal %57 {approx = true} : vector<16x1xf32> -> vector<16x1xf32>
    %59 = vector.broadcast %58 : vector<16x1xf32> to vector<16x16xf32>
    %60 = arith.mulf %55, %59 : vector<16x16xf32>
    %61 = arith.truncf %60 : vector<16x16xf32> to vector<16x16xbf16>
    %cst_25 = arith.constant dense<0.000000e+00> : vector<16x8xf32>
    %62 = tpu.matmul %61, %46, %cst_25 {dimension_numbers = #tpu.dot_dimension_numbers<[1], [0], [0], [1], [0, 0, 1, 1], [], []>} : vector<16x16xbf16>, vector<16x8xbf16>, vector<16x8xf32> -> vector<16x8xf32>
    %63 = arith.truncf %62 : vector<16x8xf32> to vector<16x8xbf16>
    %64 = vector.extract_strided_slice %13 {offsets = [8, 0], sizes = [8, 32], strides = [1, 1]} : vector<32x32xbf16> to vector<8x32xbf16>
    %cst_26 = arith.constant dense<0.000000e+00> : vector<16x32xf32>
    %65 = tpu.matmul %63, %64, %cst_26 {dimension_numbers = #tpu.dot_dimension_numbers<[1], [0], [0], [1], [0, 0, 1, 1], [], []>} : vector<16x8xbf16>, vector<8x32xbf16>, vector<16x32xf32> -> vector<16x32xf32>
    %66 = arith.addf %40, %65 : vector<16x32xf32>
    %67 = vector.extract_strided_slice %11 {offsets = [0, 16], sizes = [16, 8], strides = [1, 1]} : vector<16x96xf32> to vector<16x8xf32>
    %68 = arith.truncf %67 : vector<16x8xf32> to vector<16x8xbf16>
    %69 = vector.extract_strided_slice %11 {offsets = [0, 48], sizes = [16, 8], strides = [1, 1]} : vector<16x96xf32> to vector<16x8xf32>
    %70 = arith.truncf %69 : vector<16x8xf32> to vector<16x8xbf16>
    %71 = vector.extract_strided_slice %11 {offsets = [0, 80], sizes = [16, 8], strides = [1, 1]} : vector<16x96xf32> to vector<16x8xf32>
    %72 = arith.truncf %71 : vector<16x8xf32> to vector<16x8xbf16>
    %cst_27 = arith.constant dense<0.000000e+00> : vector<16x16xf32>
    %73 = tpu.matmul %68, %70, %cst_27 {dimension_numbers = #tpu.dot_dimension_numbers<[1], [1], [0], [0], [0, 0, 1, 0], [], []>} : vector<16x8xbf16>, vector<16x8xbf16>, vector<16x16xf32> -> vector<16x16xf32>
    %cst_28 = arith.constant 0.353553385 : f32
    %74 = vector.broadcast %cst_28 : f32 to vector<16x16xf32>
    %75 = arith.mulf %73, %74 : vector<16x16xf32>
    %76 = arith.addf %75, %3 : vector<16x16xf32>
    %cst_29 = arith.constant dense<0xFF800000> : vector<16xf32>
    %77 = vector.multi_reduction <maximumf>, %76, %cst_29 [1] : vector<16x16xf32> to vector<16xf32>
    %78 = vector.shape_cast %77 : vector<16xf32> to vector<16x1xf32>
    %79 = vector.broadcast %78 : vector<16x1xf32> to vector<16x16xf32>
    %80 = arith.subf %76, %79 : vector<16x16xf32>
    %81 = math.exp %80 : vector<16x16xf32>
    %cst_30 = arith.constant dense<0.000000e+00> : vector<16xf32>
    %82 = vector.multi_reduction <add>, %81, %cst_30 [1] : vector<16x16xf32> to vector<16xf32>
    %83 = vector.shape_cast %82 : vector<16xf32> to vector<16x1xf32>
    %84 = tpu.reciprocal %83 {approx = true} : vector<16x1xf32> -> vector<16x1xf32>
    %85 = vector.broadcast %84 : vector<16x1xf32> to vector<16x16xf32>
    %86 = arith.mulf %81, %85 : vector<16x16xf32>
    %87 = arith.truncf %86 : vector<16x16xf32> to vector<16x16xbf16>
    %cst_31 = arith.constant dense<0.000000e+00> : vector<16x8xf32>
    %88 = tpu.matmul %87, %72, %cst_31 {dimension_numbers = #tpu.dot_dimension_numbers<[1], [0], [0], [1], [0, 0, 1, 1], [], []>} : vector<16x16xbf16>, vector<16x8xbf16>, vector<16x8xf32> -> vector<16x8xf32>
    %89 = arith.truncf %88 : vector<16x8xf32> to vector<16x8xbf16>
    %90 = vector.extract_strided_slice %13 {offsets = [16, 0], sizes = [8, 32], strides = [1, 1]} : vector<32x32xbf16> to vector<8x32xbf16>
    %cst_32 = arith.constant dense<0.000000e+00> : vector<16x32xf32>
    %91 = tpu.matmul %89, %90, %cst_32 {dimension_numbers = #tpu.dot_dimension_numbers<[1], [0], [0], [1], [0, 0, 1, 1], [], []>} : vector<16x8xbf16>, vector<8x32xbf16>, vector<16x32xf32> -> vector<16x32xf32>
    %92 = arith.addf %66, %91 : vector<16x32xf32>
    %93 = vector.extract_strided_slice %11 {offsets = [0, 24], sizes = [16, 8], strides = [1, 1]} : vector<16x96xf32> to vector<16x8xf32>
    %94 = arith.truncf %93 : vector<16x8xf32> to vector<16x8xbf16>
    %95 = vector.extract_strided_slice %11 {offsets = [0, 56], sizes = [16, 8], strides = [1, 1]} : vector<16x96xf32> to vector<16x8xf32>
    %96 = arith.truncf %95 : vector<16x8xf32> to vector<16x8xbf16>
    %97 = vector.extract_strided_slice %11 {offsets = [0, 88], sizes = [16, 8], strides = [1, 1]} : vector<16x96xf32> to vector<16x8xf32>
    %98 = arith.truncf %97 : vector<16x8xf32> to vector<16x8xbf16>
    %cst_33 = arith.constant dense<0.000000e+00> : vector<16x16xf32>
    %99 = tpu.matmul %94, %96, %cst_33 {dimension_numbers = #tpu.dot_dimension_numbers<[1], [1], [0], [0], [0, 0, 1, 0], [], []>} : vector<16x8xbf16>, vector<16x8xbf16>, vector<16x16xf32> -> vector<16x16xf32>
    %cst_34 = arith.constant 0.353553385 : f32
    %100 = vector.broadcast %cst_34 : f32 to vector<16x16xf32>
    %101 = arith.mulf %99, %100 : vector<16x16xf32>
    %102 = arith.addf %101, %3 : vector<16x16xf32>
    %cst_35 = arith.constant dense<0xFF800000> : vector<16xf32>
    %103 = vector.multi_reduction <maximumf>, %102, %cst_35 [1] : vector<16x16xf32> to vector<16xf32>
    %104 = vector.shape_cast %103 : vector<16xf32> to vector<16x1xf32>
    %105 = vector.broadcast %104 : vector<16x1xf32> to vector<16x16xf32>
    %106 = arith.subf %102, %105 : vector<16x16xf32>
    %107 = math.exp %106 : vector<16x16xf32>
    %cst_36 = arith.constant dense<0.000000e+00> : vector<16xf32>
    %108 = vector.multi_reduction <add>, %107, %cst_36 [1] : vector<16x16xf32> to vector<16xf32>
    %109 = vector.shape_cast %108 : vector<16xf32> to vector<16x1xf32>
    %110 = tpu.reciprocal %109 {approx = true} : vector<16x1xf32> -> vector<16x1xf32>
    %111 = vector.broadcast %110 : vector<16x1xf32> to vector<16x16xf32>
    %112 = arith.mulf %107, %111 : vector<16x16xf32>
    %113 = arith.truncf %112 : vector<16x16xf32> to vector<16x16xbf16>
    %cst_37 = arith.constant dense<0.000000e+00> : vector<16x8xf32>
    %114 = tpu.matmul %113, %98, %cst_37 {dimension_numbers = #tpu.dot_dimension_numbers<[1], [0], [0], [1], [0, 0, 1, 1], [], []>} : vector<16x16xbf16>, vector<16x8xbf16>, vector<16x8xf32> -> vector<16x8xf32>
    %115 = arith.truncf %114 : vector<16x8xf32> to vector<16x8xbf16>
    %116 = vector.extract_strided_slice %13 {offsets = [24, 0], sizes = [8, 32], strides = [1, 1]} : vector<32x32xbf16> to vector<8x32xbf16>
    %cst_38 = arith.constant dense<0.000000e+00> : vector<16x32xf32>
    %117 = tpu.matmul %115, %116, %cst_38 {dimension_numbers = #tpu.dot_dimension_numbers<[1], [0], [0], [1], [0, 0, 1, 1], [], []>} : vector<16x8xbf16>, vector<8x32xbf16>, vector<16x32xf32> -> vector<16x32xf32>
    %118 = arith.addf %92, %117 : vector<16x32xf32>
    %c0_39 = arith.constant 0 : index
    %c0_40 = arith.constant 0 : index
    %c0_41 = arith.constant 0 : index
    %119 = vector.load %arg7[%c0_39, %c0_40, %c0_41] : memref<2x1x32xf32, #tpu.memory_space<vmem>>, vector<1x1x32xf32>
    %120 = vector.shape_cast %119 : vector<1x1x32xf32> to vector<1x32xf32>
    %121 = vector.broadcast %120 : vector<1x32xf32> to vector<16x32xf32>
    %122 = arith.addf %118, %121 : vector<16x32xf32>
    %123 = arith.addf %2, %122 : vector<16x32xf32>
    %cst_42 = arith.constant dense<0.000000e+00> : vector<16xf32>
    %124 = vector.multi_reduction <add>, %123, %cst_42 [1] : vector<16x32xf32> to vector<16xf32>
    %125 = vector.shape_cast %124 : vector<16xf32> to vector<16x1xf32>
    %cst_43 = arith.constant 3.200000e+01 : f32
    %126 = vector.broadcast %cst_43 : f32 to vector<16x1xf32>
    %127 = arith.divf %125, %126 : vector<16x1xf32>
    %128 = vector.broadcast %127 : vector<16x1xf32> to vector<16x32xf32>
    %129 = arith.subf %123, %128 : vector<16x32xf32>
    %130 = arith.mulf %129, %129 : vector<16x32xf32>
    %cst_44 = arith.constant dense<0.000000e+00> : vector<16xf32>
    %131 = vector.multi_reduction <add>, %130, %cst_44 [1] : vector<16x32xf32> to vector<16xf32>
    %132 = vector.shape_cast %131 : vector<16xf32> to vector<16x1xf32>
    %cst_45 = arith.constant 3.200000e+01 : f32
    %133 = vector.broadcast %cst_45 : f32 to vector<16x1xf32>
    %134 = arith.divf %132, %133 : vector<16x1xf32>
    %135 = vector.broadcast %127 : vector<16x1xf32> to vector<16x32xf32>
    %136 = arith.subf %123, %135 : vector<16x32xf32>
    %cst_46 = arith.constant 9.99999974E-6 : f32
    %137 = vector.broadcast %cst_46 : f32 to vector<16x1xf32>
    %138 = arith.addf %134, %137 : vector<16x1xf32>
    %139 = math.rsqrt %138 : vector<16x1xf32>
    %140 = vector.broadcast %139 : vector<16x1xf32> to vector<16x32xf32>
    %141 = arith.mulf %136, %140 : vector<16x32xf32>
    %c0_47 = arith.constant 0 : index
    %c0_48 = arith.constant 0 : index
    %c0_49 = arith.constant 0 : index
    %142 = vector.load %arg8[%c0_47, %c0_48, %c0_49] : memref<2x1x32xf32, #tpu.memory_space<vmem>>, vector<1x1x32xf32>
    %143 = vector.shape_cast %142 : vector<1x1x32xf32> to vector<1x32xf32>
    %144 = vector.broadcast %143 : vector<1x32xf32> to vector<16x32xf32>
    %145 = arith.mulf %141, %144 : vector<16x32xf32>
    %c0_50 = arith.constant 0 : index
    %c0_51 = arith.constant 0 : index
    %c0_52 = arith.constant 0 : index
    %146 = vector.load %arg9[%c0_50, %c0_51, %c0_52] : memref<2x1x32xf32, #tpu.memory_space<vmem>>, vector<1x1x32xf32>
    %147 = vector.shape_cast %146 : vector<1x1x32xf32> to vector<1x32xf32>
    %148 = vector.broadcast %147 : vector<1x32xf32> to vector<16x32xf32>
    %149 = arith.addf %145, %148 : vector<16x32xf32>
    %150 = arith.truncf %149 : vector<16x32xf32> to vector<16x32xbf16>
    %c0_53 = arith.constant 0 : index
    %c0_54 = arith.constant 0 : index
    %c0_55 = arith.constant 0 : index
    %151 = vector.load %arg10[%c0_53, %c0_54, %c0_55] : memref<2x32x2048xbf16, #tpu.memory_space<vmem>>, vector<1x32x2048xbf16>
    %152 = vector.shape_cast %151 : vector<1x32x2048xbf16> to vector<32x2048xbf16>
    %cst_56 = arith.constant dense<0.000000e+00> : vector<16x2048xf32>
    %153 = tpu.matmul %150, %152, %cst_56 {dimension_numbers = #tpu.dot_dimension_numbers<[1], [0], [0], [1], [0, 0, 1, 1], [], []>} : vector<16x32xbf16>, vector<32x2048xbf16>, vector<16x2048xf32> -> vector<16x2048xf32>
    %c0_57 = arith.constant 0 : index
    %c0_58 = arith.constant 0 : index
    %c0_59 = arith.constant 0 : index
    %154 = vector.load %arg11[%c0_57, %c0_58, %c0_59] : memref<2x1x2048xf32, #tpu.memory_space<vmem>>, vector<1x1x2048xf32>
    %155 = vector.shape_cast %154 : vector<1x1x2048xf32> to vector<1x2048xf32>
    %156 = vector.broadcast %155 : vector<1x2048xf32> to vector<16x2048xf32>
    %157 = arith.addf %153, %156 : vector<16x2048xf32>
    %cst_60 = arith.constant 0.000000e+00 : f32
    %158 = vector.broadcast %cst_60 : f32 to vector<16x2048xf32>
    %159 = arith.maximumf %157, %158 : vector<16x2048xf32>
    %160 = arith.truncf %159 : vector<16x2048xf32> to vector<16x2048xbf16>
    %c0_61 = arith.constant 0 : index
    %c0_62 = arith.constant 0 : index
    %c0_63 = arith.constant 0 : index
    %161 = vector.load %arg12[%c0_61, %c0_62, %c0_63] : memref<2x2048x32xbf16, #tpu.memory_space<vmem>>, vector<1x2048x32xbf16>
    %162 = vector.shape_cast %161 : vector<1x2048x32xbf16> to vector<2048x32xbf16>
    %cst_64 = arith.constant dense<0.000000e+00> : vector<16x32xf32>
    %163 = tpu.matmul %160, %162, %cst_64 {dimension_numbers = #tpu.dot_dimension_numbers<[1], [0], [0], [1], [0, 0, 1, 1], [], []>} : vector<16x2048xbf16>, vector<2048x32xbf16>, vector<16x32xf32> -> vector<16x32xf32>
    %c0_65 = arith.constant 0 : index
    %c0_66 = arith.constant 0 : index
    %c0_67 = arith.constant 0 : index
    %164 = vector.load %arg13[%c0_65, %c0_66, %c0_67] : memref<2x1x32xf32, #tpu.memory_space<vmem>>, vector<1x1x32xf32>
    %165 = vector.shape_cast %164 : vector<1x1x32xf32> to vector<1x32xf32>
    %166 = vector.broadcast %165 : vector<1x32xf32> to vector<16x32xf32>
    %167 = arith.addf %163, %166 : vector<16x32xf32>
    %168 = arith.addf %149, %167 : vector<16x32xf32>
    %cst_68 = arith.constant dense<0.000000e+00> : vector<16xf32>
    %169 = vector.multi_reduction <add>, %168, %cst_68 [1] : vector<16x32xf32> to vector<16xf32>
    %170 = vector.shape_cast %169 : vector<16xf32> to vector<16x1xf32>
    %cst_69 = arith.constant 3.200000e+01 : f32
    %171 = vector.broadcast %cst_69 : f32 to vector<16x1xf32>
    %172 = arith.divf %170, %171 : vector<16x1xf32>
    %173 = vector.broadcast %172 : vector<16x1xf32> to vector<16x32xf32>
    %174 = arith.subf %168, %173 : vector<16x32xf32>
    %175 = arith.mulf %174, %174 : vector<16x32xf32>
    %cst_70 = arith.constant dense<0.000000e+00> : vector<16xf32>
    %176 = vector.multi_reduction <add>, %175, %cst_70 [1] : vector<16x32xf32> to vector<16xf32>
    %177 = vector.shape_cast %176 : vector<16xf32> to vector<16x1xf32>
    %cst_71 = arith.constant 3.200000e+01 : f32
    %178 = vector.broadcast %cst_71 : f32 to vector<16x1xf32>
    %179 = arith.divf %177, %178 : vector<16x1xf32>
    %180 = vector.broadcast %172 : vector<16x1xf32> to vector<16x32xf32>
    %181 = arith.subf %168, %180 : vector<16x32xf32>
    %cst_72 = arith.constant 9.99999974E-6 : f32
    %182 = vector.broadcast %cst_72 : f32 to vector<16x1xf32>
    %183 = arith.addf %179, %182 : vector<16x1xf32>
    %184 = math.rsqrt %183 : vector<16x1xf32>
    %185 = vector.broadcast %184 : vector<16x1xf32> to vector<16x32xf32>
    %186 = arith.mulf %181, %185 : vector<16x32xf32>
    %c0_73 = arith.constant 0 : index
    %c0_74 = arith.constant 0 : index
    %c0_75 = arith.constant 0 : index
    %187 = vector.load %arg14[%c0_73, %c0_74, %c0_75] : memref<2x1x32xf32, #tpu.memory_space<vmem>>, vector<1x1x32xf32>
    %188 = vector.shape_cast %187 : vector<1x1x32xf32> to vector<1x32xf32>
    %189 = vector.broadcast %188 : vector<1x32xf32> to vector<16x32xf32>
    %190 = arith.mulf %186, %189 : vector<16x32xf32>
    %c0_76 = arith.constant 0 : index
    %c0_77 = arith.constant 0 : index
    %c0_78 = arith.constant 0 : index
    %191 = vector.load %arg15[%c0_76, %c0_77, %c0_78] : memref<2x1x32xf32, #tpu.memory_space<vmem>>, vector<1x1x32xf32>
    %192 = vector.shape_cast %191 : vector<1x1x32xf32> to vector<1x32xf32>
    %193 = vector.broadcast %192 : vector<1x32xf32> to vector<16x32xf32>
    %194 = arith.addf %190, %193 : vector<16x32xf32>
    %195 = arith.truncf %194 : vector<16x32xf32> to vector<16x32xbf16>
    %c1 = arith.constant 1 : index
    %c0_79 = arith.constant 0 : index
    %c0_80 = arith.constant 0 : index
    %196 = vector.load %arg4[%c1, %c0_79, %c0_80] : memref<2x32x96xbf16, #tpu.memory_space<vmem>>, vector<1x32x96xbf16>
    %197 = vector.shape_cast %196 : vector<1x32x96xbf16> to vector<32x96xbf16>
    %cst_81 = arith.constant dense<0.000000e+00> : vector<16x96xf32>
    %198 = tpu.matmul %195, %197, %cst_81 {dimension_numbers = #tpu.dot_dimension_numbers<[1], [0], [0], [1], [0, 0, 1, 1], [], []>} : vector<16x32xbf16>, vector<32x96xbf16>, vector<16x96xf32> -> vector<16x96xf32>
    %c1_82 = arith.constant 1 : index
    %c0_83 = arith.constant 0 : index
    %c0_84 = arith.constant 0 : index
    %199 = vector.load %arg5[%c1_82, %c0_83, %c0_84] : memref<2x1x96xf32, #tpu.memory_space<vmem>>, vector<1x1x96xf32>
    %200 = vector.shape_cast %199 : vector<1x1x96xf32> to vector<1x96xf32>
    %201 = vector.broadcast %200 : vector<1x96xf32> to vector<16x96xf32>
    %202 = arith.addf %198, %201 : vector<16x96xf32>
    %c1_85 = arith.constant 1 : index
    %c0_86 = arith.constant 0 : index
    %c0_87 = arith.constant 0 : index
    %203 = vector.load %arg6[%c1_85, %c0_86, %c0_87] : memref<2x32x32xbf16, #tpu.memory_space<vmem>>, vector<1x32x32xbf16>
    %204 = vector.shape_cast %203 : vector<1x32x32xbf16> to vector<32x32xbf16>
    %cst_88 = arith.constant 0.000000e+00 : f32
    %205 = vector.broadcast %cst_88 : f32 to vector<16x32xf32>
    %206 = vector.extract_strided_slice %202 {offsets = [0, 0], sizes = [16, 8], strides = [1, 1]} : vector<16x96xf32> to vector<16x8xf32>
    %207 = arith.truncf %206 : vector<16x8xf32> to vector<16x8xbf16>
    %208 = vector.extract_strided_slice %202 {offsets = [0, 32], sizes = [16, 8], strides = [1, 1]} : vector<16x96xf32> to vector<16x8xf32>
    %209 = arith.truncf %208 : vector<16x8xf32> to vector<16x8xbf16>
    %210 = vector.extract_strided_slice %202 {offsets = [0, 64], sizes = [16, 8], strides = [1, 1]} : vector<16x96xf32> to vector<16x8xf32>
    %211 = arith.truncf %210 : vector<16x8xf32> to vector<16x8xbf16>
    %cst_89 = arith.constant dense<0.000000e+00> : vector<16x16xf32>
    %212 = tpu.matmul %207, %209, %cst_89 {dimension_numbers = #tpu.dot_dimension_numbers<[1], [1], [0], [0], [0, 0, 1, 0], [], []>} : vector<16x8xbf16>, vector<16x8xbf16>, vector<16x16xf32> -> vector<16x16xf32>
    %cst_90 = arith.constant 0.353553385 : f32
    %213 = vector.broadcast %cst_90 : f32 to vector<16x16xf32>
    %214 = arith.mulf %212, %213 : vector<16x16xf32>
    %215 = arith.addf %214, %3 : vector<16x16xf32>
    %cst_91 = arith.constant dense<0xFF800000> : vector<16xf32>
    %216 = vector.multi_reduction <maximumf>, %215, %cst_91 [1] : vector<16x16xf32> to vector<16xf32>
    %217 = vector.shape_cast %216 : vector<16xf32> to vector<16x1xf32>
    %218 = vector.broadcast %217 : vector<16x1xf32> to vector<16x16xf32>
    %219 = arith.subf %215, %218 : vector<16x16xf32>
    %220 = math.exp %219 : vector<16x16xf32>
    %cst_92 = arith.constant dense<0.000000e+00> : vector<16xf32>
    %221 = vector.multi_reduction <add>, %220, %cst_92 [1] : vector<16x16xf32> to vector<16xf32>
    %222 = vector.shape_cast %221 : vector<16xf32> to vector<16x1xf32>
    %223 = tpu.reciprocal %222 {approx = true} : vector<16x1xf32> -> vector<16x1xf32>
    %224 = vector.broadcast %223 : vector<16x1xf32> to vector<16x16xf32>
    %225 = arith.mulf %220, %224 : vector<16x16xf32>
    %226 = arith.truncf %225 : vector<16x16xf32> to vector<16x16xbf16>
    %cst_93 = arith.constant dense<0.000000e+00> : vector<16x8xf32>
    %227 = tpu.matmul %226, %211, %cst_93 {dimension_numbers = #tpu.dot_dimension_numbers<[1], [0], [0], [1], [0, 0, 1, 1], [], []>} : vector<16x16xbf16>, vector<16x8xbf16>, vector<16x8xf32> -> vector<16x8xf32>
    %228 = arith.truncf %227 : vector<16x8xf32> to vector<16x8xbf16>
    %229 = vector.extract_strided_slice %204 {offsets = [0, 0], sizes = [8, 32], strides = [1, 1]} : vector<32x32xbf16> to vector<8x32xbf16>
    %cst_94 = arith.constant dense<0.000000e+00> : vector<16x32xf32>
    %230 = tpu.matmul %228, %229, %cst_94 {dimension_numbers = #tpu.dot_dimension_numbers<[1], [0], [0], [1], [0, 0, 1, 1], [], []>} : vector<16x8xbf16>, vector<8x32xbf16>, vector<16x32xf32> -> vector<16x32xf32>
    %231 = arith.addf %205, %230 : vector<16x32xf32>
    %232 = vector.extract_strided_slice %202 {offsets = [0, 8], sizes = [16, 8], strides = [1, 1]} : vector<16x96xf32> to vector<16x8xf32>
    %233 = arith.truncf %232 : vector<16x8xf32> to vector<16x8xbf16>
    %234 = vector.extract_strided_slice %202 {offsets = [0, 40], sizes = [16, 8], strides = [1, 1]} : vector<16x96xf32> to vector<16x8xf32>
    %235 = arith.truncf %234 : vector<16x8xf32> to vector<16x8xbf16>
    %236 = vector.extract_strided_slice %202 {offsets = [0, 72], sizes = [16, 8], strides = [1, 1]} : vector<16x96xf32> to vector<16x8xf32>
    %237 = arith.truncf %236 : vector<16x8xf32> to vector<16x8xbf16>
    %cst_95 = arith.constant dense<0.000000e+00> : vector<16x16xf32>
    %238 = tpu.matmul %233, %235, %cst_95 {dimension_numbers = #tpu.dot_dimension_numbers<[1], [1], [0], [0], [0, 0, 1, 0], [], []>} : vector<16x8xbf16>, vector<16x8xbf16>, vector<16x16xf32> -> vector<16x16xf32>
    %cst_96 = arith.constant 0.353553385 : f32
    %239 = vector.broadcast %cst_96 : f32 to vector<16x16xf32>
    %240 = arith.mulf %238, %239 : vector<16x16xf32>
    %241 = arith.addf %240, %3 : vector<16x16xf32>
    %cst_97 = arith.constant dense<0xFF800000> : vector<16xf32>
    %242 = vector.multi_reduction <maximumf>, %241, %cst_97 [1] : vector<16x16xf32> to vector<16xf32>
    %243 = vector.shape_cast %242 : vector<16xf32> to vector<16x1xf32>
    %244 = vector.broadcast %243 : vector<16x1xf32> to vector<16x16xf32>
    %245 = arith.subf %241, %244 : vector<16x16xf32>
    %246 = math.exp %245 : vector<16x16xf32>
    %cst_98 = arith.constant dense<0.000000e+00> : vector<16xf32>
    %247 = vector.multi_reduction <add>, %246, %cst_98 [1] : vector<16x16xf32> to vector<16xf32>
    %248 = vector.shape_cast %247 : vector<16xf32> to vector<16x1xf32>
    %249 = tpu.reciprocal %248 {approx = true} : vector<16x1xf32> -> vector<16x1xf32>
    %250 = vector.broadcast %249 : vector<16x1xf32> to vector<16x16xf32>
    %251 = arith.mulf %246, %250 : vector<16x16xf32>
    %252 = arith.truncf %251 : vector<16x16xf32> to vector<16x16xbf16>
    %cst_99 = arith.constant dense<0.000000e+00> : vector<16x8xf32>
    %253 = tpu.matmul %252, %237, %cst_99 {dimension_numbers = #tpu.dot_dimension_numbers<[1], [0], [0], [1], [0, 0, 1, 1], [], []>} : vector<16x16xbf16>, vector<16x8xbf16>, vector<16x8xf32> -> vector<16x8xf32>
    %254 = arith.truncf %253 : vector<16x8xf32> to vector<16x8xbf16>
    %255 = vector.extract_strided_slice %204 {offsets = [8, 0], sizes = [8, 32], strides = [1, 1]} : vector<32x32xbf16> to vector<8x32xbf16>
    %cst_100 = arith.constant dense<0.000000e+00> : vector<16x32xf32>
    %256 = tpu.matmul %254, %255, %cst_100 {dimension_numbers = #tpu.dot_dimension_numbers<[1], [0], [0], [1], [0, 0, 1, 1], [], []>} : vector<16x8xbf16>, vector<8x32xbf16>, vector<16x32xf32> -> vector<16x32xf32>
    %257 = arith.addf %231, %256 : vector<16x32xf32>
    %258 = vector.extract_strided_slice %202 {offsets = [0, 16], sizes = [16, 8], strides = [1, 1]} : vector<16x96xf32> to vector<16x8xf32>
    %259 = arith.truncf %258 : vector<16x8xf32> to vector<16x8xbf16>
    %260 = vector.extract_strided_slice %202 {offsets = [0, 48], sizes = [16, 8], strides = [1, 1]} : vector<16x96xf32> to vector<16x8xf32>
    %261 = arith.truncf %260 : vector<16x8xf32> to vector<16x8xbf16>
    %262 = vector.extract_strided_slice %202 {offsets = [0, 80], sizes = [16, 8], strides = [1, 1]} : vector<16x96xf32> to vector<16x8xf32>
    %263 = arith.truncf %262 : vector<16x8xf32> to vector<16x8xbf16>
    %cst_101 = arith.constant dense<0.000000e+00> : vector<16x16xf32>
    %264 = tpu.matmul %259, %261, %cst_101 {dimension_numbers = #tpu.dot_dimension_numbers<[1], [1], [0], [0], [0, 0, 1, 0], [], []>} : vector<16x8xbf16>, vector<16x8xbf16>, vector<16x16xf32> -> vector<16x16xf32>
    %cst_102 = arith.constant 0.353553385 : f32
    %265 = vector.broadcast %cst_102 : f32 to vector<16x16xf32>
    %266 = arith.mulf %264, %265 : vector<16x16xf32>
    %267 = arith.addf %266, %3 : vector<16x16xf32>
    %cst_103 = arith.constant dense<0xFF800000> : vector<16xf32>
    %268 = vector.multi_reduction <maximumf>, %267, %cst_103 [1] : vector<16x16xf32> to vector<16xf32>
    %269 = vector.shape_cast %268 : vector<16xf32> to vector<16x1xf32>
    %270 = vector.broadcast %269 : vector<16x1xf32> to vector<16x16xf32>
    %271 = arith.subf %267, %270 : vector<16x16xf32>
    %272 = math.exp %271 : vector<16x16xf32>
    %cst_104 = arith.constant dense<0.000000e+00> : vector<16xf32>
    %273 = vector.multi_reduction <add>, %272, %cst_104 [1] : vector<16x16xf32> to vector<16xf32>
    %274 = vector.shape_cast %273 : vector<16xf32> to vector<16x1xf32>
    %275 = tpu.reciprocal %274 {approx = true} : vector<16x1xf32> -> vector<16x1xf32>
    %276 = vector.broadcast %275 : vector<16x1xf32> to vector<16x16xf32>
    %277 = arith.mulf %272, %276 : vector<16x16xf32>
    %278 = arith.truncf %277 : vector<16x16xf32> to vector<16x16xbf16>
    %cst_105 = arith.constant dense<0.000000e+00> : vector<16x8xf32>
    %279 = tpu.matmul %278, %263, %cst_105 {dimension_numbers = #tpu.dot_dimension_numbers<[1], [0], [0], [1], [0, 0, 1, 1], [], []>} : vector<16x16xbf16>, vector<16x8xbf16>, vector<16x8xf32> -> vector<16x8xf32>
    %280 = arith.truncf %279 : vector<16x8xf32> to vector<16x8xbf16>
    %281 = vector.extract_strided_slice %204 {offsets = [16, 0], sizes = [8, 32], strides = [1, 1]} : vector<32x32xbf16> to vector<8x32xbf16>
    %cst_106 = arith.constant dense<0.000000e+00> : vector<16x32xf32>
    %282 = tpu.matmul %280, %281, %cst_106 {dimension_numbers = #tpu.dot_dimension_numbers<[1], [0], [0], [1], [0, 0, 1, 1], [], []>} : vector<16x8xbf16>, vector<8x32xbf16>, vector<16x32xf32> -> vector<16x32xf32>
    %283 = arith.addf %257, %282 : vector<16x32xf32>
    %284 = vector.extract_strided_slice %202 {offsets = [0, 24], sizes = [16, 8], strides = [1, 1]} : vector<16x96xf32> to vector<16x8xf32>
    %285 = arith.truncf %284 : vector<16x8xf32> to vector<16x8xbf16>
    %286 = vector.extract_strided_slice %202 {offsets = [0, 56], sizes = [16, 8], strides = [1, 1]} : vector<16x96xf32> to vector<16x8xf32>
    %287 = arith.truncf %286 : vector<16x8xf32> to vector<16x8xbf16>
    %288 = vector.extract_strided_slice %202 {offsets = [0, 88], sizes = [16, 8], strides = [1, 1]} : vector<16x96xf32> to vector<16x8xf32>
    %289 = arith.truncf %288 : vector<16x8xf32> to vector<16x8xbf16>
    %cst_107 = arith.constant dense<0.000000e+00> : vector<16x16xf32>
    %290 = tpu.matmul %285, %287, %cst_107 {dimension_numbers = #tpu.dot_dimension_numbers<[1], [1], [0], [0], [0, 0, 1, 0], [], []>} : vector<16x8xbf16>, vector<16x8xbf16>, vector<16x16xf32> -> vector<16x16xf32>
    %cst_108 = arith.constant 0.353553385 : f32
    %291 = vector.broadcast %cst_108 : f32 to vector<16x16xf32>
    %292 = arith.mulf %290, %291 : vector<16x16xf32>
    %293 = arith.addf %292, %3 : vector<16x16xf32>
    %cst_109 = arith.constant dense<0xFF800000> : vector<16xf32>
    %294 = vector.multi_reduction <maximumf>, %293, %cst_109 [1] : vector<16x16xf32> to vector<16xf32>
    %295 = vector.shape_cast %294 : vector<16xf32> to vector<16x1xf32>
    %296 = vector.broadcast %295 : vector<16x1xf32> to vector<16x16xf32>
    %297 = arith.subf %293, %296 : vector<16x16xf32>
    %298 = math.exp %297 : vector<16x16xf32>
    %cst_110 = arith.constant dense<0.000000e+00> : vector<16xf32>
    %299 = vector.multi_reduction <add>, %298, %cst_110 [1] : vector<16x16xf32> to vector<16xf32>
    %300 = vector.shape_cast %299 : vector<16xf32> to vector<16x1xf32>
    %301 = tpu.reciprocal %300 {approx = true} : vector<16x1xf32> -> vector<16x1xf32>
    %302 = vector.broadcast %301 : vector<16x1xf32> to vector<16x16xf32>
    %303 = arith.mulf %298, %302 : vector<16x16xf32>
    %304 = arith.truncf %303 : vector<16x16xf32> to vector<16x16xbf16>
    %cst_111 = arith.constant dense<0.000000e+00> : vector<16x8xf32>
    %305 = tpu.matmul %304, %289, %cst_111 {dimension_numbers = #tpu.dot_dimension_numbers<[1], [0], [0], [1], [0, 0, 1, 1], [], []>} : vector<16x16xbf16>, vector<16x8xbf16>, vector<16x8xf32> -> vector<16x8xf32>
    %306 = arith.truncf %305 : vector<16x8xf32> to vector<16x8xbf16>
    %307 = vector.extract_strided_slice %204 {offsets = [24, 0], sizes = [8, 32], strides = [1, 1]} : vector<32x32xbf16> to vector<8x32xbf16>
    %cst_112 = arith.constant dense<0.000000e+00> : vector<16x32xf32>
    %308 = tpu.matmul %306, %307, %cst_112 {dimension_numbers = #tpu.dot_dimension_numbers<[1], [0], [0], [1], [0, 0, 1, 1], [], []>} : vector<16x8xbf16>, vector<8x32xbf16>, vector<16x32xf32> -> vector<16x32xf32>
    %309 = arith.addf %283, %308 : vector<16x32xf32>
    %c1_113 = arith.constant 1 : index
    %c0_114 = arith.constant 0 : index
    %c0_115 = arith.constant 0 : index
    %310 = vector.load %arg7[%c1_113, %c0_114, %c0_115] : memref<2x1x32xf32, #tpu.memory_space<vmem>>, vector<1x1x32xf32>
    %311 = vector.shape_cast %310 : vector<1x1x32xf32> to vector<1x32xf32>
    %312 = vector.broadcast %311 : vector<1x32xf32> to vector<16x32xf32>
    %313 = arith.addf %309, %312 : vector<16x32xf32>
    %314 = arith.addf %194, %313 : vector<16x32xf32>
    %cst_116 = arith.constant dense<0.000000e+00> : vector<16xf32>
    %315 = vector.multi_reduction <add>, %314, %cst_116 [1] : vector<16x32xf32> to vector<16xf32>
    %316 = vector.shape_cast %315 : vector<16xf32> to vector<16x1xf32>
    %cst_117 = arith.constant 3.200000e+01 : f32
    %317 = vector.broadcast %cst_117 : f32 to vector<16x1xf32>
    %318 = arith.divf %316, %317 : vector<16x1xf32>
    %319 = vector.broadcast %318 : vector<16x1xf32> to vector<16x32xf32>
    %320 = arith.subf %314, %319 : vector<16x32xf32>
    %321 = arith.mulf %320, %320 : vector<16x32xf32>
    %cst_118 = arith.constant dense<0.000000e+00> : vector<16xf32>
    %322 = vector.multi_reduction <add>, %321, %cst_118 [1] : vector<16x32xf32> to vector<16xf32>
    %323 = vector.shape_cast %322 : vector<16xf32> to vector<16x1xf32>
    %cst_119 = arith.constant 3.200000e+01 : f32
    %324 = vector.broadcast %cst_119 : f32 to vector<16x1xf32>
    %325 = arith.divf %323, %324 : vector<16x1xf32>
    %326 = vector.broadcast %318 : vector<16x1xf32> to vector<16x32xf32>
    %327 = arith.subf %314, %326 : vector<16x32xf32>
    %cst_120 = arith.constant 9.99999974E-6 : f32
    %328 = vector.broadcast %cst_120 : f32 to vector<16x1xf32>
    %329 = arith.addf %325, %328 : vector<16x1xf32>
    %330 = math.rsqrt %329 : vector<16x1xf32>
    %331 = vector.broadcast %330 : vector<16x1xf32> to vector<16x32xf32>
    %332 = arith.mulf %327, %331 : vector<16x32xf32>
    %c1_121 = arith.constant 1 : index
    %c0_122 = arith.constant 0 : index
    %c0_123 = arith.constant 0 : index
    %333 = vector.load %arg8[%c1_121, %c0_122, %c0_123] : memref<2x1x32xf32, #tpu.memory_space<vmem>>, vector<1x1x32xf32>
    %334 = vector.shape_cast %333 : vector<1x1x32xf32> to vector<1x32xf32>
    %335 = vector.broadcast %334 : vector<1x32xf32> to vector<16x32xf32>
    %336 = arith.mulf %332, %335 : vector<16x32xf32>
    %c1_124 = arith.constant 1 : index
    %c0_125 = arith.constant 0 : index
    %c0_126 = arith.constant 0 : index
    %337 = vector.load %arg9[%c1_124, %c0_125, %c0_126] : memref<2x1x32xf32, #tpu.memory_space<vmem>>, vector<1x1x32xf32>
    %338 = vector.shape_cast %337 : vector<1x1x32xf32> to vector<1x32xf32>
    %339 = vector.broadcast %338 : vector<1x32xf32> to vector<16x32xf32>
    %340 = arith.addf %336, %339 : vector<16x32xf32>
    %341 = arith.truncf %340 : vector<16x32xf32> to vector<16x32xbf16>
    %c1_127 = arith.constant 1 : index
    %c0_128 = arith.constant 0 : index
    %c0_129 = arith.constant 0 : index
    %342 = vector.load %arg10[%c1_127, %c0_128, %c0_129] : memref<2x32x2048xbf16, #tpu.memory_space<vmem>>, vector<1x32x2048xbf16>
    %343 = vector.shape_cast %342 : vector<1x32x2048xbf16> to vector<32x2048xbf16>
    %cst_130 = arith.constant dense<0.000000e+00> : vector<16x2048xf32>
    %344 = tpu.matmul %341, %343, %cst_130 {dimension_numbers = #tpu.dot_dimension_numbers<[1], [0], [0], [1], [0, 0, 1, 1], [], []>} : vector<16x32xbf16>, vector<32x2048xbf16>, vector<16x2048xf32> -> vector<16x2048xf32>
    %c1_131 = arith.constant 1 : index
    %c0_132 = arith.constant 0 : index
    %c0_133 = arith.constant 0 : index
    %345 = vector.load %arg11[%c1_131, %c0_132, %c0_133] : memref<2x1x2048xf32, #tpu.memory_space<vmem>>, vector<1x1x2048xf32>
    %346 = vector.shape_cast %345 : vector<1x1x2048xf32> to vector<1x2048xf32>
    %347 = vector.broadcast %346 : vector<1x2048xf32> to vector<16x2048xf32>
    %348 = arith.addf %344, %347 : vector<16x2048xf32>
    %cst_134 = arith.constant 0.000000e+00 : f32
    %349 = vector.broadcast %cst_134 : f32 to vector<16x2048xf32>
    %350 = arith.maximumf %348, %349 : vector<16x2048xf32>
    %351 = arith.truncf %350 : vector<16x2048xf32> to vector<16x2048xbf16>
    %c1_135 = arith.constant 1 : index
    %c0_136 = arith.constant 0 : index
    %c0_137 = arith.constant 0 : index
    %352 = vector.load %arg12[%c1_135, %c0_136, %c0_137] : memref<2x2048x32xbf16, #tpu.memory_space<vmem>>, vector<1x2048x32xbf16>
    %353 = vector.shape_cast %352 : vector<1x2048x32xbf16> to vector<2048x32xbf16>
    %cst_138 = arith.constant dense<0.000000e+00> : vector<16x32xf32>
    %354 = tpu.matmul %351, %353, %cst_138 {dimension_numbers = #tpu.dot_dimension_numbers<[1], [0], [0], [1], [0, 0, 1, 1], [], []>} : vector<16x2048xbf16>, vector<2048x32xbf16>, vector<16x32xf32> -> vector<16x32xf32>
    %c1_139 = arith.constant 1 : index
    %c0_140 = arith.constant 0 : index
    %c0_141 = arith.constant 0 : index
    %355 = vector.load %arg13[%c1_139, %c0_140, %c0_141] : memref<2x1x32xf32, #tpu.memory_space<vmem>>, vector<1x1x32xf32>
    %356 = vector.shape_cast %355 : vector<1x1x32xf32> to vector<1x32xf32>
    %357 = vector.broadcast %356 : vector<1x32xf32> to vector<16x32xf32>
    %358 = arith.addf %354, %357 : vector<16x32xf32>
    %359 = arith.addf %340, %358 : vector<16x32xf32>
    %cst_142 = arith.constant dense<0.000000e+00> : vector<16xf32>
    %360 = vector.multi_reduction <add>, %359, %cst_142 [1] : vector<16x32xf32> to vector<16xf32>
    %361 = vector.shape_cast %360 : vector<16xf32> to vector<16x1xf32>
    %cst_143 = arith.constant 3.200000e+01 : f32
    %362 = vector.broadcast %cst_143 : f32 to vector<16x1xf32>
    %363 = arith.divf %361, %362 : vector<16x1xf32>
    %364 = vector.broadcast %363 : vector<16x1xf32> to vector<16x32xf32>
    %365 = arith.subf %359, %364 : vector<16x32xf32>
    %366 = arith.mulf %365, %365 : vector<16x32xf32>
    %cst_144 = arith.constant dense<0.000000e+00> : vector<16xf32>
    %367 = vector.multi_reduction <add>, %366, %cst_144 [1] : vector<16x32xf32> to vector<16xf32>
    %368 = vector.shape_cast %367 : vector<16xf32> to vector<16x1xf32>
    %cst_145 = arith.constant 3.200000e+01 : f32
    %369 = vector.broadcast %cst_145 : f32 to vector<16x1xf32>
    %370 = arith.divf %368, %369 : vector<16x1xf32>
    %371 = vector.broadcast %363 : vector<16x1xf32> to vector<16x32xf32>
    %372 = arith.subf %359, %371 : vector<16x32xf32>
    %cst_146 = arith.constant 9.99999974E-6 : f32
    %373 = vector.broadcast %cst_146 : f32 to vector<16x1xf32>
    %374 = arith.addf %370, %373 : vector<16x1xf32>
    %375 = math.rsqrt %374 : vector<16x1xf32>
    %376 = vector.broadcast %375 : vector<16x1xf32> to vector<16x32xf32>
    %377 = arith.mulf %372, %376 : vector<16x32xf32>
    %c1_147 = arith.constant 1 : index
    %c0_148 = arith.constant 0 : index
    %c0_149 = arith.constant 0 : index
    %378 = vector.load %arg14[%c1_147, %c0_148, %c0_149] : memref<2x1x32xf32, #tpu.memory_space<vmem>>, vector<1x1x32xf32>
    %379 = vector.shape_cast %378 : vector<1x1x32xf32> to vector<1x32xf32>
    %380 = vector.broadcast %379 : vector<1x32xf32> to vector<16x32xf32>
    %381 = arith.mulf %377, %380 : vector<16x32xf32>
    %c1_150 = arith.constant 1 : index
    %c0_151 = arith.constant 0 : index
    %c0_152 = arith.constant 0 : index
    %382 = vector.load %arg15[%c1_150, %c0_151, %c0_152] : memref<2x1x32xf32, #tpu.memory_space<vmem>>, vector<1x1x32xf32>
    %383 = vector.shape_cast %382 : vector<1x1x32xf32> to vector<1x32xf32>
    %384 = vector.broadcast %383 : vector<1x32xf32> to vector<16x32xf32>
    %385 = arith.addf %381, %384 : vector<16x32xf32>
    %cst_153 = arith.constant 0.000000e+00 : f32
    %386 = vector.broadcast %cst_153 : f32 to vector<1x128xf32>
    %387 = vector.extract_strided_slice %385 {offsets = [0, 0], sizes = [1, 32], strides = [1, 1]} : vector<16x32xf32> to vector<1x32xf32>
    %388 = arith.truncf %387 : vector<1x32xf32> to vector<1x32xbf16>
    %c0_154 = arith.constant 0 : index
    %c0_155 = arith.constant 0 : index
    %c0_156 = arith.constant 0 : index
    %389 = vector.load %arg16[%c0_154, %c0_155, %c0_156] : memref<8x32x128xbf16, #tpu.memory_space<vmem>>, vector<1x32x128xbf16>
    %390 = vector.shape_cast %389 : vector<1x32x128xbf16> to vector<32x128xbf16>
    %cst_157 = arith.constant dense<0.000000e+00> : vector<1x128xf32>
    %391 = tpu.matmul %388, %390, %cst_157 {dimension_numbers = #tpu.dot_dimension_numbers<[1], [0], [0], [1], [0, 0, 1, 1], [], []>} : vector<1x32xbf16>, vector<32x128xbf16>, vector<1x128xf32> -> vector<1x128xf32>
    %392 = arith.addf %386, %391 : vector<1x128xf32>
    %393 = vector.extract_strided_slice %385 {offsets = [1, 0], sizes = [1, 32], strides = [1, 1]} : vector<16x32xf32> to vector<1x32xf32>
    %394 = arith.truncf %393 : vector<1x32xf32> to vector<1x32xbf16>
    %c1_158 = arith.constant 1 : index
    %c0_159 = arith.constant 0 : index
    %c0_160 = arith.constant 0 : index
    %395 = vector.load %arg16[%c1_158, %c0_159, %c0_160] : memref<8x32x128xbf16, #tpu.memory_space<vmem>>, vector<1x32x128xbf16>
    %396 = vector.shape_cast %395 : vector<1x32x128xbf16> to vector<32x128xbf16>
    %cst_161 = arith.constant dense<0.000000e+00> : vector<1x128xf32>
    %397 = tpu.matmul %394, %396, %cst_161 {dimension_numbers = #tpu.dot_dimension_numbers<[1], [0], [0], [1], [0, 0, 1, 1], [], []>} : vector<1x32xbf16>, vector<32x128xbf16>, vector<1x128xf32> -> vector<1x128xf32>
    %398 = arith.addf %392, %397 : vector<1x128xf32>
    %399 = vector.extract_strided_slice %385 {offsets = [2, 0], sizes = [1, 32], strides = [1, 1]} : vector<16x32xf32> to vector<1x32xf32>
    %400 = arith.truncf %399 : vector<1x32xf32> to vector<1x32xbf16>
    %c2 = arith.constant 2 : index
    %c0_162 = arith.constant 0 : index
    %c0_163 = arith.constant 0 : index
    %401 = vector.load %arg16[%c2, %c0_162, %c0_163] : memref<8x32x128xbf16, #tpu.memory_space<vmem>>, vector<1x32x128xbf16>
    %402 = vector.shape_cast %401 : vector<1x32x128xbf16> to vector<32x128xbf16>
    %cst_164 = arith.constant dense<0.000000e+00> : vector<1x128xf32>
    %403 = tpu.matmul %400, %402, %cst_164 {dimension_numbers = #tpu.dot_dimension_numbers<[1], [0], [0], [1], [0, 0, 1, 1], [], []>} : vector<1x32xbf16>, vector<32x128xbf16>, vector<1x128xf32> -> vector<1x128xf32>
    %404 = arith.addf %398, %403 : vector<1x128xf32>
    %405 = vector.extract_strided_slice %385 {offsets = [3, 0], sizes = [1, 32], strides = [1, 1]} : vector<16x32xf32> to vector<1x32xf32>
    %406 = arith.truncf %405 : vector<1x32xf32> to vector<1x32xbf16>
    %c3 = arith.constant 3 : index
    %c0_165 = arith.constant 0 : index
    %c0_166 = arith.constant 0 : index
    %407 = vector.load %arg16[%c3, %c0_165, %c0_166] : memref<8x32x128xbf16, #tpu.memory_space<vmem>>, vector<1x32x128xbf16>
    %408 = vector.shape_cast %407 : vector<1x32x128xbf16> to vector<32x128xbf16>
    %cst_167 = arith.constant dense<0.000000e+00> : vector<1x128xf32>
    %409 = tpu.matmul %406, %408, %cst_167 {dimension_numbers = #tpu.dot_dimension_numbers<[1], [0], [0], [1], [0, 0, 1, 1], [], []>} : vector<1x32xbf16>, vector<32x128xbf16>, vector<1x128xf32> -> vector<1x128xf32>
    %410 = arith.addf %404, %409 : vector<1x128xf32>
    %411 = vector.extract_strided_slice %385 {offsets = [4, 0], sizes = [1, 32], strides = [1, 1]} : vector<16x32xf32> to vector<1x32xf32>
    %412 = arith.truncf %411 : vector<1x32xf32> to vector<1x32xbf16>
    %c4 = arith.constant 4 : index
    %c0_168 = arith.constant 0 : index
    %c0_169 = arith.constant 0 : index
    %413 = vector.load %arg16[%c4, %c0_168, %c0_169] : memref<8x32x128xbf16, #tpu.memory_space<vmem>>, vector<1x32x128xbf16>
    %414 = vector.shape_cast %413 : vector<1x32x128xbf16> to vector<32x128xbf16>
    %cst_170 = arith.constant dense<0.000000e+00> : vector<1x128xf32>
    %415 = tpu.matmul %412, %414, %cst_170 {dimension_numbers = #tpu.dot_dimension_numbers<[1], [0], [0], [1], [0, 0, 1, 1], [], []>} : vector<1x32xbf16>, vector<32x128xbf16>, vector<1x128xf32> -> vector<1x128xf32>
    %416 = arith.addf %410, %415 : vector<1x128xf32>
    %417 = vector.extract_strided_slice %385 {offsets = [5, 0], sizes = [1, 32], strides = [1, 1]} : vector<16x32xf32> to vector<1x32xf32>
    %418 = arith.truncf %417 : vector<1x32xf32> to vector<1x32xbf16>
    %c5 = arith.constant 5 : index
    %c0_171 = arith.constant 0 : index
    %c0_172 = arith.constant 0 : index
    %419 = vector.load %arg16[%c5, %c0_171, %c0_172] : memref<8x32x128xbf16, #tpu.memory_space<vmem>>, vector<1x32x128xbf16>
    %420 = vector.shape_cast %419 : vector<1x32x128xbf16> to vector<32x128xbf16>
    %cst_173 = arith.constant dense<0.000000e+00> : vector<1x128xf32>
    %421 = tpu.matmul %418, %420, %cst_173 {dimension_numbers = #tpu.dot_dimension_numbers<[1], [0], [0], [1], [0, 0, 1, 1], [], []>} : vector<1x32xbf16>, vector<32x128xbf16>, vector<1x128xf32> -> vector<1x128xf32>
    %422 = arith.addf %416, %421 : vector<1x128xf32>
    %423 = vector.extract_strided_slice %385 {offsets = [6, 0], sizes = [1, 32], strides = [1, 1]} : vector<16x32xf32> to vector<1x32xf32>
    %424 = arith.truncf %423 : vector<1x32xf32> to vector<1x32xbf16>
    %c6 = arith.constant 6 : index
    %c0_174 = arith.constant 0 : index
    %c0_175 = arith.constant 0 : index
    %425 = vector.load %arg16[%c6, %c0_174, %c0_175] : memref<8x32x128xbf16, #tpu.memory_space<vmem>>, vector<1x32x128xbf16>
    %426 = vector.shape_cast %425 : vector<1x32x128xbf16> to vector<32x128xbf16>
    %cst_176 = arith.constant dense<0.000000e+00> : vector<1x128xf32>
    %427 = tpu.matmul %424, %426, %cst_176 {dimension_numbers = #tpu.dot_dimension_numbers<[1], [0], [0], [1], [0, 0, 1, 1], [], []>} : vector<1x32xbf16>, vector<32x128xbf16>, vector<1x128xf32> -> vector<1x128xf32>
    %428 = arith.addf %422, %427 : vector<1x128xf32>
    %429 = vector.extract_strided_slice %385 {offsets = [7, 0], sizes = [1, 32], strides = [1, 1]} : vector<16x32xf32> to vector<1x32xf32>
    %430 = arith.truncf %429 : vector<1x32xf32> to vector<1x32xbf16>
    %c7 = arith.constant 7 : index
    %c0_177 = arith.constant 0 : index
    %c0_178 = arith.constant 0 : index
    %431 = vector.load %arg16[%c7, %c0_177, %c0_178] : memref<8x32x128xbf16, #tpu.memory_space<vmem>>, vector<1x32x128xbf16>
    %432 = vector.shape_cast %431 : vector<1x32x128xbf16> to vector<32x128xbf16>
    %cst_179 = arith.constant dense<0.000000e+00> : vector<1x128xf32>
    %433 = tpu.matmul %430, %432, %cst_179 {dimension_numbers = #tpu.dot_dimension_numbers<[1], [0], [0], [1], [0, 0, 1, 1], [], []>} : vector<1x32xbf16>, vector<32x128xbf16>, vector<1x128xf32> -> vector<1x128xf32>
    %434 = arith.addf %428, %433 : vector<1x128xf32>
    %cst_180 = arith.constant 0.000000e+00 : f32
    %435 = vector.broadcast %cst_180 : f32 to vector<1x128xf32>
    %436 = vector.extract_strided_slice %385 {offsets = [8, 0], sizes = [1, 32], strides = [1, 1]} : vector<16x32xf32> to vector<1x32xf32>
    %437 = arith.truncf %436 : vector<1x32xf32> to vector<1x32xbf16>
    %c0_181 = arith.constant 0 : index
    %c0_182 = arith.constant 0 : index
    %c0_183 = arith.constant 0 : index
    %438 = vector.load %arg16[%c0_181, %c0_182, %c0_183] : memref<8x32x128xbf16, #tpu.memory_space<vmem>>, vector<1x32x128xbf16>
    %439 = vector.shape_cast %438 : vector<1x32x128xbf16> to vector<32x128xbf16>
    %cst_184 = arith.constant dense<0.000000e+00> : vector<1x128xf32>
    %440 = tpu.matmul %437, %439, %cst_184 {dimension_numbers = #tpu.dot_dimension_numbers<[1], [0], [0], [1], [0, 0, 1, 1], [], []>} : vector<1x32xbf16>, vector<32x128xbf16>, vector<1x128xf32> -> vector<1x128xf32>
    %441 = arith.addf %435, %440 : vector<1x128xf32>
    %442 = vector.extract_strided_slice %385 {offsets = [9, 0], sizes = [1, 32], strides = [1, 1]} : vector<16x32xf32> to vector<1x32xf32>
    %443 = arith.truncf %442 : vector<1x32xf32> to vector<1x32xbf16>
    %c1_185 = arith.constant 1 : index
    %c0_186 = arith.constant 0 : index
    %c0_187 = arith.constant 0 : index
    %444 = vector.load %arg16[%c1_185, %c0_186, %c0_187] : memref<8x32x128xbf16, #tpu.memory_space<vmem>>, vector<1x32x128xbf16>
    %445 = vector.shape_cast %444 : vector<1x32x128xbf16> to vector<32x128xbf16>
    %cst_188 = arith.constant dense<0.000000e+00> : vector<1x128xf32>
    %446 = tpu.matmul %443, %445, %cst_188 {dimension_numbers = #tpu.dot_dimension_numbers<[1], [0], [0], [1], [0, 0, 1, 1], [], []>} : vector<1x32xbf16>, vector<32x128xbf16>, vector<1x128xf32> -> vector<1x128xf32>
    %447 = arith.addf %441, %446 : vector<1x128xf32>
    %448 = vector.extract_strided_slice %385 {offsets = [10, 0], sizes = [1, 32], strides = [1, 1]} : vector<16x32xf32> to vector<1x32xf32>
    %449 = arith.truncf %448 : vector<1x32xf32> to vector<1x32xbf16>
    %c2_189 = arith.constant 2 : index
    %c0_190 = arith.constant 0 : index
    %c0_191 = arith.constant 0 : index
    %450 = vector.load %arg16[%c2_189, %c0_190, %c0_191] : memref<8x32x128xbf16, #tpu.memory_space<vmem>>, vector<1x32x128xbf16>
    %451 = vector.shape_cast %450 : vector<1x32x128xbf16> to vector<32x128xbf16>
    %cst_192 = arith.constant dense<0.000000e+00> : vector<1x128xf32>
    %452 = tpu.matmul %449, %451, %cst_192 {dimension_numbers = #tpu.dot_dimension_numbers<[1], [0], [0], [1], [0, 0, 1, 1], [], []>} : vector<1x32xbf16>, vector<32x128xbf16>, vector<1x128xf32> -> vector<1x128xf32>
    %453 = arith.addf %447, %452 : vector<1x128xf32>
    %454 = vector.extract_strided_slice %385 {offsets = [11, 0], sizes = [1, 32], strides = [1, 1]} : vector<16x32xf32> to vector<1x32xf32>
    %455 = arith.truncf %454 : vector<1x32xf32> to vector<1x32xbf16>
    %c3_193 = arith.constant 3 : index
    %c0_194 = arith.constant 0 : index
    %c0_195 = arith.constant 0 : index
    %456 = vector.load %arg16[%c3_193, %c0_194, %c0_195] : memref<8x32x128xbf16, #tpu.memory_space<vmem>>, vector<1x32x128xbf16>
    %457 = vector.shape_cast %456 : vector<1x32x128xbf16> to vector<32x128xbf16>
    %cst_196 = arith.constant dense<0.000000e+00> : vector<1x128xf32>
    %458 = tpu.matmul %455, %457, %cst_196 {dimension_numbers = #tpu.dot_dimension_numbers<[1], [0], [0], [1], [0, 0, 1, 1], [], []>} : vector<1x32xbf16>, vector<32x128xbf16>, vector<1x128xf32> -> vector<1x128xf32>
    %459 = arith.addf %453, %458 : vector<1x128xf32>
    %460 = vector.extract_strided_slice %385 {offsets = [12, 0], sizes = [1, 32], strides = [1, 1]} : vector<16x32xf32> to vector<1x32xf32>
    %461 = arith.truncf %460 : vector<1x32xf32> to vector<1x32xbf16>
    %c4_197 = arith.constant 4 : index
    %c0_198 = arith.constant 0 : index
    %c0_199 = arith.constant 0 : index
    %462 = vector.load %arg16[%c4_197, %c0_198, %c0_199] : memref<8x32x128xbf16, #tpu.memory_space<vmem>>, vector<1x32x128xbf16>
    %463 = vector.shape_cast %462 : vector<1x32x128xbf16> to vector<32x128xbf16>
    %cst_200 = arith.constant dense<0.000000e+00> : vector<1x128xf32>
    %464 = tpu.matmul %461, %463, %cst_200 {dimension_numbers = #tpu.dot_dimension_numbers<[1], [0], [0], [1], [0, 0, 1, 1], [], []>} : vector<1x32xbf16>, vector<32x128xbf16>, vector<1x128xf32> -> vector<1x128xf32>
    %465 = arith.addf %459, %464 : vector<1x128xf32>
    %466 = vector.extract_strided_slice %385 {offsets = [13, 0], sizes = [1, 32], strides = [1, 1]} : vector<16x32xf32> to vector<1x32xf32>
    %467 = arith.truncf %466 : vector<1x32xf32> to vector<1x32xbf16>
    %c5_201 = arith.constant 5 : index
    %c0_202 = arith.constant 0 : index
    %c0_203 = arith.constant 0 : index
    %468 = vector.load %arg16[%c5_201, %c0_202, %c0_203] : memref<8x32x128xbf16, #tpu.memory_space<vmem>>, vector<1x32x128xbf16>
    %469 = vector.shape_cast %468 : vector<1x32x128xbf16> to vector<32x128xbf16>
    %cst_204 = arith.constant dense<0.000000e+00> : vector<1x128xf32>
    %470 = tpu.matmul %467, %469, %cst_204 {dimension_numbers = #tpu.dot_dimension_numbers<[1], [0], [0], [1], [0, 0, 1, 1], [], []>} : vector<1x32xbf16>, vector<32x128xbf16>, vector<1x128xf32> -> vector<1x128xf32>
    %471 = arith.addf %465, %470 : vector<1x128xf32>
    %472 = vector.extract_strided_slice %385 {offsets = [14, 0], sizes = [1, 32], strides = [1, 1]} : vector<16x32xf32> to vector<1x32xf32>
    %473 = arith.truncf %472 : vector<1x32xf32> to vector<1x32xbf16>
    %c6_205 = arith.constant 6 : index
    %c0_206 = arith.constant 0 : index
    %c0_207 = arith.constant 0 : index
    %474 = vector.load %arg16[%c6_205, %c0_206, %c0_207] : memref<8x32x128xbf16, #tpu.memory_space<vmem>>, vector<1x32x128xbf16>
    %475 = vector.shape_cast %474 : vector<1x32x128xbf16> to vector<32x128xbf16>
    %cst_208 = arith.constant dense<0.000000e+00> : vector<1x128xf32>
    %476 = tpu.matmul %473, %475, %cst_208 {dimension_numbers = #tpu.dot_dimension_numbers<[1], [0], [0], [1], [0, 0, 1, 1], [], []>} : vector<1x32xbf16>, vector<32x128xbf16>, vector<1x128xf32> -> vector<1x128xf32>
    %477 = arith.addf %471, %476 : vector<1x128xf32>
    %478 = vector.extract_strided_slice %385 {offsets = [15, 0], sizes = [1, 32], strides = [1, 1]} : vector<16x32xf32> to vector<1x32xf32>
    %479 = arith.truncf %478 : vector<1x32xf32> to vector<1x32xbf16>
    %c7_209 = arith.constant 7 : index
    %c0_210 = arith.constant 0 : index
    %c0_211 = arith.constant 0 : index
    %480 = vector.load %arg16[%c7_209, %c0_210, %c0_211] : memref<8x32x128xbf16, #tpu.memory_space<vmem>>, vector<1x32x128xbf16>
    %481 = vector.shape_cast %480 : vector<1x32x128xbf16> to vector<32x128xbf16>
    %cst_212 = arith.constant dense<0.000000e+00> : vector<1x128xf32>
    %482 = tpu.matmul %479, %481, %cst_212 {dimension_numbers = #tpu.dot_dimension_numbers<[1], [0], [0], [1], [0, 0, 1, 1], [], []>} : vector<1x32xbf16>, vector<32x128xbf16>, vector<1x128xf32> -> vector<1x128xf32>
    %483 = arith.addf %477, %482 : vector<1x128xf32>
    %484 = tpu.concatenate %434, %483 in 0 : vector<1x128xf32>, vector<1x128xf32> -> vector<2x128xf32>
    %c0_213 = arith.constant 0 : index
    %c0_214 = arith.constant 0 : index
    %485 = vector.load %arg17[%c0_213, %c0_214] : memref<1x128xf32, #tpu.memory_space<vmem>>, vector<1x128xf32>
    %486 = vector.broadcast %485 : vector<1x128xf32> to vector<2x128xf32>
    %487 = arith.addf %484, %486 : vector<2x128xf32>
    %c0_215 = arith.constant 0 : index
    %c0_216 = arith.constant 0 : index
    %488 = vector.load %arg18[%c0_215, %c0_216] : memref<2x128xf32, #tpu.memory_space<vmem>>, vector<2x128xf32>
    tpu.vector_store %arg18[%c0_215, %c0_216], %487 {strides = array<i32>} : memref<2x128xf32, #tpu.memory_space<vmem>>, vector<2x128xf32>,
    return
  }
  func.func @transform_0(%arg0: i32) -> (i32, i32) {
    %c0_i32 = arith.constant 0 : i32
    %c0_i32_0 = arith.constant 0 : i32
    %c0_i32_1 = arith.constant 0 : i32
    return %c0_i32, %c0_i32_0 : i32, i32
  }
  func.func @transform_1(%arg0: i32) -> (i32, i32) {
    %c0_i32 = arith.constant 0 : i32
    %c0_i32_0 = arith.constant 0 : i32
    %c0_i32_1 = arith.constant 0 : i32
    return %c0_i32, %c0_i32_0 : i32, i32
  }
  func.func @transform_2(%arg0: i32) -> (i32, i32) {
    %c0_i32 = arith.constant 0 : i32
    %c0_i32_0 = arith.constant 0 : i32
    %c0_i32_1 = arith.constant 0 : i32
    return %c0_i32, %c0_i32_0 : i32, i32
  }
  func.func @transform_3(%arg0: i32) -> (i32, i32, i32) {
    %c0_i32 = arith.constant 0 : i32
    %c0_i32_0 = arith.constant 0 : i32
    %c0_i32_1 = arith.constant 0 : i32
    %c0_i32_2 = arith.constant 0 : i32
    return %c0_i32, %c0_i32_0, %c0_i32_1 : i32, i32, i32
  }
  func.func @transform_4(%arg0: i32) -> (i32, i32, i32) {
    %c0_i32 = arith.constant 0 : i32
    %c0_i32_0 = arith.constant 0 : i32
    %c0_i32_1 = arith.constant 0 : i32
    %c0_i32_2 = arith.constant 0 : i32
    return %c0_i32, %c0_i32_0, %c0_i32_1 : i32, i32, i32
  }
  func.func @transform_5(%arg0: i32) -> (i32, i32, i32) {
    %c0_i32 = arith.constant 0 : i32
    %c0_i32_0 = arith.constant 0 : i32
    %c0_i32_1 = arith.constant 0 : i32
    %c0_i32_2 = arith.constant 0 : i32
    return %c0_i32, %c0_i32_0, %c0_i32_1 : i32, i32, i32
  }
  func.func @transform_6(%arg0: i32) -> (i32, i32, i32) {
    %c0_i32 = arith.constant 0 : i32
    %c0_i32_0 = arith.constant 0 : i32
    %c0_i32_1 = arith.constant 0 : i32
    %c0_i32_2 = arith.constant 0 : i32
    return %c0_i32, %c0_i32_0, %c0_i32_1 : i32, i32, i32
  }
  func.func @transform_7(%arg0: i32) -> (i32, i32, i32) {
    %c0_i32 = arith.constant 0 : i32
    %c0_i32_0 = arith.constant 0 : i32
    %c0_i32_1 = arith.constant 0 : i32
    %c0_i32_2 = arith.constant 0 : i32
    return %c0_i32, %c0_i32_0, %c0_i32_1 : i32, i32, i32
  }
  func.func @transform_8(%arg0: i32) -> (i32, i32, i32) {
    %c0_i32 = arith.constant 0 : i32
    %c0_i32_0 = arith.constant 0 : i32
    %c0_i32_1 = arith.constant 0 : i32
    %c0_i32_2 = arith.constant 0 : i32
    return %c0_i32, %c0_i32_0, %c0_i32_1 : i32, i32, i32
  }
  func.func @transform_9(%arg0: i32) -> (i32, i32, i32) {
    %c0_i32 = arith.constant 0 : i32
    %c0_i32_0 = arith.constant 0 : i32
    %c0_i32_1 = arith.constant 0 : i32
    %c0_i32_2 = arith.constant 0 : i32
    return %c0_i32, %c0_i32_0, %c0_i32_1 : i32, i32, i32
  }
  func.func @transform_10(%arg0: i32) -> (i32, i32, i32) {
    %c0_i32 = arith.constant 0 : i32
    %c0_i32_0 = arith.constant 0 : i32
    %c0_i32_1 = arith.constant 0 : i32
    %c0_i32_2 = arith.constant 0 : i32
    return %c0_i32, %c0_i32_0, %c0_i32_1 : i32, i32, i32
  }
  func.func @transform_11(%arg0: i32) -> (i32, i32, i32) {
    %c0_i32 = arith.constant 0 : i32
    %c0_i32_0 = arith.constant 0 : i32
    %c0_i32_1 = arith.constant 0 : i32
    %c0_i32_2 = arith.constant 0 : i32
    return %c0_i32, %c0_i32_0, %c0_i32_1 : i32, i32, i32
  }
  func.func @transform_12(%arg0: i32) -> (i32, i32, i32) {
    %c0_i32 = arith.constant 0 : i32
    %c0_i32_0 = arith.constant 0 : i32
    %c0_i32_1 = arith.constant 0 : i32
    %c0_i32_2 = arith.constant 0 : i32
    return %c0_i32, %c0_i32_0, %c0_i32_1 : i32, i32, i32
  }
  func.func @transform_13(%arg0: i32) -> (i32, i32, i32) {
    %c0_i32 = arith.constant 0 : i32
    %c0_i32_0 = arith.constant 0 : i32
    %c0_i32_1 = arith.constant 0 : i32
    %c0_i32_2 = arith.constant 0 : i32
    return %c0_i32, %c0_i32_0, %c0_i32_1 : i32, i32, i32
  }
  func.func @transform_14(%arg0: i32) -> (i32, i32, i32) {
    %c0_i32 = arith.constant 0 : i32
    %c0_i32_0 = arith.constant 0 : i32
    %c0_i32_1 = arith.constant 0 : i32
    %c0_i32_2 = arith.constant 0 : i32
    return %c0_i32, %c0_i32_0, %c0_i32_1 : i32, i32, i32
  }
  func.func @transform_15(%arg0: i32) -> (i32, i32, i32) {
    %c0_i32 = arith.constant 0 : i32
    %c0_i32_0 = arith.constant 0 : i32
    %c0_i32_1 = arith.constant 0 : i32
    %c0_i32_2 = arith.constant 0 : i32
    return %c0_i32, %c0_i32_0, %c0_i32_1 : i32, i32, i32
  }
  func.func @transform_16(%arg0: i32) -> (i32, i32) {
    %c0_i32 = arith.constant 0 : i32
    %c0_i32_0 = arith.constant 0 : i32
    %c0_i32_1 = arith.constant 0 : i32
    return %c0_i32, %c0_i32_0 : i32, i32
  }
  func.func @transform_17(%arg0: i32) -> (i32, i32) {
    %c0_i32 = arith.constant 0 : i32
    %c0_i32_0 = arith.constant 0 : i32
    %c0_i32_1 = arith.constant 0 : i32
    return %c0_i32, %c0_i32_0 : i32, i32
  }
}

</mosaic_0001>

<llo_original>
// kernel: modelo_forward.1
$region0: #{modelo_forward.1}
  #allocation0 [shape = 'u32[]', space=smem, size = 0x4, offset = 0x4, fixed_abs, tag = 'smem constant byte address 0x4 - core index']
  #allocation1 [shape = 'u32[72,128]{1,0:T(1,128)}', space=vmem, size = 0x9000, scoped, tag = 'internal scratch']
  %s0 = inlined_call_operand.vmem [shape: f32[16,32], index: 0, kind: input, shape index: {}]
  %s1 = inlined_call_operand.vmem [shape: f32[16,32], index: 1, kind: input, shape index: {}]
  %s2 = inlined_call_operand.vmem [shape: f32[16,16], index: 2, kind: input, shape index: {}]
  %s3 = inlined_call_operand.vmem [shape: bf16[2,32,96], index: 3, kind: input, shape index: {}]
  %s4 = inlined_call_operand.vmem [shape: f32[2,1,96], index: 4, kind: input, shape index: {}]
  %s5 = inlined_call_operand.vmem [shape: bf16[2,32,32], index: 5, kind: input, shape index: {}]
  %s6 = inlined_call_operand.vmem [shape: f32[2,1,32], index: 6, kind: input, shape index: {}]
  %s7 = inlined_call_operand.vmem [shape: f32[2,1,32], index: 7, kind: input, shape index: {}]
  %s8 = inlined_call_operand.vmem [shape: f32[2,1,32], index: 8, kind: input, shape index: {}]
  %s9 = inlined_call_operand.vmem [shape: bf16[2,32,2048], index: 9, kind: input, shape index: {}]
  %s10 = inlined_call_operand.vmem [shape: f32[2,1,2048], index: 10, kind: input, shape index: {}]
  %s11 = inlined_call_operand.vmem [shape: bf16[2,2048,32], index: 11, kind: input, shape index: {}]
  %s12 = inlined_call_operand.vmem [shape: f32[2,1,32], index: 12, kind: input, shape index: {}]
  %s13 = inlined_call_operand.vmem [shape: f32[2,1,32], index: 13, kind: input, shape index: {}]
  %s14 = inlined_call_operand.vmem [shape: f32[2,1,32], index: 14, kind: input, shape index: {}]
  %s15 = inlined_call_operand.vmem [shape: bf16[8,32,128], index: 15, kind: input, shape index: {}]
  %s16 = inlined_call_operand.vmem [shape: f32[1,128], index: 16, kind: input, shape index: {}]
  %s17 = inlined_call_operand.hbm [shape: f32[2,128], index: 17, kind: output, shape index: {}]
  %s18 = sld [smem:[#allocation0]]
  $region78: #{modelo_forward.1} parent=0
    _
  %s20 = ssub.s32 1, %s18
  %s21 = scalar_select 0, %s20, %s18
  $region1: #{modelo_forward.1} parent=0
    #allocation2 [shape = 'u8[1024]{0}', space=vmem, size = 0x400, scoped, tag = 'output window, operand 0, single buffered']
    #allocation3 [shape = 's32[1]{0}', space=sflag, size = 0x4, scoped, tag = 'scoped memory for modelo_forward.1']
    %22 = vsyncpa [#allocation3], 0
    // Predicated region
    $region2: #{modelo_forward.1} parent=1 // pred_check
      _
    $region3: #{modelo_forward.1} parent=1 // pred_check_branch
      %24 = sbr.rel (0) target = $region5
    $region4: #{modelo_forward.1} parent=1 // pred_region
      _
    $region5: #{modelo_forward.1} parent=1 // pred_fallthru
      _
    // Predicated region
    $region6: #{modelo_forward.1} parent=1 // pred_check
      _
    $region7: #{modelo_forward.1} parent=1 // pred_check_branch
      %26 = sbr.rel (0) target = $region9
    $region8: #{modelo_forward.1} parent=1 // pred_region
      _
    $region9: #{modelo_forward.1} parent=1 // pred_fallthru
      _
    // Predicated region
    $region10: #{modelo_forward.1} parent=1 // pred_check
      _
    $region11: #{modelo_forward.1} parent=1 // pred_check_branch
      %28 = sbr.rel (0) target = $region13
    $region12: #{modelo_forward.1} parent=1 // pred_region
      _
    $region13: #{modelo_forward.1} parent=1 // pred_fallthru
      _
    // Predicated region
    $region14: #{modelo_forward.1} parent=1 // pred_check
      _
    $region15: #{modelo_forward.1} parent=1 // pred_check_branch
      %30 = sbr.rel (0) target = $region17
    $region16: #{modelo_forward.1} parent=1 // pred_region
      _
    $region17: #{modelo_forward.1} parent=1 // pred_fallthru
      _
    // Predicated region
    $region18: #{modelo_forward.1} parent=1 // pred_check
      _
    $region19: #{modelo_forward.1} parent=1 // pred_check_branch
      %32 = sbr.rel (0) target = $region21
    $region20: #{modelo_forward.1} parent=1 // pred_region
      _
    $region21: #{modelo_forward.1} parent=1 // pred_fallthru
      _
    // Predicated region
    $region22: #{modelo_forward.1} parent=1 // pred_check
      _
    $region23: #{modelo_forward.1} parent=1 // pred_check_branch
      %34 = sbr.rel (0) target = $region25
    $region24: #{modelo_forward.1} parent=1 // pred_region
      _
    $region25: #{modelo_forward.1} parent=1 // pred_fallthru
      _
    // Predicated region
    $region26: #{modelo_forward.1} parent=1 // pred_check
      _
    $region27: #{modelo_forward.1} parent=1 // pred_check_branch
      %36 = sbr.rel (0) target = $region29
    $region28: #{modelo_forward.1} parent=1 // pred_region
      _
    $region29: #{modelo_forward.1} parent=1 // pred_fallthru
      _
    // Predicated region
    $region30: #{modelo_forward.1} parent=1 // pred_check
      _
    $region31: #{modelo_forward.1} parent=1 // pred_check_branch
      %38 = sbr.rel (0) target = $region33
    $region32: #{modelo_forward.1} parent=1 // pred_region
      _
    $region33: #{modelo_forward.1} parent=1 // pred_fallthru
      _
    // Predicated region
    $region34: #{modelo_forward.1} parent=1 // pred_check
      _
    $region35: #{modelo_forward.1} parent=1 // pred_check_branch
      %40 = sbr.rel (0) target = $region37
    $region36: #{modelo_forward.1} parent=1 // pred_region
      _
    $region37: #{modelo_forward.1} parent=1 // pred_fallthru
      _
    // Predicated region
    $region38: #{modelo_forward.1} parent=1 // pred_check
      _
    $region39: #{modelo_forward.1} parent=1 // pred_check_branch
      %42 = sbr.rel (0) target = $region41
    $region40: #{modelo_forward.1} parent=1 // pred_region
      _
    $region41: #{modelo_forward.1} parent=1 // pred_fallthru
      _
    // Predicated region
    $region42: #{modelo_forward.1} parent=1 // pred_check
      _
    $region43: #{modelo_forward.1} parent=1 // pred_check_branch
      %44 = sbr.rel (0) target = $region45
    $region44: #{modelo_forward.1} parent=1 // pred_region
      _
    $region45: #{modelo_forward.1} parent=1 // pred_fallthru
      _
    // Predicated region
    $region46: #{modelo_forward.1} parent=1 // pred_check
      _
    $region47: #{modelo_forward.1} parent=1 // pred_check_branch
      %46 = sbr.rel (0) target = $region49
    $region48: #{modelo_forward.1} parent=1 // pred_region
      _
    $region49: #{modelo_forward.1} parent=1 // pred_fallthru
      _
    // Predicated region
    $region50: #{modelo_forward.1} parent=1 // pred_check
      _
    $region51: #{modelo_forward.1} parent=1 // pred_check_branch
      %48 = sbr.rel (0) target = $region53
    $region52: #{modelo_forward.1} parent=1 // pred_region
      _
    $region53: #{modelo_forward.1} parent=1 // pred_fallthru
      _
    // Predicated region
    $region54: #{modelo_forward.1} parent=1 // pred_check
      _
    $region55: #{modelo_forward.1} parent=1 // pred_check_branch
      %50 = sbr.rel (0) target = $region57
    $region56: #{modelo_forward.1} parent=1 // pred_region
      _
    $region57: #{modelo_forward.1} parent=1 // pred_fallthru
      _
    // Predicated region
    $region58: #{modelo_forward.1} parent=1 // pred_check
      _
    $region59: #{modelo_forward.1} parent=1 // pred_check_branch
      %52 = sbr.rel (0) target = $region61
    $region60: #{modelo_forward.1} parent=1 // pred_region
      _
    $region61: #{modelo_forward.1} parent=1 // pred_fallthru
      _
    // Predicated region
    $region62: #{modelo_forward.1} parent=1 // pred_check
      _
    $region63: #{modelo_forward.1} parent=1 // pred_check_branch
      %54 = sbr.rel (0) target = $region65
    $region64: #{modelo_forward.1} parent=1 // pred_region
      _
    $region65: #{modelo_forward.1} parent=1 // pred_fallthru
      _
    // Predicated region
    $region66: #{modelo_forward.1} parent=1 // pred_check
      _
    $region67: #{modelo_forward.1} parent=1 // pred_check_branch
      %56 = sbr.rel (0) target = $region69
    $region68: #{modelo_forward.1} parent=1 // pred_region
      _
    $region69: #{modelo_forward.1} parent=1 // pred_fallthru
      _
    %v58 = vld [vmem:[%s0] sm:$0xff]
    %v59 = vld [vmem:[%s0 + $0x8] sm:$0xff]
    %v60 = vld [vmem:[%s1] sm:$0xff]
    %v61 = vld [vmem:[%s1 + $0x8] sm:$0xff]
    %v62 = vadd.f32 %v58, %v60
    %v63 = vadd.f32 %v59, %v61
    %v64 = vld [vmem:[%s2] sm:$0xff]
    %v65 = vld [vmem:[%s2 + $0x8] sm:$0xff]
    %v66 = vpack.c.bf16 %v63, %v62
    %v67 = vld [vmem:[%s3] sm:$0xf]
    %v68 = vld [vmem:[%s3 + $0x4] sm:$0xf]
    %v69 = vld [vmem:[%s3 + $0x8] sm:$0xf]
    %v70 = vld [vmem:[%s3 + $0xc] sm:$0xf]
    %v71 = vld [vmem:[%s4] sm:$0x1]
    %v73 = vperm.slane %v71, 0
    %v79 = vunpack.c.l.b16 %v67
    %v80 = vunpack.c.l.b16 %v68
    %v81 = vunpack.c.l.b16 %v69
    %v82 = vunpack.c.l.b16 %v70
    %v83 = vpack.c.b16 %v80, %v79
    %v84 = vpack.c.b16 %v82, %v81
    %vm87 = vcmask 261120
    %v89 = vsel %vm87, %v66, 0
    %91 = vmatpush.bf16.msra.mxu0 0
    %92 = vmatpush.bf16.msra.mxu0 0
    %93 = vmatpush.bf16.msra.mxu0 0
    %94 = vmatpush.bf16.msra.mxu0 0
    %95 = vmatpush.bf16.msra.mxu0 0
    %96 = vmatpush.bf16.msra.mxu0 0
    %97 = vmatpush.bf16.msra.mxu0 %v84
    %98 = vmatpush.bf16.msra.mxu0 %v83
    %99 = vmatmul.bf16.gmra.mxu0 %v89
    %v100 = vpop.f32.mrf.mxu0
    %v101 = vadd.f32 %v73, %v100
    %v102 = vpop.f32.mrf.mxu0
    %v103 = vadd.f32 %v73, %v102
    %104 = vdwg.mxu0
    %v105 = vld [vmem:[%s5] sm:$0xf]
    %v106 = vld [vmem:[%s5 + $0x4] sm:$0xf]
    %v107 = vld [vmem:[%s5 + $0x8] sm:$0xf]
    %v108 = vld [vmem:[%s5 + $0xc] sm:$0xf]
    %v109 = vpack.c.bf16 %v103, %v101
    %111 = vrot.lane.b32.xlu0 %v109, 96
    %v112 = vpop.permute.xlu0 %111
    %vm113 = vcmask 64512
    %v115 = vsel %vm113, %v109, 0
    %v118 = vsel %vm113, %v112, 0
    %120 = vmatpush.bf16.xpose.msra.mxu0 0
    %121 = vmatpush.bf16.xpose.msra.mxu0 0
    %122 = vmatpush.bf16.xpose.msra.mxu0 0
    %123 = vmatpush.bf16.xpose.msra.mxu0 0
    %124 = vmatpush.bf16.xpose.msra.mxu0 0
    %125 = vmatpush.bf16.xpose.msra.mxu0 0
    %126 = vmatpush.bf16.xpose.msra.mxu0 0
    %127 = vmatpush.bf16.xpose.msra.mxu0 %v118
    %128 = vmatmul.bf16.gmra.mxu0 %v115
    %v129 = vpop.f32.mrf.mxu0
    %v130 = vadd.f32 0.0, %v129
    %v131 = vpop.f32.mrf.mxu0
    %v132 = vadd.f32 0.0, %v131
    %133 = vdwg.mxu0
    %v134 = vmul.f32 %v130, 0.35355338
    %v135 = vmul.f32 %v132, 0.35355338
    %v136 = vadd.f32 %v134, %v64
    %v137 = vadd.f32 %v135, %v65
    %vm138 = vcmask 130048
    %v139 = vsel %vm138, %v136, -inf
    %140 = vmax.xlane.f32.xlu0 %v139
    %v141 = vpop.xlane.xlu0 %140
    %v142 = vsel %vm138, %v137, -inf
    %143 = vmax.xlane.f32.xlu0 %v142
    %v144 = vpop.xlane.xlu0 %143
    %v145 = vsub.f32 %v136, %v141
    %v146 = vsub.f32 %v137, %v144
    %v147 = vmul.f32 %v145, 1.442695
    %v148 = vpow.pop %v147
    %v149 = vmul.f32 %v146, 1.442695
    %v150 = vpow.pop %v149
    %v151 = vsel %vm138, %v148, 0.0
    %152 = vadd.xlane.f32.xlu0 %v151
    %v153 = vpop.xlane.xlu0 %152
    %v154 = vsel %vm138, %v150, 0.0
    %155 = vadd.xlane.f32.xlu0 %v154
    %v156 = vpop.xlane.xlu0 %155
    %v157 = vrcp.pop %v153
    %v158 = vrcp.pop %v156
    %v159 = vmul.f32 %v148, %v157
    %v160 = vmul.f32 %v150, %v158
    %v161 = vpack.c.bf16 %v160, %v159
    %162 = vrot.lane.b32.xlu0 %v109, 64
    %v163 = vpop.permute.xlu0 %162
    %v166 = vsel %vm138, %v161, 0
    %168 = vmatpush.bf16.msra.mxu0 0
    %169 = vmatpush.bf16.msra.mxu0 0
    %170 = vmatpush.bf16.msra.mxu0 0
    %171 = vmatpush.bf16.msra.mxu0 0
    %172 = vmatpush.bf16.msra.mxu0 0
    %173 = vmatpush.bf16.msra.mxu0 0
    %174 = vmatpush.bf16.msra.mxu0 0
    %175 = vmatpush.bf16.msra.mxu0 %v163
    %176 = vmatmul.bf16.gmra.mxu0 %v166
    %v177 = vpop.f32.mrf.mxu0
    %v178 = vadd.f32 0.0, %v177
    %v179 = vpop.f32.mrf.mxu0
    %v180 = vadd.f32 0.0, %v179
    %181 = vdwg.mxu0
    %v182 = vpack.c.bf16 %v180, %v178
    %183 = vrot.lane.b32.xlu0 %v109, 120
    %v184 = vpop.permute.xlu0 %183
    %185 = vrot.lane.b32.xlu0 %v109, 88
    %v186 = vpop.permute.xlu0 %185
    %v188 = vsel %vm113, %v184, 0
    %v191 = vsel %vm113, %v186, 0
    %193 = vmatpush.bf16.xpose.msra.mxu0 0
    %194 = vmatpush.bf16.xpose.msra.mxu0 0
    %195 = vmatpush.bf16.xpose.msra.mxu0 0
    %196 = vmatpush.bf16.xpose.msra.mxu0 0
    %197 = vmatpush.bf16.xpose.msra.mxu0 0
    %198 = vmatpush.bf16.xpose.msra.mxu0 0
    %199 = vmatpush.bf16.xpose.msra.mxu0 0
    %200 = vmatpush.bf16.xpose.msra.mxu0 %v191
    %201 = vmatmul.bf16.gmra.mxu0 %v188
    %v202 = vpop.f32.mrf.mxu0
    %v203 = vadd.f32 0.0, %v202
    %v204 = vpop.f32.mrf.mxu0
    %v205 = vadd.f32 0.0, %v204
    %206 = vdwg.mxu0
    %v207 = vmul.f32 %v203, 0.35355338
    %v208 = vmul.f32 %v205, 0.35355338
    %v209 = vadd.f32 %v207, %v64
    %v210 = vadd.f32 %v208, %v65
    %v211 = vsel %vm138, %v209, -inf
    %212 = vmax.xlane.f32.xlu0 %v211
    %v213 = vpop.xlane.xlu0 %212
    %v214 = vsel %vm138, %v210, -inf
    %215 = vmax.xlane.f32.xlu0 %v214
    %v216 = vpop.xlane.xlu0 %215
    %v217 = vsub.f32 %v209, %v213
    %v218 = vsub.f32 %v210, %v216
    %v219 = vmul.f32 %v217, 1.442695
    %v220 = vpow.pop %v219
    %v221 = vmul.f32 %v218, 1.442695
    %v222 = vpow.pop %v221
    %v223 = vsel %vm138, %v220, 0.0
    %224 = vadd.xlane.f32.xlu0 %v223
    %v225 = vpop.xlane.xlu0 %224
    %v226 = vsel %vm138, %v222, 0.0
    %227 = vadd.xlane.f32.xlu0 %v226
    %v228 = vpop.xlane.xlu0 %227
    %v229 = vrcp.pop %v225
    %v230 = vrcp.pop %v228
    %v231 = vmul.f32 %v220, %v229
    %v232 = vmul.f32 %v222, %v230
    %v233 = vpack.c.bf16 %v232, %v231
    %234 = vrot.lane.b32.xlu0 %v109, 56
    %v235 = vpop.permute.xlu0 %234
    %v238 = vsel %vm138, %v233, 0
    %240 = vmatpush.bf16.msra.mxu0 0
    %241 = vmatpush.bf16.msra.mxu0 0
    %242 = vmatpush.bf16.msra.mxu0 0
    %243 = vmatpush.bf16.msra.mxu0 0
    %244 = vmatpush.bf16.msra.mxu0 0
    %245 = vmatpush.bf16.msra.mxu0 0
    %246 = vmatpush.bf16.msra.mxu0 0
    %247 = vmatpush.bf16.msra.mxu0 %v235
    %248 = vmatmul.bf16.gmra.mxu0 %v238
    %v249 = vpop.f32.mrf.mxu0
    %v250 = vadd.f32 0.0, %v249
    %v251 = vpop.f32.mrf.mxu0
    %v252 = vadd.f32 0.0, %v251
    %253 = vdwg.mxu0
    %v254 = vpack.c.bf16 %v252, %v250
    %v256 = vsel %vm113, %v254, 0
    %vm258 = vcmask 1043456
    %v260 = vsel %vm258, %v106, 0
    %262 = vmatpush.bf16.msra.mxu0 0
    %263 = vmatpush.bf16.msra.mxu0 0
    %264 = vmatpush.bf16.msra.mxu0 0
    %265 = vmatpush.bf16.msra.mxu0 0
    %266 = vmatpush.bf16.msra.mxu0 0
    %267 = vmatpush.bf16.msra.mxu0 0
    %268 = vmatpush.bf16.msra.mxu0 0
    %269 = vmatpush.bf16.msra.mxu0 %v260
    %270 = vmatmul.bf16.gmra.mxu0 %v256
    %v271 = vpop.f32.mrf.mxu0
    %v272 = vadd.f32 0.0, %v271
    %v273 = vpop.f32.mrf.mxu0
    %v274 = vadd.f32 0.0, %v273
    %275 = vdwg.mxu0
    %v277 = vsel %vm113, %v182, 0
    %v280 = vsel %vm258, %v105, 0
    %282 = vmatpush.bf16.msra.mxu0 0
    %283 = vmatpush.bf16.msra.mxu0 0
    %284 = vmatpush.bf16.msra.mxu0 0
    %285 = vmatpush.bf16.msra.mxu0 0
    %286 = vmatpush.bf16.msra.mxu0 0
    %287 = vmatpush.bf16.msra.mxu0 0
    %288 = vmatpush.bf16.msra.mxu0 0
    %289 = vmatpush.bf16.msra.mxu0 %v280
    %290 = vmatmul.bf16.gmra.mxu0 %v277
    %v291 = vpop.f32.mrf.mxu0
    %v292 = vadd.f32 %v272, %v291
    %v293 = vpop.f32.mrf.mxu0
    %v294 = vadd.f32 %v274, %v293
    %295 = vdwg.mxu0
    %296 = vrot.lane.b32.xlu0 %v109, 112
    %v297 = vpop.permute.xlu0 %296
    %298 = vrot.lane.b32.xlu0 %v109, 80
    %v299 = vpop.permute.xlu0 %298
    %v301 = vsel %vm113, %v297, 0
    %v304 = vsel %vm113, %v299, 0
    %306 = vmatpush.bf16.xpose.msra.mxu0 0
    %307 = vmatpush.bf16.xpose.msra.mxu0 0
    %308 = vmatpush.bf16.xpose.msra.mxu0 0
    %309 = vmatpush.bf16.xpose.msra.mxu0 0
    %310 = vmatpush.bf16.xpose.msra.mxu0 0
    %311 = vmatpush.bf16.xpose.msra.mxu0 0
    %312 = vmatpush.bf16.xpose.msra.mxu0 0
    %313 = vmatpush.bf16.xpose.msra.mxu0 %v304
    %314 = vmatmul.bf16.gmra.mxu0 %v301
    %v315 = vpop.f32.mrf.mxu0
    %v316 = vadd.f32 0.0, %v315
    %v317 = vpop.f32.mrf.mxu0
    %v318 = vadd.f32 0.0, %v317
    %319 = vdwg.mxu0
    %v320 = vmul.f32 %v316, 0.35355338
    %v321 = vmul.f32 %v318, 0.35355338
    %v322 = vadd.f32 %v320, %v64
    %v323 = vadd.f32 %v321, %v65
    %v324 = vsel %vm138, %v322, -inf
    %325 = vmax.xlane.f32.xlu0 %v324
    %v326 = vpop.xlane.xlu0 %325
    %v327 = vsel %vm138, %v323, -inf
    %328 = vmax.xlane.f32.xlu0 %v327
    %v329 = vpop.xlane.xlu0 %328
    %v330 = vsub.f32 %v322, %v326
    %v331 = vsub.f32 %v323, %v329
    %v332 = vmul.f32 %v330, 1.442695
    %v333 = vpow.pop %v332
    %v334 = vmul.f32 %v331, 1.442695
    %v335 = vpow.pop %v334
    %v336 = vsel %vm138, %v333, 0.0
    %337 = vadd.xlane.f32.xlu0 %v336
    %v338 = vpop.xlane.xlu0 %337
    %v339 = vsel %vm138, %v335, 0.0
    %340 = vadd.xlane.f32.xlu0 %v339
    %v341 = vpop.xlane.xlu0 %340
    %v342 = vrcp.pop %v338
    %v343 = vrcp.pop %v341
    %v344 = vmul.f32 %v333, %v342
    %v345 = vmul.f32 %v335, %v343
    %v346 = vpack.c.bf16 %v345, %v344
    %347 = vrot.lane.b32.xlu0 %v109, 48
    %v348 = vpop.permute.xlu0 %347
    %v351 = vsel %vm138, %v346, 0
    %353 = vmatpush.bf16.msra.mxu0 0
    %354 = vmatpush.bf16.msra.mxu0 0
    %355 = vmatpush.bf16.msra.mxu0 0
    %356 = vmatpush.bf16.msra.mxu0 0
    %357 = vmatpush.bf16.msra.mxu0 0
    %358 = vmatpush.bf16.msra.mxu0 0
    %359 = vmatpush.bf16.msra.mxu0 0
    %360 = vmatpush.bf16.msra.mxu0 %v348
    %361 = vmatmul.bf16.gmra.mxu0 %v351
    %v362 = vpop.f32.mrf.mxu0
    %v363 = vadd.f32 0.0, %v362
    %v364 = vpop.f32.mrf.mxu0
    %v365 = vadd.f32 0.0, %v364
    %366 = vdwg.mxu0
    %v367 = vpack.c.bf16 %v365, %v363
    %v369 = vsel %vm113, %v367, 0
    %v372 = vsel %vm258, %v107, 0
    %374 = vmatpush.bf16.msra.mxu0 0
    %375 = vmatpush.bf16.msra.mxu0 0
    %376 = vmatpush.bf16.msra.mxu0 0
    %377 = vmatpush.bf16.msra.mxu0 0
    %378 = vmatpush.bf16.msra.mxu0 0
    %379 = vmatpush.bf16.msra.mxu0 0
    %380 = vmatpush.bf16.msra.mxu0 0
    %381 = vmatpush.bf16.msra.mxu0 %v372
    %382 = vmatmul.bf16.gmra.mxu0 %v369
    %v383 = vpop.f32.mrf.mxu0
    %v384 = vadd.f32 0.0, %v383
    %v385 = vpop.f32.mrf.mxu0
    %v386 = vadd.f32 0.0, %v385
    %387 = vdwg.mxu0
    %v388 = vadd.f32 %v292, %v384
    %v389 = vadd.f32 %v294, %v386
    %390 = vrot.lane.b32.xlu0 %v109, 104
    %v391 = vpop.permute.xlu0 %390
    %392 = vrot.lane.b32.xlu0 %v109, 72
    %v393 = vpop.permute.xlu0 %392
    %v395 = vsel %vm113, %v391, 0
    %v398 = vsel %vm113, %v393, 0
    %400 = vmatpush.bf16.xpose.msra.mxu0 0
    %401 = vmatpush.bf16.xpose.msra.mxu0 0
    %402 = vmatpush.bf16.xpose.msra.mxu0 0
    %403 = vmatpush.bf16.xpose.msra.mxu0 0
    %404 = vmatpush.bf16.xpose.msra.mxu0 0
    %405 = vmatpush.bf16.xpose.msra.mxu0 0
    %406 = vmatpush.bf16.xpose.msra.mxu0 0
    %407 = vmatpush.bf16.xpose.msra.mxu0 %v398
    %408 = vmatmul.bf16.gmra.mxu0 %v395
    %v409 = vpop.f32.mrf.mxu0
    %v410 = vadd.f32 0.0, %v409
    %v411 = vpop.f32.mrf.mxu0
    %v412 = vadd.f32 0.0, %v411
    %413 = vdwg.mxu0
    %v414 = vmul.f32 %v410, 0.35355338
    %v415 = vmul.f32 %v412, 0.35355338
    %v416 = vadd.f32 %v414, %v64
    %v417 = vadd.f32 %v415, %v65
    %v418 = vsel %vm138, %v416, -inf
    %419 = vmax.xlane.f32.xlu0 %v418
    %v420 = vpop.xlane.xlu0 %419
    %v421 = vsel %vm138, %v417, -inf
    %422 = vmax.xlane.f32.xlu0 %v421
    %v423 = vpop.xlane.xlu0 %422
    %v424 = vsub.f32 %v416, %v420
    %v425 = vsub.f32 %v417, %v423
    %v426 = vmul.f32 %v424, 1.442695
    %v427 = vpow.pop %v426
    %v428 = vmul.f32 %v425, 1.442695
    %v429 = vpow.pop %v428
    %v430 = vsel %vm138, %v427, 0.0
    %431 = vadd.xlane.f32.xlu0 %v430
    %v432 = vpop.xlane.xlu0 %431
    %v433 = vsel %vm138, %v429, 0.0
    %434 = vadd.xlane.f32.xlu0 %v433
    %v435 = vpop.xlane.xlu0 %434
    %v436 = vrcp.pop %v432
    %v437 = vrcp.pop %v435
    %v438 = vmul.f32 %v427, %v436
    %v439 = vmul.f32 %v429, %v437
    %v440 = vpack.c.bf16 %v439, %v438
    %441 = vrot.lane.b32.xlu0 %v109, 40
    %v442 = vpop.permute.xlu0 %441
    %v445 = vsel %vm138, %v440, 0
    %447 = vmatpush.bf16.msra.mxu0 0
    %448 = vmatpush.bf16.msra.mxu0 0
    %449 = vmatpush.bf16.msra.mxu0 0
    %450 = vmatpush.bf16.msra.mxu0 0
    %451 = vmatpush.bf16.msra.mxu0 0
    %452 = vmatpush.bf16.msra.mxu0 0
    %453 = vmatpush.bf16.msra.mxu0 0
    %454 = vmatpush.bf16.msra.mxu0 %v442
    %455 = vmatmul.bf16.gmra.mxu0 %v445
    %v456 = vpop.f32.mrf.mxu0
    %v457 = vadd.f32 0.0, %v456
    %v458 = vpop.f32.mrf.mxu0
    %v459 = vadd.f32 0.0, %v458
    %460 = vdwg.mxu0
    %v461 = vpack.c.bf16 %v459, %v457
    %v463 = vsel %vm113, %v461, 0
    %v466 = vsel %vm258, %v108, 0
    %468 = vmatpush.bf16.msra.mxu0 0
    %469 = vmatpush.bf16.msra.mxu0 0
    %470 = vmatpush.bf16.msra.mxu0 0
    %471 = vmatpush.bf16.msra.mxu0 0
    %472 = vmatpush.bf16.msra.mxu0 0
    %473 = vmatpush.bf16.msra.mxu0 0
    %474 = vmatpush.bf16.msra.mxu0 0
    %475 = vmatpush.bf16.msra.mxu0 %v466
    %476 = vmatmul.bf16.gmra.mxu0 %v463
    %v477 = vpop.f32.mrf.mxu0
    %v478 = vadd.f32 0.0, %v477
    %v479 = vpop.f32.mrf.mxu0
    %v480 = vadd.f32 0.0, %v479
    %481 = vdwg.mxu0
    %v482 = vadd.f32 %v388, %v478
    %v483 = vadd.f32 %v389, %v480
    %v484 = vld [vmem:[%s6] sm:$0x1]
    %v486 = vperm.slane %v484, 0
    %v488 = vadd.f32 %v482, %v486
    %v489 = vadd.f32 %v483, %v486
    %v490 = vadd.f32 %v62, %v488
    %v491 = vadd.f32 %v63, %v489
    %v492 = vsel %vm87, %v490, 0.0
    %493 = vadd.xlane.f32.xlu0 %v492
    %v494 = vpop.xlane.xlu0 %493
    %v495 = vsel %vm87, %v491, 0.0
    %496 = vadd.xlane.f32.xlu0 %v495
    %v497 = vpop.xlane.xlu0 %496
    %v498 = vrcp.pop 32.0
    %v499 = vmul.f32 32.0, %v498
    %v500 = vsub.f32 1.0, %v499
    %v501 = vmul.f32 %v498, %v500
    %v502 = vadd.f32 %v498, %v501
    %vm503 = vweird.f32 %v498
    %v504 = vsel %vm503, %v498, %v502
    %v505 = vmul.f32 %v494, %v504
    %v506 = vmul.f32 %v497, %v504
    %v507 = vsub.f32 %v490, %v505
    %v508 = vsub.f32 %v491, %v506
    %v509 = vmul.f32 %v507, %v507
    %v510 = vmul.f32 %v508, %v508
    %v511 = vsel %vm87, %v509, 0.0
    %512 = vadd.xlane.f32.xlu0 %v511
    %v513 = vpop.xlane.xlu0 %512
    %v514 = vsel %vm87, %v510, 0.0
    %515 = vadd.xlane.f32.xlu0 %v514
    %v516 = vpop.xlane.xlu0 %515
    %v517 = vmul.f32 %v513, %v504
    %v518 = vmul.f32 %v516, %v504
    %v519 = vadd.f32 %v517, 1e-05
    %v520 = vadd.f32 %v518, 1e-05
    %v521 = vrsqrt.pop %v519
    %v522 = vmul.f32 %v521, %v519
    %v523 = vmul.f32 %v522, %v521
    %v524 = vmul.f32 0.5, %v523
    %v525 = vsub.f32 1.5, %v524
    %v526 = vmul.f32 %v521, %v525
    %vm527 = vweird.f32 %v519
    %vm528 = vweird.f32 %v521
    %vm529 = vmor %vm527, %vm528
    %v530 = vsel %vm529, %v521, %v526
    %v531 = vrsqrt.pop %v520
    %v532 = vmul.f32 %v531, %v520
    %v533 = vmul.f32 %v532, %v531
    %v534 = vmul.f32 0.5, %v533
    %v535 = vsub.f32 1.5, %v534
    %v536 = vmul.f32 %v531, %v535
    %vm537 = vweird.f32 %v520
    %vm538 = vweird.f32 %v531
    %vm539 = vmor %vm537, %vm538
    %v540 = vsel %vm539, %v531, %v536
    %v541 = vmul.f32 %v507, %v530
    %v542 = vmul.f32 %v508, %v540
    %v543 = vld [vmem:[%s7] sm:$0x1]
    %v545 = vperm.slane %v543, 0
    %v547 = vmul.f32 %v541, %v545
    %v548 = vmul.f32 %v542, %v545
    %v549 = vld [vmem:[%s8] sm:$0x1]
    %v551 = vperm.slane %v549, 0
    %v553 = vadd.f32 %v547, %v551
    %v554 = vadd.f32 %v548, %v551
    %v555 = vpack.c.bf16 %v554, %v553
    %v556 = vld [vmem:[%s9] sm:$0xff]
    %v557 = vld [vmem:[%s9 + $0x8] sm:$0xff]
    %v558 = vld [vmem:[%s9 + $0x10] sm:$0xff]
    %v559 = vld [vmem:[%s9 + $0x18] sm:$0xff]
    %v560 = vld [vmem:[%s9 + $0x20] sm:$0xff]
    %v561 = vld [vmem:[%s9 + $0x28] sm:$0xff]
    %v562 = vld [vmem:[%s9 + $0x30] sm:$0xff]
    %v563 = vld [vmem:[%s9 + $0x38] sm:$0xff]
    %v564 = vld [vmem:[%s9 + $0x40] sm:$0xff]
    %v565 = vld [vmem:[%s9 + $0x48] sm:$0xff]
    %v566 = vld [vmem:[%s9 + $0x50] sm:$0xff]
    %v567 = vld [vmem:[%s9 + $0x58] sm:$0xff]
    %v568 = vld [vmem:[%s9 + $0x60] sm:$0xff]
    %v569 = vld [vmem:[%s9 + $0x68] sm:$0xff]
    %v570 = vld [vmem:[%s9 + $0x70] sm:$0xff]
    %v571 = vld [vmem:[%s9 + $0x78] sm:$0xff]
    %v572 = vld [vmem:[%s9 + $0x80] sm:$0xff]
    %v573 = vld [vmem:[%s9 + $0x88] sm:$0xff]
    %v574 = vld [vmem:[%s9 + $0x90] sm:$0xff]
    %v575 = vld [vmem:[%s9 + $0x98] sm:$0xff]
    %v576 = vld [vmem:[%s9 + $0xa0] sm:$0xff]
    %v577 = vld [vmem:[%s9 + $0xa8] sm:$0xff]
    %v578 = vld [vmem:[%s9 + $0xb0] sm:$0xff]
    %v579 = vld [vmem:[%s9 + $0xb8] sm:$0xff]
    %v580 = vld [vmem:[%s9 + $0xc0] sm:$0xff]
    %v581 = vld [vmem:[%s9 + $0xc8] sm:$0xff]
    %v582 = vld [vmem:[%s9 + $0xd0] sm:$0xff]
    %v583 = vld [vmem:[%s9 + $0xd8] sm:$0xff]
    %v584 = vld [vmem:[%s9 + $0xe0] sm:$0xff]
    %v585 = vld [vmem:[%s9 + $0xe8] sm:$0xff]
    %v586 = vld [vmem:[%s9 + $0xf0] sm:$0xff]
    %v587 = vld [vmem:[%s9 + $0xf8] sm:$0xff]
    %v588 = vld [vmem:[%s10] sm:$0xff]
    %v589 = vld [vmem:[%s10 + $0x8] sm:$0xff]
    %v592 = vperm.slane %v588, 0
    %v593 = vperm.slane %v588, 1
    %v594 = vperm.slane %v588, 2
    %v595 = vperm.slane %v588, 3
    %v596 = vperm.slane %v588, 4
    %v597 = vperm.slane %v588, 5
    %v598 = vperm.slane %v588, 6
    %v599 = vperm.slane %v588, 7
    %v600 = vperm.slane %v589, 0
    %v601 = vperm.slane %v589, 1
    %v602 = vperm.slane %v589, 2
    %v603 = vperm.slane %v589, 3
    %v604 = vperm.slane %v589, 4
    %v605 = vperm.slane %v589, 5
    %v606 = vperm.slane %v589, 6
    %v607 = vperm.slane %v589, 7
    %v656 = vunpack.c.l.b16 %v556
    %v657 = vunpack.c.h.b16 %v556
    %v658 = vunpack.c.l.b16 %v557
    %v659 = vunpack.c.h.b16 %v557
    %v660 = vunpack.c.l.b16 %v558
    %v661 = vunpack.c.h.b16 %v558
    %v662 = vunpack.c.l.b16 %v559
    %v663 = vunpack.c.h.b16 %v559
    %v664 = vunpack.c.l.b16 %v560
    %v665 = vunpack.c.h.b16 %v560
    %v666 = vunpack.c.l.b16 %v561
    %v667 = vunpack.c.h.b16 %v561
    %v668 = vunpack.c.l.b16 %v562
    %v669 = vunpack.c.h.b16 %v562
    %v670 = vunpack.c.l.b16 %v563
    %v671 = vunpack.c.h.b16 %v563
    %v672 = vunpack.c.l.b16 %v564
    %v673 = vunpack.c.h.b16 %v564
    %v674 = vunpack.c.l.b16 %v565
    %v675 = vunpack.c.h.b16 %v565
    %v676 = vunpack.c.l.b16 %v566
    %v677 = vunpack.c.h.b16 %v566
    %v678 = vunpack.c.l.b16 %v567
    %v679 = vunpack.c.h.b16 %v567
    %v680 = vunpack.c.l.b16 %v568
    %v681 = vunpack.c.h.b16 %v568
    %v682 = vunpack.c.l.b16 %v569
    %v683 = vunpack.c.h.b16 %v569
    %v684 = vunpack.c.l.b16 %v570
    %v685 = vunpack.c.h.b16 %v570
    %v686 = vunpack.c.l.b16 %v571
    %v687 = vunpack.c.h.b16 %v571
    %v688 = vunpack.c.l.b16 %v572
    %v689 = vunpack.c.h.b16 %v572
    %v690 = vunpack.c.l.b16 %v573
    %v691 = vunpack.c.h.b16 %v573
    %v692 = vunpack.c.l.b16 %v574
    %v693 = vunpack.c.h.b16 %v574
    %v694 = vunpack.c.l.b16 %v575
    %v695 = vunpack.c.h.b16 %v575
    %v696 = vunpack.c.l.b16 %v576
    %v697 = vunpack.c.h.b16 %v576
    %v698 = vunpack.c.l.b16 %v577
    %v699 = vunpack.c.h.b16 %v577
    %v700 = vunpack.c.l.b16 %v578
    %v701 = vunpack.c.h.b16 %v578
    %v702 = vunpack.c.l.b16 %v579
    %v703 = vunpack.c.h.b16 %v579
    %v704 = vunpack.c.l.b16 %v580
    %v705 = vunpack.c.h.b16 %v580
    %v706 = vunpack.c.l.b16 %v581
    %v707 = vunpack.c.h.b16 %v581
    %v708 = vunpack.c.l.b16 %v582
    %v709 = vunpack.c.h.b16 %v582
    %v710 = vunpack.c.l.b16 %v583
    %v711 = vunpack.c.h.b16 %v583
    %v712 = vunpack.c.l.b16 %v584
    %v713 = vunpack.c.h.b16 %v584
    %v714 = vunpack.c.l.b16 %v585
    %v715 = vunpack.c.h.b16 %v585
    %v716 = vunpack.c.l.b16 %v586
    %v717 = vunpack.c.h.b16 %v586
    %v718 = vunpack.c.l.b16 %v587
    %v719 = vunpack.c.h.b16 %v587
    %v720 = vpack.c.b16 %v672, %v656
    %v721 = vpack.c.b16 %v673, %v657
    %v722 = vpack.c.b16 %v674, %v658
    %v723 = vpack.c.b16 %v675, %v659
    %v724 = vpack.c.b16 %v676, %v660
    %v725 = vpack.c.b16 %v677, %v661
    %v726 = vpack.c.b16 %v678, %v662
    %v727 = vpack.c.b16 %v679, %v663
    %v728 = vpack.c.b16 %v680, %v664
    %v729 = vpack.c.b16 %v681, %v665
    %v730 = vpack.c.b16 %v682, %v666
    %v731 = vpack.c.b16 %v683, %v667
    %v732 = vpack.c.b16 %v684, %v668
    %v733 = vpack.c.b16 %v685, %v669
    %v734 = vpack.c.b16 %v686, %v670
    %v735 = vpack.c.b16 %v687, %v671
    %v736 = vpack.c.b16 %v704, %v688
    %v737 = vpack.c.b16 %v705, %v689
    %v738 = vpack.c.b16 %v706, %v690
    %v739 = vpack.c.b16 %v707, %v691
    %v740 = vpack.c.b16 %v708, %v692
    %v741 = vpack.c.b16 %v709, %v693
    %v742 = vpack.c.b16 %v710, %v694
    %v743 = vpack.c.b16 %v711, %v695
    %v744 = vpack.c.b16 %v712, %v696
    %v745 = vpack.c.b16 %v713, %v697
    %v746 = vpack.c.b16 %v714, %v698
    %v747 = vpack.c.b16 %v715, %v699
    %v748 = vpack.c.b16 %v716, %v700
    %v749 = vpack.c.b16 %v717, %v701
    %v750 = vpack.c.b16 %v718, %v702
    %v751 = vpack.c.b16 %v719, %v703
    %v785 = vsel %vm87, %v555, 0
    %787 = vmatpush.bf16.msra.mxu0 0
    %788 = vmatpush.bf16.msra.mxu0 0
    %789 = vmatpush.bf16.msra.mxu0 0
    %790 = vmatpush.bf16.msra.mxu0 0
    %791 = vmatpush.bf16.msra.mxu0 0
    %792 = vmatpush.bf16.msra.mxu0 0
    %793 = vmatpush.bf16.msra.mxu0 %v736
    %794 = vmatpush.bf16.msra.mxu0 %v720
    %795 = vmatmul.bf16.gmra.mxu0 %v785
    %v796 = vpop.f32.mrf.mxu0
    %v797 = vadd.f32 %v592, %v796
    %v798 = vpop.f32.mrf.mxu0
    %v799 = vadd.f32 %v592, %v798
    %800 = vdwg.mxu0
    %801 = vmatpush.bf16.msra.mxu0 0
    %802 = vmatpush.bf16.msra.mxu0 0
    %803 = vmatpush.bf16.msra.mxu0 0
    %804 = vmatpush.bf16.msra.mxu0 0
    %805 = vmatpush.bf16.msra.mxu0 0
    %806 = vmatpush.bf16.msra.mxu0 0
    %807 = vmatpush.bf16.msra.mxu0 %v737
    %808 = vmatpush.bf16.msra.mxu0 %v721
    %809 = vmatmul.bf16.gmra.mxu0 %v785
    %v810 = vpop.f32.mrf.mxu0
    %v811 = vadd.f32 %v593, %v810
    %v812 = vpop.f32.mrf.mxu0
    %v813 = vadd.f32 %v593, %v812
    %814 = vdwg.mxu0
    %815 = vmatpush.bf16.msra.mxu0 0
    %816 = vmatpush.bf16.msra.mxu0 0
    %817 = vmatpush.bf16.msra.mxu0 0
    %818 = vmatpush.bf16.msra.mxu0 0
    %819 = vmatpush.bf16.msra.mxu0 0
    %820 = vmatpush.bf16.msra.mxu0 0
    %821 = vmatpush.bf16.msra.mxu0 %v738
    %822 = vmatpush.bf16.msra.mxu0 %v722
    %823 = vmatmul.bf16.gmra.mxu0 %v785
    %v824 = vpop.f32.mrf.mxu0
    %v825 = vadd.f32 %v594, %v824
    %v826 = vpop.f32.mrf.mxu0
    %v827 = vadd.f32 %v594, %v826
    %828 = vdwg.mxu0
    %829 = vmatpush.bf16.msra.mxu0 0
    %830 = vmatpush.bf16.msra.mxu0 0
    %831 = vmatpush.bf16.msra.mxu0 0
    %832 = vmatpush.bf16.msra.mxu0 0
    %833 = vmatpush.bf16.msra.mxu0 0
    %834 = vmatpush.bf16.msra.mxu0 0
    %835 = vmatpush.bf16.msra.mxu0 %v739
    %836 = vmatpush.bf16.msra.mxu0 %v723
    %837 = vmatmul.bf16.gmra.mxu0 %v785
    %v838 = vpop.f32.mrf.mxu0
    %v839 = vadd.f32 %v595, %v838
    %v840 = vpop.f32.mrf.mxu0
    %v841 = vadd.f32 %v595, %v840
    %842 = vdwg.mxu0
    %843 = vmatpush.bf16.msra.mxu0 0
    %844 = vmatpush.bf16.msra.mxu0 0
    %845 = vmatpush.bf16.msra.mxu0 0
    %846 = vmatpush.bf16.msra.mxu0 0
    %847 = vmatpush.bf16.msra.mxu0 0
    %848 = vmatpush.bf16.msra.mxu0 0
    %849 = vmatpush.bf16.msra.mxu0 %v740
    %850 = vmatpush.bf16.msra.mxu0 %v724
    %851 = vmatmul.bf16.gmra.mxu0 %v785
    %v852 = vpop.f32.mrf.mxu0
    %v853 = vadd.f32 %v596, %v852
    %v854 = vpop.f32.mrf.mxu0
    %v855 = vadd.f32 %v596, %v854
    %856 = vdwg.mxu0
    %857 = vmatpush.bf16.msra.mxu0 0
    %858 = vmatpush.bf16.msra.mxu0 0
    %859 = vmatpush.bf16.msra.mxu0 0
    %860 = vmatpush.bf16.msra.mxu0 0
    %861 = vmatpush.bf16.msra.mxu0 0
    %862 = vmatpush.bf16.msra.mxu0 0
    %863 = vmatpush.bf16.msra.mxu0 %v741
    %864 = vmatpush.bf16.msra.mxu0 %v725
    %865 = vmatmul.bf16.gmra.mxu0 %v785
    %v866 = vpop.f32.mrf.mxu0
    %v867 = vadd.f32 %v597, %v866
    %v868 = vpop.f32.mrf.mxu0
    %v869 = vadd.f32 %v597, %v868
    %870 = vdwg.mxu0
    %871 = vmatpush.bf16.msra.mxu0 0
    %872 = vmatpush.bf16.msra.mxu0 0
    %873 = vmatpush.bf16.msra.mxu0 0
    %874 = vmatpush.bf16.msra.mxu0 0
    %875 = vmatpush.bf16.msra.mxu0 0
    %876 = vmatpush.bf16.msra.mxu0 0
    %877 = vmatpush.bf16.msra.mxu0 %v742
    %878 = vmatpush.bf16.msra.mxu0 %v726
    %879 = vmatmul.bf16.gmra.mxu0 %v785
    %v880 = vpop.f32.mrf.mxu0
    %v881 = vadd.f32 %v598, %v880
    %v882 = vpop.f32.mrf.mxu0
    %v883 = vadd.f32 %v598, %v882
    %884 = vdwg.mxu0
    %885 = vmatpush.bf16.msra.mxu0 0
    %886 = vmatpush.bf16.msra.mxu0 0
    %887 = vmatpush.bf16.msra.mxu0 0
    %888 = vmatpush.bf16.msra.mxu0 0
    %889 = vmatpush.bf16.msra.mxu0 0
    %890 = vmatpush.bf16.msra.mxu0 0
    %891 = vmatpush.bf16.msra.mxu0 %v743
    %892 = vmatpush.bf16.msra.mxu0 %v727
    %893 = vmatmul.bf16.gmra.mxu0 %v785
    %v894 = vpop.f32.mrf.mxu0
    %v895 = vadd.f32 %v599, %v894
    %v896 = vpop.f32.mrf.mxu0
    %v897 = vadd.f32 %v599, %v896
    %898 = vdwg.mxu0
    %899 = vmatpush.bf16.msra.mxu0 0
    %900 = vmatpush.bf16.msra.mxu0 0
    %901 = vmatpush.bf16.msra.mxu0 0
    %902 = vmatpush.bf16.msra.mxu0 0
    %903 = vmatpush.bf16.msra.mxu0 0
    %904 = vmatpush.bf16.msra.mxu0 0
    %905 = vmatpush.bf16.msra.mxu0 %v744
    %906 = vmatpush.bf16.msra.mxu0 %v728
    %907 = vmatmul.bf16.gmra.mxu0 %v785
    %v908 = vpop.f32.mrf.mxu0
    %v909 = vadd.f32 %v600, %v908
    %v910 = vpop.f32.mrf.mxu0
    %v911 = vadd.f32 %v600, %v910
    %912 = vdwg.mxu0
    %913 = vmatpush.bf16.msra.mxu0 0
    %914 = vmatpush.bf16.msra.mxu0 0
    %915 = vmatpush.bf16.msra.mxu0 0
    %916 = vmatpush.bf16.msra.mxu0 0
    %917 = vmatpush.bf16.msra.mxu0 0
    %918 = vmatpush.bf16.msra.mxu0 0
    %919 = vmatpush.bf16.msra.mxu0 %v745
    %920 = vmatpush.bf16.msra.mxu0 %v729
    %921 = vmatmul.bf16.gmra.mxu0 %v785
    %v922 = vpop.f32.mrf.mxu0
    %v923 = vadd.f32 %v601, %v922
    %v924 = vpop.f32.mrf.mxu0
    %v925 = vadd.f32 %v601, %v924
    %926 = vdwg.mxu0
    %927 = vmatpush.bf16.msra.mxu0 0
    %928 = vmatpush.bf16.msra.mxu0 0
    %929 = vmatpush.bf16.msra.mxu0 0
    %930 = vmatpush.bf16.msra.mxu0 0
    %931 = vmatpush.bf16.msra.mxu0 0
    %932 = vmatpush.bf16.msra.mxu0 0
    %933 = vmatpush.bf16.msra.mxu0 %v746
    %934 = vmatpush.bf16.msra.mxu0 %v730
    %935 = vmatmul.bf16.gmra.mxu0 %v785
    %v936 = vpop.f32.mrf.mxu0
    %v937 = vadd.f32 %v602, %v936
    %v938 = vpop.f32.mrf.mxu0
    %v939 = vadd.f32 %v602, %v938
    %940 = vdwg.mxu0
    %941 = vmatpush.bf16.msra.mxu0 0
    %942 = vmatpush.bf16.msra.mxu0 0
    %943 = vmatpush.bf16.msra.mxu0 0
    %944 = vmatpush.bf16.msra.mxu0 0
    %945 = vmatpush.bf16.msra.mxu0 0
    %946 = vmatpush.bf16.msra.mxu0 0
    %947 = vmatpush.bf16.msra.mxu0 %v747
    %948 = vmatpush.bf16.msra.mxu0 %v731
    %949 = vmatmul.bf16.gmra.mxu0 %v785
    %v950 = vpop.f32.mrf.mxu0
    %v951 = vadd.f32 %v603, %v950
    %v952 = vpop.f32.mrf.mxu0
    %v953 = vadd.f32 %v603, %v952
    %954 = vdwg.mxu0
    %955 = vmatpush.bf16.msra.mxu0 0
    %956 = vmatpush.bf16.msra.mxu0 0
    %957 = vmatpush.bf16.msra.mxu0 0
    %958 = vmatpush.bf16.msra.mxu0 0
    %959 = vmatpush.bf16.msra.mxu0 0
    %960 = vmatpush.bf16.msra.mxu0 0
    %961 = vmatpush.bf16.msra.mxu0 %v748
    %962 = vmatpush.bf16.msra.mxu0 %v732
    %963 = vmatmul.bf16.gmra.mxu0 %v785
    %v964 = vpop.f32.mrf.mxu0
    %v965 = vadd.f32 %v604, %v964
    %v966 = vpop.f32.mrf.mxu0
    %v967 = vadd.f32 %v604, %v966
    %968 = vdwg.mxu0
    %969 = vmatpush.bf16.msra.mxu0 0
    %970 = vmatpush.bf16.msra.mxu0 0
    %971 = vmatpush.bf16.msra.mxu0 0
    %972 = vmatpush.bf16.msra.mxu0 0
    %973 = vmatpush.bf16.msra.mxu0 0
    %974 = vmatpush.bf16.msra.mxu0 0
    %975 = vmatpush.bf16.msra.mxu0 %v749
    %976 = vmatpush.bf16.msra.mxu0 %v733
    %977 = vmatmul.bf16.gmra.mxu0 %v785
    %v978 = vpop.f32.mrf.mxu0
    %v979 = vadd.f32 %v605, %v978
    %v980 = vpop.f32.mrf.mxu0
    %v981 = vadd.f32 %v605, %v980
    %982 = vdwg.mxu0
    %983 = vmatpush.bf16.msra.mxu0 0
    %984 = vmatpush.bf16.msra.mxu0 0
    %985 = vmatpush.bf16.msra.mxu0 0
    %986 = vmatpush.bf16.msra.mxu0 0
    %987 = vmatpush.bf16.msra.mxu0 0
    %988 = vmatpush.bf16.msra.mxu0 0
    %989 = vmatpush.bf16.msra.mxu0 %v750
    %990 = vmatpush.bf16.msra.mxu0 %v734
    %991 = vmatmul.bf16.gmra.mxu0 %v785
    %v992 = vpop.f32.mrf.mxu0
    %v993 = vadd.f32 %v606, %v992
    %v994 = vpop.f32.mrf.mxu0
    %v995 = vadd.f32 %v606, %v994
    %996 = vdwg.mxu0
    %997 = vmatpush.bf16.msra.mxu0 0
    %998 = vmatpush.bf16.msra.mxu0 0
    %999 = vmatpush.bf16.msra.mxu0 0
    %1000 = vmatpush.bf16.msra.mxu0 0
    %1001 = vmatpush.bf16.msra.mxu0 0
    %1002 = vmatpush.bf16.msra.mxu0 0
    %1003 = vmatpush.bf16.msra.mxu0 %v751
    %1004 = vmatpush.bf16.msra.mxu0 %v735
    %1005 = vmatmul.bf16.gmra.mxu0 %v785
    %v1006 = vpop.f32.mrf.mxu0
    %v1007 = vadd.f32 %v607, %v1006
    %v1008 = vpop.f32.mrf.mxu0
    %v1009 = vadd.f32 %v607, %v1008
    %1010 = vdwg.mxu0
    %v1011 = vmax.f32 %v797, 0.0
    %v1012 = vmax.f32 %v811, 0.0
    %v1013 = vmax.f32 %v825, 0.0
    %v1014 = vmax.f32 %v839, 0.0
    %v1015 = vmax.f32 %v853, 0.0
    %v1016 = vmax.f32 %v867, 0.0
    %v1017 = vmax.f32 %v881, 0.0
    %v1018 = vmax.f32 %v895, 0.0
    %v1019 = vmax.f32 %v909, 0.0
    %v1020 = vmax.f32 %v923, 0.0
    %v1021 = vmax.f32 %v937, 0.0
    %v1022 = vmax.f32 %v951, 0.0
    %v1023 = vmax.f32 %v965, 0.0
    %v1024 = vmax.f32 %v979, 0.0
    %v1025 = vmax.f32 %v993, 0.0
    %v1026 = vmax.f32 %v1007, 0.0
    %v1027 = vmax.f32 %v799, 0.0
    %v1028 = vmax.f32 %v813, 0.0
    %v1029 = vmax.f32 %v827, 0.0
    %v1030 = vmax.f32 %v841, 0.0
    %v1031 = vmax.f32 %v855, 0.0
    %v1032 = vmax.f32 %v869, 0.0
    %v1033 = vmax.f32 %v883, 0.0
    %v1034 = vmax.f32 %v897, 0.0
    %v1035 = vmax.f32 %v911, 0.0
    %v1036 = vmax.f32 %v925, 0.0
    %v1037 = vmax.f32 %v939, 0.0
    %v1038 = vmax.f32 %v953, 0.0
    %v1039 = vmax.f32 %v967, 0.0
    %v1040 = vmax.f32 %v981, 0.0
    %v1041 = vmax.f32 %v995, 0.0
    %v1042 = vmax.f32 %v1009, 0.0
    %v1043 = vpack.c.bf16 %v1027, %v1011
    %v1044 = vpack.c.bf16 %v1028, %v1012
    %v1045 = vpack.c.bf16 %v1029, %v1013
    %v1046 = vpack.c.bf16 %v1030, %v1014
    %v1047 = vpack.c.bf16 %v1031, %v1015
    %v1048 = vpack.c.bf16 %v1032, %v1016
    %v1049 = vpack.c.bf16 %v1033, %v1017
    %v1050 = vpack.c.bf16 %v1034, %v1018
    %v1051 = vpack.c.bf16 %v1035, %v1019
    %v1052 = vpack.c.bf16 %v1036, %v1020
    %v1053 = vpack.c.bf16 %v1037, %v1021
    %v1054 = vpack.c.bf16 %v1038, %v1022
    %v1055 = vpack.c.bf16 %v1039, %v1023
    %v1056 = vpack.c.bf16 %v1040, %v1024
    %v1057 = vpack.c.bf16 %v1041, %v1025
    %v1058 = vpack.c.bf16 %v1042, %v1026
    %v1059 = vld [vmem:[%s11] sm:$0xf]
    %v1060 = vld [vmem:[%s11 + $0x4] sm:$0xf]
    %v1061 = vld [vmem:[%s11 + $0x8] sm:$0xf]
    %v1062 = vld [vmem:[%s11 + $0xc] sm:$0xf]
    %v1063 = vld [vmem:[%s11 + $0x10] sm:$0xf]
    %v1064 = vld [vmem:[%s11 + $0x14] sm:$0xf]
    %v1065 = vld [vmem:[%s11 + $0x18] sm:$0xf]
    %v1066 = vld [vmem:[%s11 + $0x1c] sm:$0xf]
    %v1067 = vld [vmem:[%s11 + $0x20] sm:$0xf]
    %v1068 = vld [vmem:[%s11 + $0x24] sm:$0xf]
    %v1069 = vld [vmem:[%s11 + $0x28] sm:$0xf]
    %v1070 = vld [vmem:[%s11 + $0x2c] sm:$0xf]
    %v1071 = vld [vmem:[%s11 + $0x30] sm:$0xf]
    %v1072 = vld [vmem:[%s11 + $0x34] sm:$0xf]
    %v1073 = vld [vmem:[%s11 + $0x38] sm:$0xf]
    %v1074 = vld [vmem:[%s11 + $0x3c] sm:$0xf]
    %v1075 = vld [vmem:[%s11 + $0x40] sm:$0xf]
    %v1076 = vld [vmem:[%s11 + $0x44] sm:$0xf]
    %v1077 = vld [vmem:[%s11 + $0x48] sm:$0xf]
    %v1078 = vld [vmem:[%s11 + $0x4c] sm:$0xf]
    %v1079 = vld [vmem:[%s11 + $0x50] sm:$0xf]
    %v1080 = vld [vmem:[%s11 + $0x54] sm:$0xf]
    %v1081 = vld [vmem:[%s11 + $0x58] sm:$0xf]
    %v1082 = vld [vmem:[%s11 + $0x5c] sm:$0xf]
    %v1083 = vld [vmem:[%s11 + $0x60] sm:$0xf]
    %v1084 = vld [vmem:[%s11 + $0x64] sm:$0xf]
    %v1085 = vld [vmem:[%s11 + $0x68] sm:$0xf]
    %v1086 = vld [vmem:[%s11 + $0x6c] sm:$0xf]
    %v1087 = vld [vmem:[%s11 + $0x70] sm:$0xf]
    %v1088 = vld [vmem:[%s11 + $0x74] sm:$0xf]
    %v1089 = vld [vmem:[%s11 + $0x78] sm:$0xf]
    %v1090 = vld [vmem:[%s11 + $0x7c] sm:$0xf]
    %v1091 = vld [vmem:[%s11 + $0x80] sm:$0xf]
    %v1092 = vld [vmem:[%s11 + $0x84] sm:$0xf]
    %v1093 = vld [vmem:[%s11 + $0x88] sm:$0xf]
    %v1094 = vld [vmem:[%s11 + $0x8c] sm:$0xf]
    %v1095 = vld [vmem:[%s11 + $0x90] sm:$0xf]
    %v1096 = vld [vmem:[%s11 + $0x94] sm:$0xf]
    %v1097 = vld [vmem:[%s11 + $0x98] sm:$0xf]
    %v1098 = vld [vmem:[%s11 + $0x9c] sm:$0xf]
    %v1099 = vld [vmem:[%s11 + $0xa0] sm:$0xf]
    %v1100 = vld [vmem:[%s11 + $0xa4] sm:$0xf]
    %v1101 = vld [vmem:[%s11 + $0xa8] sm:$0xf]
    %v1102 = vld [vmem:[%s11 + $0xac] sm:$0xf]
    %v1103 = vld [vmem:[%s11 + $0xb0] sm:$0xf]
    %v1104 = vld [vmem:[%s11 + $0xb4] sm:$0xf]
    %v1105 = vld [vmem:[%s11 + $0xb8] sm:$0xf]
    %v1106 = vld [vmem:[%s11 + $0xbc] sm:$0xf]
    %v1107 = vld [vmem:[%s11 + $0xc0] sm:$0xf]
    %v1108 = vld [vmem:[%s11 + $0xc4] sm:$0xf]
    %v1109 = vld [vmem:[%s11 + $0xc8] sm:$0xf]
    %v1110 = vld [vmem:[%s11 + $0xcc] sm:$0xf]
    %v1111 = vld [vmem:[%s11 + $0xd0] sm:$0xf]
    %v1112 = vld [vmem:[%s11 + $0xd4] sm:$0xf]
    %v1113 = vld [vmem:[%s11 + $0xd8] sm:$0xf]
    %v1114 = vld [vmem:[%s11 + $0xdc] sm:$0xf]
    %v1115 = vld [vmem:[%s11 + $0xe0] sm:$0xf]
    %v1116 = vld [vmem:[%s11 + $0xe4] sm:$0xf]
    %v1117 = vld [vmem:[%s11 + $0xe8] sm:$0xf]
    %v1118 = vld [vmem:[%s11 + $0xec] sm:$0xf]
    %v1119 = vld [vmem:[%s11 + $0xf0] sm:$0xf]
    %v1120 = vld [vmem:[%s11 + $0xf4] sm:$0xf]
    %v1121 = vld [vmem:[%s11 + $0xf8] sm:$0xf]
    %v1122 = vld [vmem:[%s11 + $0xfc] sm:$0xf]
    %v1123 = vld [vmem:[%s11 + $0x100] sm:$0xf]
    %v1124 = vld [vmem:[%s11 + $0x104] sm:$0xf]
    %v1125 = vld [vmem:[%s11 + $0x108] sm:$0xf]
    %v1126 = vld [vmem:[%s11 + $0x10c] sm:$0xf]
    %v1127 = vld [vmem:[%s11 + $0x110] sm:$0xf]
    %v1128 = vld [vmem:[%s11 + $0x114] sm:$0xf]
    %v1129 = vld [vmem:[%s11 + $0x118] sm:$0xf]
    %v1130 = vld [vmem:[%s11 + $0x11c] sm:$0xf]
    %v1131 = vld [vmem:[%s11 + $0x120] sm:$0xf]
    %v1132 = vld [vmem:[%s11 + $0x124] sm:$0xf]
    %v1133 = vld [vmem:[%s11 + $0x128] sm:$0xf]
    %v1134 = vld [vmem:[%s11 + $0x12c] sm:$0xf]
    %v1135 = vld [vmem:[%s11 + $0x130] sm:$0xf]
    %v1136 = vld [vmem:[%s11 + $0x134] sm:$0xf]
    %v1137 = vld [vmem:[%s11 + $0x138] sm:$0xf]
    %v1138 = vld [vmem:[%s11 + $0x13c] sm:$0xf]
    %v1139 = vld [vmem:[%s11 + $0x140] sm:$0xf]
    %v1140 = vld [vmem:[%s11 + $0x144] sm:$0xf]
    %v1141 = vld [vmem:[%s11 + $0x148] sm:$0xf]
    %v1142 = vld [vmem:[%s11 + $0x14c] sm:$0xf]
    %v1143 = vld [vmem:[%s11 + $0x150] sm:$0xf]
    %v1144 = vld [vmem:[%s11 + $0x154] sm:$0xf]
    %v1145 = vld [vmem:[%s11 + $0x158] sm:$0xf]
    %v1146 = vld [vmem:[%s11 + $0x15c] sm:$0xf]
    %v1147 = vld [vmem:[%s11 + $0x160] sm:$0xf]
    %v1148 = vld [vmem:[%s11 + $0x164] sm:$0xf]
    %v1149 = vld [vmem:[%s11 + $0x168] sm:$0xf]
    %v1150 = vld [vmem:[%s11 + $0x16c] sm:$0xf]
    %v1151 = vld [vmem:[%s11 + $0x170] sm:$0xf]
    %v1152 = vld [vmem:[%s11 + $0x174] sm:$0xf]
    %v1153 = vld [vmem:[%s11 + $0x178] sm:$0xf]
    %v1154 = vld [vmem:[%s11 + $0x17c] sm:$0xf]
    %v1155 = vld [vmem:[%s11 + $0x180] sm:$0xf]
    %v1156 = vld [vmem:[%s11 + $0x184] sm:$0xf]
    %v1157 = vld [vmem:[%s11 + $0x188] sm:$0xf]
    %v1158 = vld [vmem:[%s11 + $0x18c] sm:$0xf]
    %v1159 = vld [vmem:[%s11 + $0x190] sm:$0xf]
    %v1160 = vld [vmem:[%s11 + $0x194] sm:$0xf]
    %v1161 = vld [vmem:[%s11 + $0x198] sm:$0xf]
    %v1162 = vld [vmem:[%s11 + $0x19c] sm:$0xf]
    %v1163 = vld [vmem:[%s11 + $0x1a0] sm:$0xf]
    %v1164 = vld [vmem:[%s11 + $0x1a4] sm:$0xf]
    %v1165 = vld [vmem:[%s11 + $0x1a8] sm:$0xf]
    %v1166 = vld [vmem:[%s11 + $0x1ac] sm:$0xf]
    %v1167 = vld [vmem:[%s11 + $0x1b0] sm:$0xf]
    %v1168 = vld [vmem:[%s11 + $0x1b4] sm:$0xf]
    %v1169 = vld [vmem:[%s11 + $0x1b8] sm:$0xf]
    %v1170 = vld [vmem:[%s11 + $0x1bc] sm:$0xf]
    %v1171 = vld [vmem:[%s11 + $0x1c0] sm:$0xf]
    %v1172 = vld [vmem:[%s11 + $0x1c4] sm:$0xf]
    %v1173 = vld [vmem:[%s11 + $0x1c8] sm:$0xf]
    %v1174 = vld [vmem:[%s11 + $0x1cc] sm:$0xf]
    %v1175 = vld [vmem:[%s11 + $0x1d0] sm:$0xf]
    %v1176 = vld [vmem:[%s11 + $0x1d4] sm:$0xf]
    %v1177 = vld [vmem:[%s11 + $0x1d8] sm:$0xf]
    %v1178 = vld [vmem:[%s11 + $0x1dc] sm:$0xf]
    %v1179 = vld [vmem:[%s11 + $0x1e0] sm:$0xf]
    %v1180 = vld [vmem:[%s11 + $0x1e4] sm:$0xf]
    %v1181 = vld [vmem:[%s11 + $0x1e8] sm:$0xf]
    %v1182 = vld [vmem:[%s11 + $0x1ec] sm:$0xf]
    %v1183 = vld [vmem:[%s11 + $0x1f0] sm:$0xf]
    %v1184 = vld [vmem:[%s11 + $0x1f4] sm:$0xf]
    %v1185 = vld [vmem:[%s11 + $0x1f8] sm:$0xf]
    %v1186 = vld [vmem:[%s11 + $0x1fc] sm:$0xf]
    %v1187 = vld [vmem:[%s11 + $0x200] sm:$0xf]
    %v1188 = vld [vmem:[%s11 + $0x204] sm:$0xf]
    %v1189 = vld [vmem:[%s11 + $0x208] sm:$0xf]
    %v1190 = vld [vmem:[%s11 + $0x20c] sm:$0xf]
    %v1191 = vld [vmem:[%s11 + $0x210] sm:$0xf]
    %v1192 = vld [vmem:[%s11 + $0x214] sm:$0xf]
    %v1193 = vld [vmem:[%s11 + $0x218] sm:$0xf]
    %v1194 = vld [vmem:[%s11 + $0x21c] sm:$0xf]
    %v1195 = vld [vmem:[%s11 + $0x220] sm:$0xf]
    %v1196 = vld [vmem:[%s11 + $0x224] sm:$0xf]
    %v1197 = vld [vmem:[%s11 + $0x228] sm:$0xf]
    %v1198 = vld [vmem:[%s11 + $0x22c] sm:$0xf]
    %v1199 = vld [vmem:[%s11 + $0x230] sm:$0xf]
    %v1200 = vld [vmem:[%s11 + $0x234] sm:$0xf]
    %v1201 = vld [vmem:[%s11 + $0x238] sm:$0xf]
    %v1202 = vld [vmem:[%s11 + $0x23c] sm:$0xf]
    %v1203 = vld [vmem:[%s11 + $0x240] sm:$0xf]
    %v1204 = vld [vmem:[%s11 + $0x244] sm:$0xf]
    %v1205 = vld [vmem:[%s11 + $0x248] sm:$0xf]
    %v1206 = vld [vmem:[%s11 + $0x24c] sm:$0xf]
    %v1207 = vld [vmem:[%s11 + $0x250] sm:$0xf]
    %v1208 = vld [vmem:[%s11 + $0x254] sm:$0xf]
    %v1209 = vld [vmem:[%s11 + $0x258] sm:$0xf]
    %v1210 = vld [vmem:[%s11 + $0x25c] sm:$0xf]
    %v1211 = vld [vmem:[%s11 + $0x260] sm:$0xf]
    %v1212 = vld [vmem:[%s11 + $0x264] sm:$0xf]
    %v1213 = vld [vmem:[%s11 + $0x268] sm:$0xf]
    %v1214 = vld [vmem:[%s11 + $0x26c] sm:$0xf]
    %v1215 = vld [vmem:[%s11 + $0x270] sm:$0xf]
    %v1216 = vld [vmem:[%s11 + $0x274] sm:$0xf]
    %v1217 = vld [vmem:[%s11 + $0x278] sm:$0xf]
    %v1218 = vld [vmem:[%s11 + $0x27c] sm:$0xf]
    %v1219 = vld [vmem:[%s11 + $0x280] sm:$0xf]
    %v1220 = vld [vmem:[%s11 + $0x284] sm:$0xf]
    %v1221 = vld [vmem:[%s11 + $0x288] sm:$0xf]
    %v1222 = vld [vmem:[%s11 + $0x28c] sm:$0xf]
    %v1223 = vld [vmem:[%s11 + $0x290] sm:$0xf]
    %v1224 = vld [vmem:[%s11 + $0x294] sm:$0xf]
    %v1225 = vld [vmem:[%s11 + $0x298] sm:$0xf]
    %v1226 = vld [vmem:[%s11 + $0x29c] sm:$0xf]
    %v1227 = vld [vmem:[%s11 + $0x2a0] sm:$0xf]
    %v1228 = vld [vmem:[%s11 + $0x2a4] sm:$0xf]
    %v1229 = vld [vmem:[%s11 + $0x2a8] sm:$0xf]
    %v1230 = vld [vmem:[%s11 + $0x2ac] sm:$0xf]
    %v1231 = vld [vmem:[%s11 + $0x2b0] sm:$0xf]
    %v1232 = vld [vmem:[%s11 + $0x2b4] sm:$0xf]
    %v1233 = vld [vmem:[%s11 + $0x2b8] sm:$0xf]
    %v1234 = vld [vmem:[%s11 + $0x2bc] sm:$0xf]
    %v1235 = vld [vmem:[%s11 + $0x2c0] sm:$0xf]
    %v1236 = vld [vmem:[%s11 + $0x2c4] sm:$0xf]
    %v1237 = vld [vmem:[%s11 + $0x2c8] sm:$0xf]
    %v1238 = vld [vmem:[%s11 + $0x2cc] sm:$0xf]
    %v1239 = vld [vmem:[%s11 + $0x2d0] sm:$0xf]
    %v1240 = vld [vmem:[%s11 + $0x2d4] sm:$0xf]
    %v1241 = vld [vmem:[%s11 + $0x2d8] sm:$0xf]
    %v1242 = vld [vmem:[%s11 + $0x2dc] sm:$0xf]
    %v1243 = vld [vmem:[%s11 + $0x2e0] sm:$0xf]
    %v1244 = vld [vmem:[%s11 + $0x2e4] sm:$0xf]
    %v1245 = vld [vmem:[%s11 + $0x2e8] sm:$0xf]
    %v1246 = vld [vmem:[%s11 + $0x2ec] sm:$0xf]
    %v1247 = vld [vmem:[%s11 + $0x2f0] sm:$0xf]
    %v1248 = vld [vmem:[%s11 + $0x2f4] sm:$0xf]
    %v1249 = vld [vmem:[%s11 + $0x2f8] sm:$0xf]
    %v1250 = vld [vmem:[%s11 + $0x2fc] sm:$0xf]
    %v1251 = vld [vmem:[%s11 + $0x300] sm:$0xf]
    %v1252 = vld [vmem:[%s11 + $0x304] sm:$0xf]
    %v1253 = vld [vmem:[%s11 + $0x308] sm:$0xf]
    %v1254 = vld [vmem:[%s11 + $0x30c] sm:$0xf]
    %v1255 = vld [vmem:[%s11 + $0x310] sm:$0xf]
    %v1256 = vld [vmem:[%s11 + $0x314] sm:$0xf]
    %v1257 = vld [vmem:[%s11 + $0x318] sm:$0xf]
    %v1258 = vld [vmem:[%s11 + $0x31c] sm:$0xf]
    %v1259 = vld [vmem:[%s11 + $0x320] sm:$0xf]
    %v1260 = vld [vmem:[%s11 + $0x324] sm:$0xf]
    %v1261 = vld [vmem:[%s11 + $0x328] sm:$0xf]
    %v1262 = vld [vmem:[%s11 + $0x32c] sm:$0xf]
    %v1263 = vld [vmem:[%s11 + $0x330] sm:$0xf]
    %v1264 = vld [vmem:[%s11 + $0x334] sm:$0xf]
    %v1265 = vld [vmem:[%s11 + $0x338] sm:$0xf]
    %v1266 = vld [vmem:[%s11 + $0x33c] sm:$0xf]
    %v1267 = vld [vmem:[%s11 + $0x340] sm:$0xf]
    %v1268 = vld [vmem:[%s11 + $0x344] sm:$0xf]
    %v1269 = vld [vmem:[%s11 + $0x348] sm:$0xf]
    %v1270 = vld [vmem:[%s11 + $0x34c] sm:$0xf]
    %v1271 = vld [vmem:[%s11 + $0x350] sm:$0xf]
    %v1272 = vld [vmem:[%s11 + $0x354] sm:$0xf]
    %v1273 = vld [vmem:[%s11 + $0x358] sm:$0xf]
    %v1274 = vld [vmem:[%s11 + $0x35c] sm:$0xf]
    %v1275 = vld [vmem:[%s11 + $0x360] sm:$0xf]
    %v1276 = vld [vmem:[%s11 + $0x364] sm:$0xf]
    %v1277 = vld [vmem:[%s11 + $0x368] sm:$0xf]
    %v1278 = vld [vmem:[%s11 + $0x36c] sm:$0xf]
    %v1279 = vld [vmem:[%s11 + $0x370] sm:$0xf]
    %v1280 = vld [vmem:[%s11 + $0x374] sm:$0xf]
    %v1281 = vld [vmem:[%s11 + $0x378] sm:$0xf]
    %v1282 = vld [vmem:[%s11 + $0x37c] sm:$0xf]
    %v1283 = vld [vmem:[%s11 + $0x380] sm:$0xf]
    %v1284 = vld [vmem:[%s11 + $0x384] sm:$0xf]
    %v1285 = vld [vmem:[%s11 + $0x388] sm:$0xf]
    %v1286 = vld [vmem:[%s11 + $0x38c] sm:$0xf]
    %v1287 = vld [vmem:[%s11 + $0x390] sm:$0xf]
    %v1288 = vld [vmem:[%s11 + $0x394] sm:$0xf]
    %v1289 = vld [vmem:[%s11 + $0x398] sm:$0xf]
    %v1290 = vld [vmem:[%s11 + $0x39c] sm:$0xf]
    %v1291 = vld [vmem:[%s11 + $0x3a0] sm:$0xf]
    %v1292 = vld [vmem:[%s11 + $0x3a4] sm:$0xf]
    %v1293 = vld [vmem:[%s11 + $0x3a8] sm:$0xf]
    %v1294 = vld [vmem:[%s11 + $0x3ac] sm:$0xf]
    %v1295 = vld [vmem:[%s11 + $0x3b0] sm:$0xf]
    %v1296 = vld [vmem:[%s11 + $0x3b4] sm:$0xf]
    %v1297 = vld [vmem:[%s11 + $0x3b8] sm:$0xf]
    %v1298 = vld [vmem:[%s11 + $0x3bc] sm:$0xf]
    %v1299 = vld [vmem:[%s11 + $0x3c0] sm:$0xf]
    %v1300 = vld [vmem:[%s11 + $0x3c4] sm:$0xf]
    %v1301 = vld [vmem:[%s11 + $0x3c8] sm:$0xf]
    %v1302 = vld [vmem:[%s11 + $0x3cc] sm:$0xf]
    %v1303 = vld [vmem:[%s11 + $0x3d0] sm:$0xf]
    %v1304 = vld [vmem:[%s11 + $0x3d4] sm:$0xf]
    %v1305 = vld [vmem:[%s11 + $0x3d8] sm:$0xf]
    %v1306 = vld [vmem:[%s11 + $0x3dc] sm:$0xf]
    %v1307 = vld [vmem:[%s11 + $0x3e0] sm:$0xf]
    %v1308 = vld [vmem:[%s11 + $0x3e4] sm:$0xf]
    %v1309 = vld [vmem:[%s11 + $0x3e8] sm:$0xf]
    %v1310 = vld [vmem:[%s11 + $0x3ec] sm:$0xf]
    %v1311 = vld [vmem:[%s11 + $0x3f0] sm:$0xf]
    %v1312 = vld [vmem:[%s11 + $0x3f4] sm:$0xf]
    %v1313 = vld [vmem:[%s11 + $0x3f8] sm:$0xf]
    %v1314 = vld [vmem:[%s11 + $0x3fc] sm:$0xf]
    %v1315 = vld [vmem:[%s12] sm:$0x1]
    %v1317 = vperm.slane %v1315, 0
    %v1575 = vunpack.c.l.b16 %v1059
    %v1576 = vunpack.c.l.b16 %v1060
    %v1577 = vunpack.c.l.b16 %v1061
    %v1578 = vunpack.c.l.b16 %v1062
    %v1579 = vunpack.c.l.b16 %v1063
    %v1580 = vunpack.c.l.b16 %v1064
    %v1581 = vunpack.c.l.b16 %v1065
    %v1582 = vunpack.c.l.b16 %v1066
    %v1583 = vunpack.c.l.b16 %v1067
    %v1584 = vunpack.c.l.b16 %v1068
    %v1585 = vunpack.c.l.b16 %v1069
    %v1586 = vunpack.c.l.b16 %v1070
    %v1587 = vunpack.c.l.b16 %v1071
    %v1588 = vunpack.c.l.b16 %v1072
    %v1589 = vunpack.c.l.b16 %v1073
    %v1590 = vunpack.c.l.b16 %v1074
    %v1591 = vunpack.c.l.b16 %v1075
    %v1592 = vunpack.c.l.b16 %v1076
    %v1593 = vunpack.c.l.b16 %v1077
    %v1594 = vunpack.c.l.b16 %v1078
    %v1595 = vunpack.c.l.b16 %v1079
    %v1596 = vunpack.c.l.b16 %v1080
    %v1597 = vunpack.c.l.b16 %v1081
    %v1598 = vunpack.c.l.b16 %v1082
    %v1599 = vunpack.c.l.b16 %v1083
    %v1600 = vunpack.c.l.b16 %v1084
    %v1601 = vunpack.c.l.b16 %v1085
    %v1602 = vunpack.c.l.b16 %v1086
    %v1603 = vunpack.c.l.b16 %v1087
    %v1604 = vunpack.c.l.b16 %v1088
    %v1605 = vunpack.c.l.b16 %v1089
    %v1606 = vunpack.c.l.b16 %v1090
    %v1607 = vunpack.c.l.b16 %v1091
    %v1608 = vunpack.c.l.b16 %v1092
    %v1609 = vunpack.c.l.b16 %v1093
    %v1610 = vunpack.c.l.b16 %v1094
    %v1611 = vunpack.c.l.b16 %v1095
    %v1612 = vunpack.c.l.b16 %v1096
    %v1613 = vunpack.c.l.b16 %v1097
    %v1614 = vunpack.c.l.b16 %v1098
    %v1615 = vunpack.c.l.b16 %v1099
    %v1616 = vunpack.c.l.b16 %v1100
    %v1617 = vunpack.c.l.b16 %v1101
    %v1618 = vunpack.c.l.b16 %v1102
    %v1619 = vunpack.c.l.b16 %v1103
    %v1620 = vunpack.c.l.b16 %v1104
    %v1621 = vunpack.c.l.b16 %v1105
    %v1622 = vunpack.c.l.b16 %v1106
    %v1623 = vunpack.c.l.b16 %v1107
    %v1624 = vunpack.c.l.b16 %v1108
    %v1625 = vunpack.c.l.b16 %v1109
    %v1626 = vunpack.c.l.b16 %v1110
    %v1627 = vunpack.c.l.b16 %v1111
    %v1628 = vunpack.c.l.b16 %v1112
    %v1629 = vunpack.c.l.b16 %v1113
    %v1630 = vunpack.c.l.b16 %v1114
    %v1631 = vunpack.c.l.b16 %v1115
    %v1632 = vunpack.c.l.b16 %v1116
    %v1633 = vunpack.c.l.b16 %v1117
    %v1634 = vunpack.c.l.b16 %v1118
    %v1635 = vunpack.c.l.b16 %v1119
    %v1636 = vunpack.c.l.b16 %v1120
    %v1637 = vunpack.c.l.b16 %v1121
    %v1638 = vunpack.c.l.b16 %v1122
    %v1639 = vunpack.c.l.b16 %v1123
    %v1640 = vunpack.c.l.b16 %v1124
    %v1641 = vunpack.c.l.b16 %v1125
    %v1642 = vunpack.c.l.b16 %v1126
    %v1643 = vunpack.c.l.b16 %v1127
    %v1644 = vunpack.c.l.b16 %v1128
    %v1645 = vunpack.c.l.b16 %v1129
    %v1646 = vunpack.c.l.b16 %v1130
    %v1647 = vunpack.c.l.b16 %v1131
    %v1648 = vunpack.c.l.b16 %v1132
    %v1649 = vunpack.c.l.b16 %v1133
    %v1650 = vunpack.c.l.b16 %v1134
    %v1651 = vunpack.c.l.b16 %v1135
    %v1652 = vunpack.c.l.b16 %v1136
    %v1653 = vunpack.c.l.b16 %v1137
    %v1654 = vunpack.c.l.b16 %v1138
    %v1655 = vunpack.c.l.b16 %v1139
    %v1656 = vunpack.c.l.b16 %v1140
    %v1657 = vunpack.c.l.b16 %v1141
    %v1658 = vunpack.c.l.b16 %v1142
    %v1659 = vunpack.c.l.b16 %v1143
    %v1660 = vunpack.c.l.b16 %v1144
    %v1661 = vunpack.c.l.b16 %v1145
    %v1662 = vunpack.c.l.b16 %v1146
    %v1663 = vunpack.c.l.b16 %v1147
    %v1664 = vunpack.c.l.b16 %v1148
    %v1665 = vunpack.c.l.b16 %v1149
    %v1666 = vunpack.c.l.b16 %v1150
    %v1667 = vunpack.c.l.b16 %v1151
    %v1668 = vunpack.c.l.b16 %v1152
    %v1669 = vunpack.c.l.b16 %v1153
    %v1670 = vunpack.c.l.b16 %v1154
    %v1671 = vunpack.c.l.b16 %v1155
    %v1672 = vunpack.c.l.b16 %v1156
    %v1673 = vunpack.c.l.b16 %v1157
    %v1674 = vunpack.c.l.b16 %v1158
    %v1675 = vunpack.c.l.b16 %v1159
    %v1676 = vunpack.c.l.b16 %v1160
    %v1677 = vunpack.c.l.b16 %v1161
    %v1678 = vunpack.c.l.b16 %v1162
    %v1679 = vunpack.c.l.b16 %v1163
    %v1680 = vunpack.c.l.b16 %v1164
    %v1681 = vunpack.c.l.b16 %v1165
    %v1682 = vunpack.c.l.b16 %v1166
    %v1683 = vunpack.c.l.b16 %v1167
    %v1684 = vunpack.c.l.b16 %v1168
    %v1685 = vunpack.c.l.b16 %v1169
    %v1686 = vunpack.c.l.b16 %v1170
    %v1687 = vunpack.c.l.b16 %v1171
    %v1688 = vunpack.c.l.b16 %v1172
    %v1689 = vunpack.c.l.b16 %v1173
    %v1690 = vunpack.c.l.b16 %v1174
    %v1691 = vunpack.c.l.b16 %v1175
    %v1692 = vunpack.c.l.b16 %v1176
    %v1693 = vunpack.c.l.b16 %v1177
    %v1694 = vunpack.c.l.b16 %v1178
    %v1695 = vunpack.c.l.b16 %v1179
    %v1696 = vunpack.c.l.b16 %v1180
    %v1697 = vunpack.c.l.b16 %v1181
    %v1698 = vunpack.c.l.b16 %v1182
    %v1699 = vunpack.c.l.b16 %v1183
    %v1700 = vunpack.c.l.b16 %v1184
    %v1701 = vunpack.c.l.b16 %v1185
    %v1702 = vunpack.c.l.b16 %v1186
    %v1703 = vunpack.c.l.b16 %v1187
    %v1704 = vunpack.c.l.b16 %v1188
    %v1705 = vunpack.c.l.b16 %v1189
    %v1706 = vunpack.c.l.b16 %v1190
    %v1707 = vunpack.c.l.b16 %v1191
    %v1708 = vunpack.c.l.b16 %v1192
    %v1709 = vunpack.c.l.b16 %v1193
    %v1710 = vunpack.c.l.b16 %v1194
    %v1711 = vunpack.c.l.b16 %v1195
    %v1712 = vunpack.c.l.b16 %v1196
    %v1713 = vunpack.c.l.b16 %v1197
    %v1714 = vunpack.c.l.b16 %v1198
    %v1715 = vunpack.c.l.b16 %v1199
    %v1716 = vunpack.c.l.b16 %v1200
    %v1717 = vunpack.c.l.b16 %v1201
    %v1718 = vunpack.c.l.b16 %v1202
    %v1719 = vunpack.c.l.b16 %v1203
    %v1720 = vunpack.c.l.b16 %v1204
    %v1721 = vunpack.c.l.b16 %v1205
    %v1722 = vunpack.c.l.b16 %v1206
    %v1723 = vunpack.c.l.b16 %v1207
    %v1724 = vunpack.c.l.b16 %v1208
    %v1725 = vunpack.c.l.b16 %v1209
    %v1726 = vunpack.c.l.b16 %v1210
    %v1727 = vunpack.c.l.b16 %v1211
    %v1728 = vunpack.c.l.b16 %v1212
    %v1729 = vunpack.c.l.b16 %v1213
    %v1730 = vunpack.c.l.b16 %v1214
    %v1731 = vunpack.c.l.b16 %v1215
    %v1732 = vunpack.c.l.b16 %v1216
    %v1733 = vunpack.c.l.b16 %v1217
    %v1734 = vunpack.c.l.b16 %v1218
    %v1735 = vunpack.c.l.b16 %v1219
    %v1736 = vunpack.c.l.b16 %v1220
    %v1737 = vunpack.c.l.b16 %v1221
    %v1738 = vunpack.c.l.b16 %v1222
    %v1739 = vunpack.c.l.b16 %v1223
    %v1740 = vunpack.c.l.b16 %v1224
    %v1741 = vunpack.c.l.b16 %v1225
    %v1742 = vunpack.c.l.b16 %v1226
    %v1743 = vunpack.c.l.b16 %v1227
    %v1744 = vunpack.c.l.b16 %v1228
    %v1745 = vunpack.c.l.b16 %v1229
    %v1746 = vunpack.c.l.b16 %v1230
    %v1747 = vunpack.c.l.b16 %v1231
    %v1748 = vunpack.c.l.b16 %v1232
    %v1749 = vunpack.c.l.b16 %v1233
    %v1750 = vunpack.c.l.b16 %v1234
    %v1751 = vunpack.c.l.b16 %v1235
    %v1752 = vunpack.c.l.b16 %v1236
    %v1753 = vunpack.c.l.b16 %v1237
    %v1754 = vunpack.c.l.b16 %v1238
    %v1755 = vunpack.c.l.b16 %v1239
    %v1756 = vunpack.c.l.b16 %v1240
    %v1757 = vunpack.c.l.b16 %v1241
    %v1758 = vunpack.c.l.b16 %v1242
    %v1759 = vunpack.c.l.b16 %v1243
    %v1760 = vunpack.c.l.b16 %v1244
    %v1761 = vunpack.c.l.b16 %v1245
    %v1762 = vunpack.c.l.b16 %v1246
    %v1763 = vunpack.c.l.b16 %v1247
    %v1764 = vunpack.c.l.b16 %v1248
    %v1765 = vunpack.c.l.b16 %v1249
    %v1766 = vunpack.c.l.b16 %v1250
    %v1767 = vunpack.c.l.b16 %v1251
    %v1768 = vunpack.c.l.b16 %v1252
    %v1769 = vunpack.c.l.b16 %v1253
    %v1770 = vunpack.c.l.b16 %v1254
    %v1771 = vunpack.c.l.b16 %v1255
    %v1772 = vunpack.c.l.b16 %v1256
    %v1773 = vunpack.c.l.b16 %v1257
    %v1774 = vunpack.c.l.b16 %v1258
    %v1775 = vunpack.c.l.b16 %v1259
    %v1776 = vunpack.c.l.b16 %v1260
    %v1777 = vunpack.c.l.b16 %v1261
    %v1778 = vunpack.c.l.b16 %v1262
    %v1779 = vunpack.c.l.b16 %v1263
    %v1780 = vunpack.c.l.b16 %v1264
    %v1781 = vunpack.c.l.b16 %v1265
    %v1782 = vunpack.c.l.b16 %v1266
    %v1783 = vunpack.c.l.b16 %v1267
    %v1784 = vunpack.c.l.b16 %v1268
    %v1785 = vunpack.c.l.b16 %v1269
    %v1786 = vunpack.c.l.b16 %v1270
    %v1787 = vunpack.c.l.b16 %v1271
    %v1788 = vunpack.c.l.b16 %v1272
    %v1789 = vunpack.c.l.b16 %v1273
    %v1790 = vunpack.c.l.b16 %v1274
    %v1791 = vunpack.c.l.b16 %v1275
    %v1792 = vunpack.c.l.b16 %v1276
    %v1793 = vunpack.c.l.b16 %v1277
    %v1794 = vunpack.c.l.b16 %v1278
    %v1795 = vunpack.c.l.b16 %v1279
    %v1796 = vunpack.c.l.b16 %v1280
    %v1797 = vunpack.c.l.b16 %v1281
    %v1798 = vunpack.c.l.b16 %v1282
    %v1799 = vunpack.c.l.b16 %v1283
    %v1800 = vunpack.c.l.b16 %v1284
    %v1801 = vunpack.c.l.b16 %v1285
    %v1802 = vunpack.c.l.b16 %v1286
    %v1803 = vunpack.c.l.b16 %v1287
    %v1804 = vunpack.c.l.b16 %v1288
    %v1805 = vunpack.c.l.b16 %v1289
    %v1806 = vunpack.c.l.b16 %v1290
    %v1807 = vunpack.c.l.b16 %v1291
    %v1808 = vunpack.c.l.b16 %v1292
    %v1809 = vunpack.c.l.b16 %v1293
    %v1810 = vunpack.c.l.b16 %v1294
    %v1811 = vunpack.c.l.b16 %v1295
    %v1812 = vunpack.c.l.b16 %v1296
    %v1813 = vunpack.c.l.b16 %v1297
    %v1814 = vunpack.c.l.b16 %v1298
    %v1815 = vunpack.c.l.b16 %v1299
    %v1816 = vunpack.c.l.b16 %v1300
    %v1817 = vunpack.c.l.b16 %v1301
    %v1818 = vunpack.c.l.b16 %v1302
    %v1819 = vunpack.c.l.b16 %v1303
    %v1820 = vunpack.c.l.b16 %v1304
    %v1821 = vunpack.c.l.b16 %v1305
    %v1822 = vunpack.c.l.b16 %v1306
    %v1823 = vunpack.c.l.b16 %v1307
    %v1824 = vunpack.c.l.b16 %v1308
    %v1825 = vunpack.c.l.b16 %v1309
    %v1826 = vunpack.c.l.b16 %v1310
    %v1827 = vunpack.c.l.b16 %v1311
    %v1828 = vunpack.c.l.b16 %v1312
    %v1829 = vunpack.c.l.b16 %v1313
    %v1830 = vunpack.c.l.b16 %v1314
    %v1831 = vpack.c.b16 %v1576, %v1575
    %v1832 = vpack.c.b16 %v1578, %v1577
    %v1833 = vpack.c.b16 %v1580, %v1579
    %v1834 = vpack.c.b16 %v1582, %v1581
    %v1835 = vpack.c.b16 %v1584, %v1583
    %v1836 = vpack.c.b16 %v1586, %v1585
    %v1837 = vpack.c.b16 %v1588, %v1587
    %v1838 = vpack.c.b16 %v1590, %v1589
    %v1839 = vpack.c.b16 %v1592, %v1591
    %v1840 = vpack.c.b16 %v1594, %v1593
    %v1841 = vpack.c.b16 %v1596, %v1595
    %v1842 = vpack.c.b16 %v1598, %v1597
    %v1843 = vpack.c.b16 %v1600, %v1599
    %v1844 = vpack.c.b16 %v1602, %v1601
    %v1845 = vpack.c.b16 %v1604, %v1603
    %v1846 = vpack.c.b16 %v1606, %v1605
    %v1847 = vpack.c.b16 %v1608, %v1607
    %v1848 = vpack.c.b16 %v1610, %v1609
    %v1849 = vpack.c.b16 %v1612, %v1611
    %v1850 = vpack.c.b16 %v1614, %v1613
    %v1851 = vpack.c.b16 %v1616, %v1615
    %v1852 = vpack.c.b16 %v1618, %v1617
    %v1853 = vpack.c.b16 %v1620, %v1619
    %v1854 = vpack.c.b16 %v1622, %v1621
    %v1855 = vpack.c.b16 %v1624, %v1623
    %v1856 = vpack.c.b16 %v1626, %v1625
    %v1857 = vpack.c.b16 %v1628, %v1627
    %v1858 = vpack.c.b16 %v1630, %v1629
    %v1859 = vpack.c.b16 %v1632, %v1631
    %v1860 = vpack.c.b16 %v1634, %v1633
    %v1861 = vpack.c.b16 %v1636, %v1635
    %v1862 = vpack.c.b16 %v1638, %v1637
    %v1863 = vpack.c.b16 %v1640, %v1639
    %v1864 = vpack.c.b16 %v1642, %v1641
    %v1865 = vpack.c.b16 %v1644, %v1643
    %v1866 = vpack.c.b16 %v1646, %v1645
    %v1867 = vpack.c.b16 %v1648, %v1647
    %v1868 = vpack.c.b16 %v1650, %v1649
    %v1869 = vpack.c.b16 %v1652, %v1651
    %v1870 = vpack.c.b16 %v1654, %v1653
    %v1871 = vpack.c.b16 %v1656, %v1655
    %v1872 = vpack.c.b16 %v1658, %v1657
    %v1873 = vpack.c.b16 %v1660, %v1659
    %v1874 = vpack.c.b16 %v1662, %v1661
    %v1875 = vpack.c.b16 %v1664, %v1663
    %v1876 = vpack.c.b16 %v1666, %v1665
    %v1877 = vpack.c.b16 %v1668, %v1667
    %v1878 = vpack.c.b16 %v1670, %v1669
    %v1879 = vpack.c.b16 %v1672, %v1671
    %v1880 = vpack.c.b16 %v1674, %v1673
    %v1881 = vpack.c.b16 %v1676, %v1675
    %v1882 = vpack.c.b16 %v1678, %v1677
    %v1883 = vpack.c.b16 %v1680, %v1679
    %v1884 = vpack.c.b16 %v1682, %v1681
    %v1885 = vpack.c.b16 %v1684, %v1683
    %v1886 = vpack.c.b16 %v1686, %v1685
    %v1887 = vpack.c.b16 %v1688, %v1687
    %v1888 = vpack.c.b16 %v1690, %v1689
    %v1889 = vpack.c.b16 %v1692, %v1691
    %v1890 = vpack.c.b16 %v1694, %v1693
    %v1891 = vpack.c.b16 %v1696, %v1695
    %v1892 = vpack.c.b16 %v1698, %v1697
    %v1893 = vpack.c.b16 %v1700, %v1699
    %v1894 = vpack.c.b16 %v1702, %v1701
    %v1895 = vpack.c.b16 %v1704, %v1703
    %v1896 = vpack.c.b16 %v1706, %v1705
    %v1897 = vpack.c.b16 %v1708, %v1707
    %v1898 = vpack.c.b16 %v1710, %v1709
    %v1899 = vpack.c.b16 %v1712, %v1711
    %v1900 = vpack.c.b16 %v1714, %v1713
    %v1901 = vpack.c.b16 %v1716, %v1715
    %v1902 = vpack.c.b16 %v1718, %v1717
    %v1903 = vpack.c.b16 %v1720, %v1719
    %v1904 = vpack.c.b16 %v1722, %v1721
    %v1905 = vpack.c.b16 %v1724, %v1723
    %v1906 = vpack.c.b16 %v1726, %v1725
    %v1907 = vpack.c.b16 %v1728, %v1727
    %v1908 = vpack.c.b16 %v1730, %v1729
    %v1909 = vpack.c.b16 %v1732, %v1731
    %v1910 = vpack.c.b16 %v1734, %v1733
    %v1911 = vpack.c.b16 %v1736, %v1735
    %v1912 = vpack.c.b16 %v1738, %v1737
    %v1913 = vpack.c.b16 %v1740, %v1739
    %v1914 = vpack.c.b16 %v1742, %v1741
    %v1915 = vpack.c.b16 %v1744, %v1743
    %v1916 = vpack.c.b16 %v1746, %v1745
    %v1917 = vpack.c.b16 %v1748, %v1747
    %v1918 = vpack.c.b16 %v1750, %v1749
    %v1919 = vpack.c.b16 %v1752, %v1751
    %v1920 = vpack.c.b16 %v1754, %v1753
    %v1921 = vpack.c.b16 %v1756, %v1755
    %v1922 = vpack.c.b16 %v1758, %v1757
    %v1923 = vpack.c.b16 %v1760, %v1759
    %v1924 = vpack.c.b16 %v1762, %v1761
    %v1925 = vpack.c.b16 %v1764, %v1763
    %v1926 = vpack.c.b16 %v1766, %v1765
    %v1927 = vpack.c.b16 %v1768, %v1767
    %v1928 = vpack.c.b16 %v1770, %v1769
    %v1929 = vpack.c.b16 %v1772, %v1771
    %v1930 = vpack.c.b16 %v1774, %v1773
    %v1931 = vpack.c.b16 %v1776, %v1775
    %v1932 = vpack.c.b16 %v1778, %v1777
    %v1933 = vpack.c.b16 %v1780, %v1779
    %v1934 = vpack.c.b16 %v1782, %v1781
    %v1935 = vpack.c.b16 %v1784, %v1783
    %v1936 = vpack.c.b16 %v1786, %v1785
    %v1937 = vpack.c.b16 %v1788, %v1787
    %v1938 = vpack.c.b16 %v1790, %v1789
    %v1939 = vpack.c.b16 %v1792, %v1791
    %v1940 = vpack.c.b16 %v1794, %v1793
    %v1941 = vpack.c.b16 %v1796, %v1795
    %v1942 = vpack.c.b16 %v1798, %v1797
    %v1943 = vpack.c.b16 %v1800, %v1799
    %v1944 = vpack.c.b16 %v1802, %v1801
    %v1945 = vpack.c.b16 %v1804, %v1803
    %v1946 = vpack.c.b16 %v1806, %v1805
    %v1947 = vpack.c.b16 %v1808, %v1807
    %v1948 = vpack.c.b16 %v1810, %v1809
    %v1949 = vpack.c.b16 %v1812, %v1811
    %v1950 = vpack.c.b16 %v1814, %v1813
    %v1951 = vpack.c.b16 %v1816, %v1815
    %v1952 = vpack.c.b16 %v1818, %v1817
    %v1953 = vpack.c.b16 %v1820, %v1819
    %v1954 = vpack.c.b16 %v1822, %v1821
    %v1955 = vpack.c.b16 %v1824, %v1823
    %v1956 = vpack.c.b16 %v1826, %v1825
    %v1957 = vpack.c.b16 %v1828, %v1827
    %v1958 = vpack.c.b16 %v1830, %v1829
    %2087 = vmatpush.bf16.msra.mxu0 %v1838
    %2088 = vmatpush.bf16.msra.mxu0 %v1837
    %2089 = vmatpush.bf16.msra.mxu0 %v1836
    %2090 = vmatpush.bf16.msra.mxu0 %v1835
    %2091 = vmatpush.bf16.msra.mxu0 %v1834
    %2092 = vmatpush.bf16.msra.mxu0 %v1833
    %2093 = vmatpush.bf16.msra.mxu0 %v1832
    %2094 = vmatpush.bf16.msra.mxu0 %v1831
    %2095 = vmatmul.bf16.gmra.mxu0 %v1043
    %v2096 = vpop.f32.mrf.mxu0
    %v2097 = vadd.f32 %v1317, %v2096
    %v2098 = vpop.f32.mrf.mxu0
    %v2099 = vadd.f32 %v1317, %v2098
    %2100 = vdwg.mxu0
    %2101 = vmatpush.bf16.msra.mxu0 %v1846
    %2102 = vmatpush.bf16.msra.mxu0 %v1845
    %2103 = vmatpush.bf16.msra.mxu0 %v1844
    %2104 = vmatpush.bf16.msra.mxu0 %v1843
    %2105 = vmatpush.bf16.msra.mxu0 %v1842
    %2106 = vmatpush.bf16.msra.mxu0 %v1841
    %2107 = vmatpush.bf16.msra.mxu0 %v1840
    %2108 = vmatpush.bf16.msra.mxu0 %v1839
    %2109 = vmatmul.bf16.gmra.mxu0 %v1044
    %v2110 = vpop.f32.mrf.mxu0
    %v2111 = vadd.f32 %v2097, %v2110
    %v2112 = vpop.f32.mrf.mxu0
    %v2113 = vadd.f32 %v2099, %v2112
    %2114 = vdwg.mxu0
    %2115 = vmatpush.bf16.msra.mxu0 %v1854
    %2116 = vmatpush.bf16.msra.mxu0 %v1853
    %2117 = vmatpush.bf16.msra.mxu0 %v1852
    %2118 = vmatpush.bf16.msra.mxu0 %v1851
    %2119 = vmatpush.bf16.msra.mxu0 %v1850
    %2120 = vmatpush.bf16.msra.mxu0 %v1849
    %2121 = vmatpush.bf16.msra.mxu0 %v1848
    %2122 = vmatpush.bf16.msra.mxu0 %v1847
    %2123 = vmatmul.bf16.gmra.mxu0 %v1045
    %v2124 = vpop.f32.mrf.mxu0
    %v2125 = vadd.f32 %v2111, %v2124
    %v2126 = vpop.f32.mrf.mxu0
    %v2127 = vadd.f32 %v2113, %v2126
    %2128 = vdwg.mxu0
    %2129 = vmatpush.bf16.msra.mxu0 %v1862
    %2130 = vmatpush.bf16.msra.mxu0 %v1861
    %2131 = vmatpush.bf16.msra.mxu0 %v1860
    %2132 = vmatpush.bf16.msra.mxu0 %v1859
    %2133 = vmatpush.bf16.msra.mxu0 %v1858
    %2134 = vmatpush.bf16.msra.mxu0 %v1857
    %2135 = vmatpush.bf16.msra.mxu0 %v1856
    %2136 = vmatpush.bf16.msra.mxu0 %v1855
    %2137 = vmatmul.bf16.gmra.mxu0 %v1046
    %v2138 = vpop.f32.mrf.mxu0
    %v2139 = vadd.f32 %v2125, %v2138
    %v2140 = vpop.f32.mrf.mxu0
    %v2141 = vadd.f32 %v2127, %v2140
    %2142 = vdwg.mxu0
    %2143 = vmatpush.bf16.msra.mxu0 %v1870
    %2144 = vmatpush.bf16.msra.mxu0 %v1869
    %2145 = vmatpush.bf16.msra.mxu0 %v1868
    %2146 = vmatpush.bf16.msra.mxu0 %v1867
    %2147 = vmatpush.bf16.msra.mxu0 %v1866
    %2148 = vmatpush.bf16.msra.mxu0 %v1865
    %2149 = vmatpush.bf16.msra.mxu0 %v1864
    %2150 = vmatpush.bf16.msra.mxu0 %v1863
    %2151 = vmatmul.bf16.gmra.mxu0 %v1047
    %v2152 = vpop.f32.mrf.mxu0
    %v2153 = vadd.f32 %v2139, %v2152
    %v2154 = vpop.f32.mrf.mxu0
    %v2155 = vadd.f32 %v2141, %v2154
    %2156 = vdwg.mxu0
    %2157 = vmatpush.bf16.msra.mxu0 %v1878
    %2158 = vmatpush.bf16.msra.mxu0 %v1877
    %2159 = vmatpush.bf16.msra.mxu0 %v1876
    %2160 = vmatpush.bf16.msra.mxu0 %v1875
    %2161 = vmatpush.bf16.msra.mxu0 %v1874
    %2162 = vmatpush.bf16.msra.mxu0 %v1873
    %2163 = vmatpush.bf16.msra.mxu0 %v1872
    %2164 = vmatpush.bf16.msra.mxu0 %v1871
    %2165 = vmatmul.bf16.gmra.mxu0 %v1048
    %v2166 = vpop.f32.mrf.mxu0
    %v2167 = vadd.f32 %v2153, %v2166
    %v2168 = vpop.f32.mrf.mxu0
    %v2169 = vadd.f32 %v2155, %v2168
    %2170 = vdwg.mxu0
    %2171 = vmatpush.bf16.msra.mxu0 %v1886
    %2172 = vmatpush.bf16.msra.mxu0 %v1885
    %2173 = vmatpush.bf16.msra.mxu0 %v1884
    %2174 = vmatpush.bf16.msra.mxu0 %v1883
    %2175 = vmatpush.bf16.msra.mxu0 %v1882
    %2176 = vmatpush.bf16.msra.mxu0 %v1881
    %2177 = vmatpush.bf16.msra.mxu0 %v1880
    %2178 = vmatpush.bf16.msra.mxu0 %v1879
    %2179 = vmatmul.bf16.gmra.mxu0 %v1049
    %v2180 = vpop.f32.mrf.mxu0
    %v2181 = vadd.f32 %v2167, %v2180
    %v2182 = vpop.f32.mrf.mxu0
    %v2183 = vadd.f32 %v2169, %v2182
    %2184 = vdwg.mxu0
    %2185 = vmatpush.bf16.msra.mxu0 %v1894
    %2186 = vmatpush.bf16.msra.mxu0 %v1893
    %2187 = vmatpush.bf16.msra.mxu0 %v1892
    %2188 = vmatpush.bf16.msra.mxu0 %v1891
    %2189 = vmatpush.bf16.msra.mxu0 %v1890
    %2190 = vmatpush.bf16.msra.mxu0 %v1889
    %2191 = vmatpush.bf16.msra.mxu0 %v1888
    %2192 = vmatpush.bf16.msra.mxu0 %v1887
    %2193 = vmatmul.bf16.gmra.mxu0 %v1050
    %v2194 = vpop.f32.mrf.mxu0
    %v2195 = vadd.f32 %v2181, %v2194
    %v2196 = vpop.f32.mrf.mxu0
    %v2197 = vadd.f32 %v2183, %v2196
    %2198 = vdwg.mxu0
    %2199 = vmatpush.bf16.msra.mxu0 %v1902
    %2200 = vmatpush.bf16.msra.mxu0 %v1901
    %2201 = vmatpush.bf16.msra.mxu0 %v1900
    %2202 = vmatpush.bf16.msra.mxu0 %v1899
    %2203 = vmatpush.bf16.msra.mxu0 %v1898
    %2204 = vmatpush.bf16.msra.mxu0 %v1897
    %2205 = vmatpush.bf16.msra.mxu0 %v1896
    %2206 = vmatpush.bf16.msra.mxu0 %v1895
    %2207 = vmatmul.bf16.gmra.mxu0 %v1051
    %v2208 = vpop.f32.mrf.mxu0
    %v2209 = vadd.f32 %v2195, %v2208
    %v2210 = vpop.f32.mrf.mxu0
    %v2211 = vadd.f32 %v2197, %v2210
    %2212 = vdwg.mxu0
    %2213 = vmatpush.bf16.msra.mxu0 %v1910
    %2214 = vmatpush.bf16.msra.mxu0 %v1909
    %2215 = vmatpush.bf16.msra.mxu0 %v1908
    %2216 = vmatpush.bf16.msra.mxu0 %v1907
    %2217 = vmatpush.bf16.msra.mxu0 %v1906
    %2218 = vmatpush.bf16.msra.mxu0 %v1905
    %2219 = vmatpush.bf16.msra.mxu0 %v1904
    %2220 = vmatpush.bf16.msra.mxu0 %v1903
    %2221 = vmatmul.bf16.gmra.mxu0 %v1052
    %v2222 = vpop.f32.mrf.mxu0
    %v2223 = vadd.f32 %v2209, %v2222
    %v2224 = vpop.f32.mrf.mxu0
    %v2225 = vadd.f32 %v2211, %v2224
    %2226 = vdwg.mxu0
    %2227 = vmatpush.bf16.msra.mxu0 %v1918
    %2228 = vmatpush.bf16.msra.mxu0 %v1917
    %2229 = vmatpush.bf16.msra.mxu0 %v1916
    %2230 = vmatpush.bf16.msra.mxu0 %v1915
    %2231 = vmatpush.bf16.msra.mxu0 %v1914
    %2232 = vmatpush.bf16.msra.mxu0 %v1913
    %2233 = vmatpush.bf16.msra.mxu0 %v1912
    %2234 = vmatpush.bf16.msra.mxu0 %v1911
    %2235 = vmatmul.bf16.gmra.mxu0 %v1053
    %v2236 = vpop.f32.mrf.mxu0
    %v2237 = vadd.f32 %v2223, %v2236
    %v2238 = vpop.f32.mrf.mxu0
    %v2239 = vadd.f32 %v2225, %v2238
    %2240 = vdwg.mxu0
    %2241 = vmatpush.bf16.msra.mxu0 %v1926
    %2242 = vmatpush.bf16.msra.mxu0 %v1925
    %2243 = vmatpush.bf16.msra.mxu0 %v1924
    %2244 = vmatpush.bf16.msra.mxu0 %v1923
    %2245 = vmatpush.bf16.msra.mxu0 %v1922
    %2246 = vmatpush.bf16.msra.mxu0 %v1921
    %2247 = vmatpush.bf16.msra.mxu0 %v1920
    %2248 = vmatpush.bf16.msra.mxu0 %v1919
    %2249 = vmatmul.bf16.gmra.mxu0 %v1054
    %v2250 = vpop.f32.mrf.mxu0
    %v2251 = vadd.f32 %v2237, %v2250
    %v2252 = vpop.f32.mrf.mxu0
    %v2253 = vadd.f32 %v2239, %v2252
    %2254 = vdwg.mxu0
    %2255 = vmatpush.bf16.msra.mxu0 %v1934
    %2256 = vmatpush.bf16.msra.mxu0 %v1933
    %2257 = vmatpush.bf16.msra.mxu0 %v1932
    %2258 = vmatpush.bf16.msra.mxu0 %v1931
    %2259 = vmatpush.bf16.msra.mxu0 %v1930
    %2260 = vmatpush.bf16.msra.mxu0 %v1929
    %2261 = vmatpush.bf16.msra.mxu0 %v1928
    %2262 = vmatpush.bf16.msra.mxu0 %v1927
    %2263 = vmatmul.bf16.gmra.mxu0 %v1055
    %v2264 = vpop.f32.mrf.mxu0
    %v2265 = vadd.f32 %v2251, %v2264
    %v2266 = vpop.f32.mrf.mxu0
    %v2267 = vadd.f32 %v2253, %v2266
    %2268 = vdwg.mxu0
    %2269 = vmatpush.bf16.msra.mxu0 %v1942
    %2270 = vmatpush.bf16.msra.mxu0 %v1941
    %2271 = vmatpush.bf16.msra.mxu0 %v1940
    %2272 = vmatpush.bf16.msra.mxu0 %v1939
    %2273 = vmatpush.bf16.msra.mxu0 %v1938
    %2274 = vmatpush.bf16.msra.mxu0 %v1937
    %2275 = vmatpush.bf16.msra.mxu0 %v1936
    %2276 = vmatpush.bf16.msra.mxu0 %v1935
    %2277 = vmatmul.bf16.gmra.mxu0 %v1056
    %v2278 = vpop.f32.mrf.mxu0
    %v2279 = vadd.f32 %v2265, %v2278
    %v2280 = vpop.f32.mrf.mxu0
    %v2281 = vadd.f32 %v2267, %v2280
    %2282 = vdwg.mxu0
    %2283 = vmatpush.bf16.msra.mxu0 %v1950
    %2284 = vmatpush.bf16.msra.mxu0 %v1949
    %2285 = vmatpush.bf16.msra.mxu0 %v1948
    %2286 = vmatpush.bf16.msra.mxu0 %v1947
    %2287 = vmatpush.bf16.msra.mxu0 %v1946
    %2288 = vmatpush.bf16.msra.mxu0 %v1945
    %2289 = vmatpush.bf16.msra.mxu0 %v1944
    %2290 = vmatpush.bf16.msra.mxu0 %v1943
    %2291 = vmatmul.bf16.gmra.mxu0 %v1057
    %v2292 = vpop.f32.mrf.mxu0
    %v2293 = vadd.f32 %v2279, %v2292
    %v2294 = vpop.f32.mrf.mxu0
    %v2295 = vadd.f32 %v2281, %v2294
    %2296 = vdwg.mxu0
    %2297 = vmatpush.bf16.msra.mxu0 %v1958
    %2298 = vmatpush.bf16.msra.mxu0 %v1957
    %2299 = vmatpush.bf16.msra.mxu0 %v1956
    %2300 = vmatpush.bf16.msra.mxu0 %v1955
    %2301 = vmatpush.bf16.msra.mxu0 %v1954
    %2302 = vmatpush.bf16.msra.mxu0 %v1953
    %2303 = vmatpush.bf16.msra.mxu0 %v1952
    %2304 = vmatpush.bf16.msra.mxu0 %v1951
    %2305 = vmatmul.bf16.gmra.mxu0 %v1058
    %v2306 = vpop.f32.mrf.mxu0
    %v2307 = vadd.f32 %v2293, %v2306
    %v2308 = vpop.f32.mrf.mxu0
    %v2309 = vadd.f32 %v2295, %v2308
    %2310 = vdwg.mxu0
    %v2311 = vadd.f32 %v553, %v2307
    %v2312 = vadd.f32 %v554, %v2309
    %v2313 = vsel %vm87, %v2311, 0.0
    %2314 = vadd.xlane.f32.xlu0 %v2313
    %v2315 = vpop.xlane.xlu0 %2314
    %v2316 = vsel %vm87, %v2312, 0.0
    %2317 = vadd.xlane.f32.xlu0 %v2316
    %v2318 = vpop.xlane.xlu0 %2317
    %v2319 = vmul.f32 %v2315, %v504
    %v2320 = vmul.f32 %v2318, %v504
    %v2321 = vsub.f32 %v2311, %v2319
    %v2322 = vsub.f32 %v2312, %v2320
    %v2323 = vmul.f32 %v2321, %v2321
    %v2324 = vmul.f32 %v2322, %v2322
    %v2325 = vsel %vm87, %v2323, 0.0
    %2326 = vadd.xlane.f32.xlu0 %v2325
    %v2327 = vpop.xlane.xlu0 %2326
    %v2328 = vsel %vm87, %v2324, 0.0
    %2329 = vadd.xlane.f32.xlu0 %v2328
    %v2330 = vpop.xlane.xlu0 %2329
    %v2331 = vmul.f32 %v2327, %v504
    %v2332 = vmul.f32 %v2330, %v504
    %v2333 = vadd.f32 %v2331, 1e-05
    %v2334 = vadd.f32 %v2332, 1e-05
    %v2335 = vrsqrt.pop %v2333
    %v2336 = vmul.f32 %v2335, %v2333
    %v2337 = vmul.f32 %v2336, %v2335
    %v2338 = vmul.f32 0.5, %v2337
    %v2339 = vsub.f32 1.5, %v2338
    %v2340 = vmul.f32 %v2335, %v2339
    %vm2341 = vweird.f32 %v2333
    %vm2342 = vweird.f32 %v2335
    %vm2343 = vmor %vm2341, %vm2342
    %v2344 = vsel %vm2343, %v2335, %v2340
    %v2345 = vrsqrt.pop %v2334
    %v2346 = vmul.f32 %v2345, %v2334
    %v2347 = vmul.f32 %v2346, %v2345
    %v2348 = vmul.f32 0.5, %v2347
    %v2349 = vsub.f32 1.5, %v2348
    %v2350 = vmul.f32 %v2345, %v2349
    %vm2351 = vweird.f32 %v2334
    %vm2352 = vweird.f32 %v2345
    %vm2353 = vmor %vm2351, %vm2352
    %v2354 = vsel %vm2353, %v2345, %v2350
    %v2355 = vmul.f32 %v2321, %v2344
    %v2356 = vmul.f32 %v2322, %v2354
    %v2357 = vld [vmem:[%s13] sm:$0x1]
    %v2359 = vperm.slane %v2357, 0
    %v2361 = vmul.f32 %v2355, %v2359
    %v2362 = vmul.f32 %v2356, %v2359
    %v2363 = vld [vmem:[%s14] sm:$0x1]
    %v2365 = vperm.slane %v2363, 0
    %v2367 = vadd.f32 %v2361, %v2365
    %v2368 = vadd.f32 %v2362, %v2365
    %v2369 = vpack.c.bf16 %v2368, %v2367
    %s2370 = scalar_lea.vmem %s3, 16
    %v2371 = vld [vmem:[%s2370] sm:$0xf]
    %v2372 = vld [vmem:[%s2370 + $0x4] sm:$0xf]
    %v2373 = vld [vmem:[%s2370 + $0x8] sm:$0xf]
    %v2374 = vld [vmem:[%s2370 + $0xc] sm:$0xf]
    %s2375 = scalar_lea.vmem %s4, 1
    %v2376 = vld [vmem:[%s2375] sm:$0x1]
    %v2378 = vperm.slane %v2376, 0
    %v2384 = vunpack.c.l.b16 %v2371
    %v2385 = vunpack.c.l.b16 %v2372
    %v2386 = vunpack.c.l.b16 %v2373
    %v2387 = vunpack.c.l.b16 %v2374
    %v2388 = vpack.c.b16 %v2385, %v2384
    %v2389 = vpack.c.b16 %v2387, %v2386
    %v2393 = vsel %vm87, %v2369, 0
    %2395 = vmatpush.bf16.msra.mxu0 0
    %2396 = vmatpush.bf16.msra.mxu0 0
    %2397 = vmatpush.bf16.msra.mxu0 0
    %2398 = vmatpush.bf16.msra.mxu0 0
    %2399 = vmatpush.bf16.msra.mxu0 0
    %2400 = vmatpush.bf16.msra.mxu0 0
    %2401 = vmatpush.bf16.msra.mxu0 %v2389
    %2402 = vmatpush.bf16.msra.mxu0 %v2388
    %2403 = vmatmul.bf16.gmra.mxu0 %v2393
    %v2404 = vpop.f32.mrf.mxu0
    %v2405 = vadd.f32 %v2378, %v2404
    %v2406 = vpop.f32.mrf.mxu0
    %v2407 = vadd.f32 %v2378, %v2406
    %2408 = vdwg.mxu0
    %s2409 = scalar_lea.vmem %s5, 16
    %v2410 = vld [vmem:[%s2409] sm:$0xf]
    %v2411 = vld [vmem:[%s2409 + $0x4] sm:$0xf]
    %v2412 = vld [vmem:[%s2409 + $0x8] sm:$0xf]
    %v2413 = vld [vmem:[%s2409 + $0xc] sm:$0xf]
    %v2414 = vpack.c.bf16 %v2407, %v2405
    %2416 = vrot.lane.b32.xlu0 %v2414, 96
    %v2417 = vpop.permute.xlu0 %2416
    %v2419 = vsel %vm113, %v2414, 0
    %v2422 = vsel %vm113, %v2417, 0
    %2424 = vmatpush.bf16.xpose.msra.mxu0 0
    %2425 = vmatpush.bf16.xpose.msra.mxu0 0
    %2426 = vmatpush.bf16.xpose.msra.mxu0 0
    %2427 = vmatpush.bf16.xpose.msra.mxu0 0
    %2428 = vmatpush.bf16.xpose.msra.mxu0 0
    %2429 = vmatpush.bf16.xpose.msra.mxu0 0
    %2430 = vmatpush.bf16.xpose.msra.mxu0 0
    %2431 = vmatpush.bf16.xpose.msra.mxu0 %v2422
    %2432 = vmatmul.bf16.gmra.mxu0 %v2419
    %v2433 = vpop.f32.mrf.mxu0
    %v2434 = vadd.f32 0.0, %v2433
    %v2435 = vpop.f32.mrf.mxu0
    %v2436 = vadd.f32 0.0, %v2435
    %2437 = vdwg.mxu0
    %v2438 = vmul.f32 %v2434, 0.35355338
    %v2439 = vmul.f32 %v2436, 0.35355338
    %v2440 = vadd.f32 %v2438, %v64
    %v2441 = vadd.f32 %v2439, %v65
    %v2442 = vsel %vm138, %v2440, -inf
    %2443 = vmax.xlane.f32.xlu0 %v2442
    %v2444 = vpop.xlane.xlu0 %2443
    %v2445 = vsel %vm138, %v2441, -inf
    %2446 = vmax.xlane.f32.xlu0 %v2445
    %v2447 = vpop.xlane.xlu0 %2446
    %v2448 = vsub.f32 %v2440, %v2444
    %v2449 = vsub.f32 %v2441, %v2447
    %v2450 = vmul.f32 %v2448, 1.442695
    %v2451 = vpow.pop %v2450
    %v2452 = vmul.f32 %v2449, 1.442695
    %v2453 = vpow.pop %v2452
    %v2454 = vsel %vm138, %v2451, 0.0
    %2455 = vadd.xlane.f32.xlu0 %v2454
    %v2456 = vpop.xlane.xlu0 %2455
    %v2457 = vsel %vm138, %v2453, 0.0
    %2458 = vadd.xlane.f32.xlu0 %v2457
    %v2459 = vpop.xlane.xlu0 %2458
    %v2460 = vrcp.pop %v2456
    %v2461 = vrcp.pop %v2459
    %v2462 = vmul.f32 %v2451, %v2460
    %v2463 = vmul.f32 %v2453, %v2461
    %v2464 = vpack.c.bf16 %v2463, %v2462
    %2465 = vrot.lane.b32.xlu0 %v2414, 64
    %v2466 = vpop.permute.xlu0 %2465
    %v2469 = vsel %vm138, %v2464, 0
    %2471 = vmatpush.bf16.msra.mxu0 0
    %2472 = vmatpush.bf16.msra.mxu0 0
    %2473 = vmatpush.bf16.msra.mxu0 0
    %2474 = vmatpush.bf16.msra.mxu0 0
    %2475 = vmatpush.bf16.msra.mxu0 0
    %2476 = vmatpush.bf16.msra.mxu0 0
    %2477 = vmatpush.bf16.msra.mxu0 0
    %2478 = vmatpush.bf16.msra.mxu0 %v2466
    %2479 = vmatmul.bf16.gmra.mxu0 %v2469
    %v2480 = vpop.f32.mrf.mxu0
    %v2481 = vadd.f32 0.0, %v2480
    %v2482 = vpop.f32.mrf.mxu0
    %v2483 = vadd.f32 0.0, %v2482
    %2484 = vdwg.mxu0
    %v2485 = vpack.c.bf16 %v2483, %v2481
    %2486 = vrot.lane.b32.xlu0 %v2414, 120
    %v2487 = vpop.permute.xlu0 %2486
    %2488 = vrot.lane.b32.xlu0 %v2414, 88
    %v2489 = vpop.permute.xlu0 %2488
    %v2491 = vsel %vm113, %v2487, 0
    %v2494 = vsel %vm113, %v2489, 0
    %2496 = vmatpush.bf16.xpose.msra.mxu0 0
    %2497 = vmatpush.bf16.xpose.msra.mxu0 0
    %2498 = vmatpush.bf16.xpose.msra.mxu0 0
    %2499 = vmatpush.bf16.xpose.msra.mxu0 0
    %2500 = vmatpush.bf16.xpose.msra.mxu0 0
    %2501 = vmatpush.bf16.xpose.msra.mxu0 0
    %2502 = vmatpush.bf16.xpose.msra.mxu0 0
    %2503 = vmatpush.bf16.xpose.msra.mxu0 %v2494
    %2504 = vmatmul.bf16.gmra.mxu0 %v2491
    %v2505 = vpop.f32.mrf.mxu0
    %v2506 = vadd.f32 0.0, %v2505
    %v2507 = vpop.f32.mrf.mxu0
    %v2508 = vadd.f32 0.0, %v2507
    %2509 = vdwg.mxu0
    %v2510 = vmul.f32 %v2506, 0.35355338
    %v2511 = vmul.f32 %v2508, 0.35355338
    %v2512 = vadd.f32 %v2510, %v64
    %v2513 = vadd.f32 %v2511, %v65
    %v2514 = vsel %vm138, %v2512, -inf
    %2515 = vmax.xlane.f32.xlu0 %v2514
    %v2516 = vpop.xlane.xlu0 %2515
    %v2517 = vsel %vm138, %v2513, -inf
    %2518 = vmax.xlane.f32.xlu0 %v2517
    %v2519 = vpop.xlane.xlu0 %2518
    %v2520 = vsub.f32 %v2512, %v2516
    %v2521 = vsub.f32 %v2513, %v2519
    %v2522 = vmul.f32 %v2520, 1.442695
    %v2523 = vpow.pop %v2522
    %v2524 = vmul.f32 %v2521, 1.442695
    %v2525 = vpow.pop %v2524
    %v2526 = vsel %vm138, %v2523, 0.0
    %2527 = vadd.xlane.f32.xlu0 %v2526
    %v2528 = vpop.xlane.xlu0 %2527
    %v2529 = vsel %vm138, %v2525, 0.0
    %2530 = vadd.xlane.f32.xlu0 %v2529
    %v2531 = vpop.xlane.xlu0 %2530
    %v2532 = vrcp.pop %v2528
    %v2533 = vrcp.pop %v2531
    %v2534 = vmul.f32 %v2523, %v2532
    %v2535 = vmul.f32 %v2525, %v2533
    %v2536 = vpack.c.bf16 %v2535, %v2534
    %2537 = vrot.lane.b32.xlu0 %v2414, 56
    %v2538 = vpop.permute.xlu0 %2537
    %v2541 = vsel %vm138, %v2536, 0
    %2543 = vmatpush.bf16.msra.mxu0 0
    %2544 = vmatpush.bf16.msra.mxu0 0
    %2545 = vmatpush.bf16.msra.mxu0 0
    %2546 = vmatpush.bf16.msra.mxu0 0
    %2547 = vmatpush.bf16.msra.mxu0 0
    %2548 = vmatpush.bf16.msra.mxu0 0
    %2549 = vmatpush.bf16.msra.mxu0 0
    %2550 = vmatpush.bf16.msra.mxu0 %v2538
    %2551 = vmatmul.bf16.gmra.mxu0 %v2541
    %v2552 = vpop.f32.mrf.mxu0
    %v2553 = vadd.f32 0.0, %v2552
    %v2554 = vpop.f32.mrf.mxu0
    %v2555 = vadd.f32 0.0, %v2554
    %2556 = vdwg.mxu0
    %v2557 = vpack.c.bf16 %v2555, %v2553
    %v2559 = vsel %vm113, %v2557, 0
    %v2562 = vsel %vm258, %v2411, 0
    %2564 = vmatpush.bf16.msra.mxu0 0
    %2565 = vmatpush.bf16.msra.mxu0 0
    %2566 = vmatpush.bf16.msra.mxu0 0
    %2567 = vmatpush.bf16.msra.mxu0 0
    %2568 = vmatpush.bf16.msra.mxu0 0
    %2569 = vmatpush.bf16.msra.mxu0 0
    %2570 = vmatpush.bf16.msra.mxu0 0
    %2571 = vmatpush.bf16.msra.mxu0 %v2562
    %2572 = vmatmul.bf16.gmra.mxu0 %v2559
    %v2573 = vpop.f32.mrf.mxu0
    %v2574 = vadd.f32 0.0, %v2573
    %v2575 = vpop.f32.mrf.mxu0
    %v2576 = vadd.f32 0.0, %v2575
    %2577 = vdwg.mxu0
    %v2579 = vsel %vm113, %v2485, 0
    %v2582 = vsel %vm258, %v2410, 0
    %2584 = vmatpush.bf16.msra.mxu0 0
    %2585 = vmatpush.bf16.msra.mxu0 0
    %2586 = vmatpush.bf16.msra.mxu0 0
    %2587 = vmatpush.bf16.msra.mxu0 0
    %2588 = vmatpush.bf16.msra.mxu0 0
    %2589 = vmatpush.bf16.msra.mxu0 0
    %2590 = vmatpush.bf16.msra.mxu0 0
    %2591 = vmatpush.bf16.msra.mxu0 %v2582
    %2592 = vmatmul.bf16.gmra.mxu0 %v2579
    %v2593 = vpop.f32.mrf.mxu0
    %v2594 = vadd.f32 %v2574, %v2593
    %v2595 = vpop.f32.mrf.mxu0
    %v2596 = vadd.f32 %v2576, %v2595
    %2597 = vdwg.mxu0
    %2598 = vrot.lane.b32.xlu0 %v2414, 112
    %v2599 = vpop.permute.xlu0 %2598
    %2600 = vrot.lane.b32.xlu0 %v2414, 80
    %v2601 = vpop.permute.xlu0 %2600
    %v2603 = vsel %vm113, %v2599, 0
    %v2606 = vsel %vm113, %v2601, 0
    %2608 = vmatpush.bf16.xpose.msra.mxu0 0
    %2609 = vmatpush.bf16.xpose.msra.mxu0 0
    %2610 = vmatpush.bf16.xpose.msra.mxu0 0
    %2611 = vmatpush.bf16.xpose.msra.mxu0 0
    %2612 = vmatpush.bf16.xpose.msra.mxu0 0
    %2613 = vmatpush.bf16.xpose.msra.mxu0 0
    %2614 = vmatpush.bf16.xpose.msra.mxu0 0
    %2615 = vmatpush.bf16.xpose.msra.mxu0 %v2606
    %2616 = vmatmul.bf16.gmra.mxu0 %v2603
    %v2617 = vpop.f32.mrf.mxu0
    %v2618 = vadd.f32 0.0, %v2617
    %v2619 = vpop.f32.mrf.mxu0
    %v2620 = vadd.f32 0.0, %v2619
    %2621 = vdwg.mxu0
    %v2622 = vmul.f32 %v2618, 0.35355338
    %v2623 = vmul.f32 %v2620, 0.35355338
    %v2624 = vadd.f32 %v2622, %v64
    %v2625 = vadd.f32 %v2623, %v65
    %v2626 = vsel %vm138, %v2624, -inf
    %2627 = vmax.xlane.f32.xlu0 %v2626
    %v2628 = vpop.xlane.xlu0 %2627
    %v2629 = vsel %vm138, %v2625, -inf
    %2630 = vmax.xlane.f32.xlu0 %v2629
    %v2631 = vpop.xlane.xlu0 %2630
    %v2632 = vsub.f32 %v2624, %v2628
    %v2633 = vsub.f32 %v2625, %v2631
    %v2634 = vmul.f32 %v2632, 1.442695
    %v2635 = vpow.pop %v2634
    %v2636 = vmul.f32 %v2633, 1.442695
    %v2637 = vpow.pop %v2636
    %v2638 = vsel %vm138, %v2635, 0.0
    %2639 = vadd.xlane.f32.xlu0 %v2638
    %v2640 = vpop.xlane.xlu0 %2639
    %v2641 = vsel %vm138, %v2637, 0.0
    %2642 = vadd.xlane.f32.xlu0 %v2641
    %v2643 = vpop.xlane.xlu0 %2642
    %v2644 = vrcp.pop %v2640
    %v2645 = vrcp.pop %v2643
    %v2646 = vmul.f32 %v2635, %v2644
    %v2647 = vmul.f32 %v2637, %v2645
    %v2648 = vpack.c.bf16 %v2647, %v2646
    %2649 = vrot.lane.b32.xlu0 %v2414, 48
    %v2650 = vpop.permute.xlu0 %2649
    %v2653 = vsel %vm138, %v2648, 0
    %2655 = vmatpush.bf16.msra.mxu0 0
    %2656 = vmatpush.bf16.msra.mxu0 0
    %2657 = vmatpush.bf16.msra.mxu0 0
    %2658 = vmatpush.bf16.msra.mxu0 0
    %2659 = vmatpush.bf16.msra.mxu0 0
    %2660 = vmatpush.bf16.msra.mxu0 0
    %2661 = vmatpush.bf16.msra.mxu0 0
    %2662 = vmatpush.bf16.msra.mxu0 %v2650
    %2663 = vmatmul.bf16.gmra.mxu0 %v2653
    %v2664 = vpop.f32.mrf.mxu0
    %v2665 = vadd.f32 0.0, %v2664
    %v2666 = vpop.f32.mrf.mxu0
    %v2667 = vadd.f32 0.0, %v2666
    %2668 = vdwg.mxu0
    %v2669 = vpack.c.bf16 %v2667, %v2665
    %v2671 = vsel %vm113, %v2669, 0
    %v2674 = vsel %vm258, %v2412, 0
    %2676 = vmatpush.bf16.msra.mxu0 0
    %2677 = vmatpush.bf16.msra.mxu0 0
    %2678 = vmatpush.bf16.msra.mxu0 0
    %2679 = vmatpush.bf16.msra.mxu0 0
    %2680 = vmatpush.bf16.msra.mxu0 0
    %2681 = vmatpush.bf16.msra.mxu0 0
    %2682 = vmatpush.bf16.msra.mxu0 0
    %2683 = vmatpush.bf16.msra.mxu0 %v2674
    %2684 = vmatmul.bf16.gmra.mxu0 %v2671
    %v2685 = vpop.f32.mrf.mxu0
    %v2686 = vadd.f32 0.0, %v2685
    %v2687 = vpop.f32.mrf.mxu0
    %v2688 = vadd.f32 0.0, %v2687
    %2689 = vdwg.mxu0
    %v2690 = vadd.f32 %v2594, %v2686
    %v2691 = vadd.f32 %v2596, %v2688
    %2692 = vrot.lane.b32.xlu0 %v2414, 104
    %v2693 = vpop.permute.xlu0 %2692
    %2694 = vrot.lane.b32.xlu0 %v2414, 72
    %v2695 = vpop.permute.xlu0 %2694
    %v2697 = vsel %vm113, %v2693, 0
    %v2700 = vsel %vm113, %v2695, 0
    %2702 = vmatpush.bf16.xpose.msra.mxu0 0
    %2703 = vmatpush.bf16.xpose.msra.mxu0 0
    %2704 = vmatpush.bf16.xpose.msra.mxu0 0
    %2705 = vmatpush.bf16.xpose.msra.mxu0 0
    %2706 = vmatpush.bf16.xpose.msra.mxu0 0
    %2707 = vmatpush.bf16.xpose.msra.mxu0 0
    %2708 = vmatpush.bf16.xpose.msra.mxu0 0
    %2709 = vmatpush.bf16.xpose.msra.mxu0 %v2700
    %2710 = vmatmul.bf16.gmra.mxu0 %v2697
    %v2711 = vpop.f32.mrf.mxu0
    %v2712 = vadd.f32 0.0, %v2711
    %v2713 = vpop.f32.mrf.mxu0
    %v2714 = vadd.f32 0.0, %v2713
    %2715 = vdwg.mxu0
    %v2716 = vmul.f32 %v2712, 0.35355338
    %v2717 = vmul.f32 %v2714, 0.35355338
    %v2718 = vadd.f32 %v2716, %v64
    %v2719 = vadd.f32 %v2717, %v65
    %v2720 = vsel %vm138, %v2718, -inf
    %2721 = vmax.xlane.f32.xlu0 %v2720
    %v2722 = vpop.xlane.xlu0 %2721
    %v2723 = vsel %vm138, %v2719, -inf
    %2724 = vmax.xlane.f32.xlu0 %v2723
    %v2725 = vpop.xlane.xlu0 %2724
    %v2726 = vsub.f32 %v2718, %v2722
    %v2727 = vsub.f32 %v2719, %v2725
    %v2728 = vmul.f32 %v2726, 1.442695
    %v2729 = vpow.pop %v2728
    %v2730 = vmul.f32 %v2727, 1.442695
    %v2731 = vpow.pop %v2730
    %v2732 = vsel %vm138, %v2729, 0.0
    %2733 = vadd.xlane.f32.xlu0 %v2732
    %v2734 = vpop.xlane.xlu0 %2733
    %v2735 = vsel %vm138, %v2731, 0.0
    %2736 = vadd.xlane.f32.xlu0 %v2735
    %v2737 = vpop.xlane.xlu0 %2736
    %v2738 = vrcp.pop %v2734
    %v2739 = vrcp.pop %v2737
    %v2740 = vmul.f32 %v2729, %v2738
    %v2741 = vmul.f32 %v2731, %v2739
    %v2742 = vpack.c.bf16 %v2741, %v2740
    %2743 = vrot.lane.b32.xlu0 %v2414, 40
    %v2744 = vpop.permute.xlu0 %2743
    %v2747 = vsel %vm138, %v2742, 0
    %2749 = vmatpush.bf16.msra.mxu0 0
    %2750 = vmatpush.bf16.msra.mxu0 0
    %2751 = vmatpush.bf16.msra.mxu0 0
    %2752 = vmatpush.bf16.msra.mxu0 0
    %2753 = vmatpush.bf16.msra.mxu0 0
    %2754 = vmatpush.bf16.msra.mxu0 0
    %2755 = vmatpush.bf16.msra.mxu0 0
    %2756 = vmatpush.bf16.msra.mxu0 %v2744
    %2757 = vmatmul.bf16.gmra.mxu0 %v2747
    %v2758 = vpop.f32.mrf.mxu0
    %v2759 = vadd.f32 0.0, %v2758
    %v2760 = vpop.f32.mrf.mxu0
    %v2761 = vadd.f32 0.0, %v2760
    %2762 = vdwg.mxu0
    %v2763 = vpack.c.bf16 %v2761, %v2759
    %v2765 = vsel %vm113, %v2763, 0
    %v2768 = vsel %vm258, %v2413, 0
    %2770 = vmatpush.bf16.msra.mxu0 0
    %2771 = vmatpush.bf16.msra.mxu0 0
    %2772 = vmatpush.bf16.msra.mxu0 0
    %2773 = vmatpush.bf16.msra.mxu0 0
    %2774 = vmatpush.bf16.msra.mxu0 0
    %2775 = vmatpush.bf16.msra.mxu0 0
    %2776 = vmatpush.bf16.msra.mxu0 0
    %2777 = vmatpush.bf16.msra.mxu0 %v2768
    %2778 = vmatmul.bf16.gmra.mxu0 %v2765
    %v2779 = vpop.f32.mrf.mxu0
    %v2780 = vadd.f32 0.0, %v2779
    %v2781 = vpop.f32.mrf.mxu0
    %v2782 = vadd.f32 0.0, %v2781
    %2783 = vdwg.mxu0
    %v2784 = vadd.f32 %v2690, %v2780
    %v2785 = vadd.f32 %v2691, %v2782
    %s2786 = scalar_lea.vmem %s6, 1
    %v2787 = vld [vmem:[%s2786] sm:$0x1]
    %v2789 = vperm.slane %v2787, 0
    %v2791 = vadd.f32 %v2784, %v2789
    %v2792 = vadd.f32 %v2785, %v2789
    %v2793 = vadd.f32 %v2367, %v2791
    %v2794 = vadd.f32 %v2368, %v2792
    %v2795 = vsel %vm87, %v2793, 0.0
    %2796 = vadd.xlane.f32.xlu0 %v2795
    %v2797 = vpop.xlane.xlu0 %2796
    %v2798 = vsel %vm87, %v2794, 0.0
    %2799 = vadd.xlane.f32.xlu0 %v2798
    %v2800 = vpop.xlane.xlu0 %2799
    %v2801 = vmul.f32 %v2797, %v504
    %v2802 = vmul.f32 %v2800, %v504
    %v2803 = vsub.f32 %v2793, %v2801
    %v2804 = vsub.f32 %v2794, %v2802
    %v2805 = vmul.f32 %v2803, %v2803
    %v2806 = vmul.f32 %v2804, %v2804
    %v2807 = vsel %vm87, %v2805, 0.0
    %2808 = vadd.xlane.f32.xlu0 %v2807
    %v2809 = vpop.xlane.xlu0 %2808
    %v2810 = vsel %vm87, %v2806, 0.0
    %2811 = vadd.xlane.f32.xlu0 %v2810
    %v2812 = vpop.xlane.xlu0 %2811
    %v2813 = vmul.f32 %v2809, %v504
    %v2814 = vmul.f32 %v2812, %v504
    %v2815 = vadd.f32 %v2813, 1e-05
    %v2816 = vadd.f32 %v2814, 1e-05
    %v2817 = vrsqrt.pop %v2815
    %v2818 = vmul.f32 %v2817, %v2815
    %v2819 = vmul.f32 %v2818, %v2817
    %v2820 = vmul.f32 0.5, %v2819
    %v2821 = vsub.f32 1.5, %v2820
    %v2822 = vmul.f32 %v2817, %v2821
    %vm2823 = vweird.f32 %v2815
    %vm2824 = vweird.f32 %v2817
    %vm2825 = vmor %vm2823, %vm2824
    %v2826 = vsel %vm2825, %v2817, %v2822
    %v2827 = vrsqrt.pop %v2816
    %v2828 = vmul.f32 %v2827, %v2816
    %v2829 = vmul.f32 %v2828, %v2827
    %v2830 = vmul.f32 0.5, %v2829
    %v2831 = vsub.f32 1.5, %v2830
    %v2832 = vmul.f32 %v2827, %v2831
    %vm2833 = vweird.f32 %v2816
    %vm2834 = vweird.f32 %v2827
    %vm2835 = vmor %vm2833, %vm2834
    %v2836 = vsel %vm2835, %v2827, %v2832
    %v2837 = vmul.f32 %v2803, %v2826
    %v2838 = vmul.f32 %v2804, %v2836
    %s2839 = scalar_lea.vmem %s7, 1
    %v2840 = vld [vmem:[%s2839] sm:$0x1]
    %v2842 = vperm.slane %v2840, 0
    %v2844 = vmul.f32 %v2837, %v2842
    %v2845 = vmul.f32 %v2838, %v2842
    %s2846 = scalar_lea.vmem %s8, 1
    %v2847 = vld [vmem:[%s2846] sm:$0x1]
    %v2849 = vperm.slane %v2847, 0
    %v2851 = vadd.f32 %v2844, %v2849
    %v2852 = vadd.f32 %v2845, %v2849
    %v2853 = vpack.c.bf16 %v2852, %v2851
    %s2854 = scalar_lea.vmem %s9, 256
    %v2855 = vld [vmem:[%s2854] sm:$0xff]
    %v2856 = vld [vmem:[%s2854 + $0x8] sm:$0xff]
    %v2857 = vld [vmem:[%s2854 + $0x10] sm:$0xff]
    %v2858 = vld [vmem:[%s2854 + $0x18] sm:$0xff]
    %v2859 = vld [vmem:[%s2854 + $0x20] sm:$0xff]
    %v2860 = vld [vmem:[%s2854 + $0x28] sm:$0xff]
    %v2861 = vld [vmem:[%s2854 + $0x30] sm:$0xff]
    %v2862 = vld [vmem:[%s2854 + $0x38] sm:$0xff]
    %v2863 = vld [vmem:[%s2854 + $0x40] sm:$0xff]
    %v2864 = vld [vmem:[%s2854 + $0x48] sm:$0xff]
    %v2865 = vld [vmem:[%s2854 + $0x50] sm:$0xff]
    %v2866 = vld [vmem:[%s2854 + $0x58] sm:$0xff]
    %v2867 = vld [vmem:[%s2854 + $0x60] sm:$0xff]
    %v2868 = vld [vmem:[%s2854 + $0x68] sm:$0xff]
    %v2869 = vld [vmem:[%s2854 + $0x70] sm:$0xff]
    %v2870 = vld [vmem:[%s2854 + $0x78] sm:$0xff]
    %v2871 = vld [vmem:[%s2854 + $0x80] sm:$0xff]
    %v2872 = vld [vmem:[%s2854 + $0x88] sm:$0xff]
    %v2873 = vld [vmem:[%s2854 + $0x90] sm:$0xff]
    %v2874 = vld [vmem:[%s2854 + $0x98] sm:$0xff]
    %v2875 = vld [vmem:[%s2854 + $0xa0] sm:$0xff]
    %v2876 = vld [vmem:[%s2854 + $0xa8] sm:$0xff]
    %v2877 = vld [vmem:[%s2854 + $0xb0] sm:$0xff]
    %v2878 = vld [vmem:[%s2854 + $0xb8] sm:$0xff]
    %v2879 = vld [vmem:[%s2854 + $0xc0] sm:$0xff]
    %v2880 = vld [vmem:[%s2854 + $0xc8] sm:$0xff]
    %v2881 = vld [vmem:[%s2854 + $0xd0] sm:$0xff]
    %v2882 = vld [vmem:[%s2854 + $0xd8] sm:$0xff]
    %v2883 = vld [vmem:[%s2854 + $0xe0] sm:$0xff]
    %v2884 = vld [vmem:[%s2854 + $0xe8] sm:$0xff]
    %v2885 = vld [vmem:[%s2854 + $0xf0] sm:$0xff]
    %v2886 = vld [vmem:[%s2854 + $0xf8] sm:$0xff]
    %s2887 = scalar_lea.vmem %s10, 16
    %v2888 = vld [vmem:[%s2887] sm:$0xff]
    %v2889 = vld [vmem:[%s2887 + $0x8] sm:$0xff]
    %v2892 = vperm.slane %v2888, 0
    %v2893 = vperm.slane %v2888, 1
    %v2894 = vperm.slane %v2888, 2
    %v2895 = vperm.slane %v2888, 3
    %v2896 = vperm.slane %v2888, 4
    %v2897 = vperm.slane %v2888, 5
    %v2898 = vperm.slane %v2888, 6
    %v2899 = vperm.slane %v2888, 7
    %v2900 = vperm.slane %v2889, 0
    %v2901 = vperm.slane %v2889, 1
    %v2902 = vperm.slane %v2889, 2
    %v2903 = vperm.slane %v2889, 3
    %v2904 = vperm.slane %v2889, 4
    %v2905 = vperm.slane %v2889, 5
    %v2906 = vperm.slane %v2889, 6
    %v2907 = vperm.slane %v2889, 7
    %v2956 = vunpack.c.l.b16 %v2855
    %v2957 = vunpack.c.h.b16 %v2855
    %v2958 = vunpack.c.l.b16 %v2856
    %v2959 = vunpack.c.h.b16 %v2856
    %v2960 = vunpack.c.l.b16 %v2857
    %v2961 = vunpack.c.h.b16 %v2857
    %v2962 = vunpack.c.l.b16 %v2858
    %v2963 = vunpack.c.h.b16 %v2858
    %v2964 = vunpack.c.l.b16 %v2859
    %v2965 = vunpack.c.h.b16 %v2859
    %v2966 = vunpack.c.l.b16 %v2860
    %v2967 = vunpack.c.h.b16 %v2860
    %v2968 = vunpack.c.l.b16 %v2861
    %v2969 = vunpack.c.h.b16 %v2861
    %v2970 = vunpack.c.l.b16 %v2862
    %v2971 = vunpack.c.h.b16 %v2862
    %v2972 = vunpack.c.l.b16 %v2863
    %v2973 = vunpack.c.h.b16 %v2863
    %v2974 = vunpack.c.l.b16 %v2864
    %v2975 = vunpack.c.h.b16 %v2864
    %v2976 = vunpack.c.l.b16 %v2865
    %v2977 = vunpack.c.h.b16 %v2865
    %v2978 = vunpack.c.l.b16 %v2866
    %v2979 = vunpack.c.h.b16 %v2866
    %v2980 = vunpack.c.l.b16 %v2867
    %v2981 = vunpack.c.h.b16 %v2867
    %v2982 = vunpack.c.l.b16 %v2868
    %v2983 = vunpack.c.h.b16 %v2868
    %v2984 = vunpack.c.l.b16 %v2869
    %v2985 = vunpack.c.h.b16 %v2869
    %v2986 = vunpack.c.l.b16 %v2870
    %v2987 = vunpack.c.h.b16 %v2870
    %v2988 = vunpack.c.l.b16 %v2871
    %v2989 = vunpack.c.h.b16 %v2871
    %v2990 = vunpack.c.l.b16 %v2872
    %v2991 = vunpack.c.h.b16 %v2872
    %v2992 = vunpack.c.l.b16 %v2873
    %v2993 = vunpack.c.h.b16 %v2873
    %v2994 = vunpack.c.l.b16 %v2874
    %v2995 = vunpack.c.h.b16 %v2874
    %v2996 = vunpack.c.l.b16 %v2875
    %v2997 = vunpack.c.h.b16 %v2875
    %v2998 = vunpack.c.l.b16 %v2876
    %v2999 = vunpack.c.h.b16 %v2876
    %v3000 = vunpack.c.l.b16 %v2877
    %v3001 = vunpack.c.h.b16 %v2877
    %v3002 = vunpack.c.l.b16 %v2878
    %v3003 = vunpack.c.h.b16 %v2878
    %v3004 = vunpack.c.l.b16 %v2879
    %v3005 = vunpack.c.h.b16 %v2879
    %v3006 = vunpack.c.l.b16 %v2880
    %v3007 = vunpack.c.h.b16 %v2880
    %v3008 = vunpack.c.l.b16 %v2881
    %v3009 = vunpack.c.h.b16 %v2881
    %v3010 = vunpack.c.l.b16 %v2882
    %v3011 = vunpack.c.h.b16 %v2882
    %v3012 = vunpack.c.l.b16 %v2883
    %v3013 = vunpack.c.h.b16 %v2883
    %v3014 = vunpack.c.l.b16 %v2884
    %v3015 = vunpack.c.h.b16 %v2884
    %v3016 = vunpack.c.l.b16 %v2885
    %v3017 = vunpack.c.h.b16 %v2885
    %v3018 = vunpack.c.l.b16 %v2886
    %v3019 = vunpack.c.h.b16 %v2886
    %v3020 = vpack.c.b16 %v2972, %v2956
    %v3021 = vpack.c.b16 %v2973, %v2957
    %v3022 = vpack.c.b16 %v2974, %v2958
    %v3023 = vpack.c.b16 %v2975, %v2959
    %v3024 = vpack.c.b16 %v2976, %v2960
    %v3025 = vpack.c.b16 %v2977, %v2961
    %v3026 = vpack.c.b16 %v2978, %v2962
    %v3027 = vpack.c.b16 %v2979, %v2963
    %v3028 = vpack.c.b16 %v2980, %v2964
    %v3029 = vpack.c.b16 %v2981, %v2965
    %v3030 = vpack.c.b16 %v2982, %v2966
    %v3031 = vpack.c.b16 %v2983, %v2967
    %v3032 = vpack.c.b16 %v2984, %v2968
    %v3033 = vpack.c.b16 %v2985, %v2969
    %v3034 = vpack.c.b16 %v2986, %v2970
    %v3035 = vpack.c.b16 %v2987, %v2971
    %v3036 = vpack.c.b16 %v3004, %v2988
    %v3037 = vpack.c.b16 %v3005, %v2989
    %v3038 = vpack.c.b16 %v3006, %v2990
    %v3039 = vpack.c.b16 %v3007, %v2991
    %v3040 = vpack.c.b16 %v3008, %v2992
    %v3041 = vpack.c.b16 %v3009, %v2993
    %v3042 = vpack.c.b16 %v3010, %v2994
    %v3043 = vpack.c.b16 %v3011, %v2995
    %v3044 = vpack.c.b16 %v3012, %v2996
    %v3045 = vpack.c.b16 %v3013, %v2997
    %v3046 = vpack.c.b16 %v3014, %v2998
    %v3047 = vpack.c.b16 %v3015, %v2999
    %v3048 = vpack.c.b16 %v3016, %v3000
    %v3049 = vpack.c.b16 %v3017, %v3001
    %v3050 = vpack.c.b16 %v3018, %v3002
    %v3051 = vpack.c.b16 %v3019, %v3003
    %v3085 = vsel %vm87, %v2853, 0
    %3087 = vmatpush.bf16.msra.mxu0 0
    %3088 = vmatpush.bf16.msra.mxu0 0
    %3089 = vmatpush.bf16.msra.mxu0 0
    %3090 = vmatpush.bf16.msra.mxu0 0
    %3091 = vmatpush.bf16.msra.mxu0 0
    %3092 = vmatpush.bf16.msra.mxu0 0
    %3093 = vmatpush.bf16.msra.mxu0 %v3036
    %3094 = vmatpush.bf16.msra.mxu0 %v3020
    %3095 = vmatmul.bf16.gmra.mxu0 %v3085
    %v3096 = vpop.f32.mrf.mxu0
    %v3097 = vadd.f32 %v2892, %v3096
    %v3098 = vpop.f32.mrf.mxu0
    %v3099 = vadd.f32 %v2892, %v3098
    %3100 = vdwg.mxu0
    %3101 = vmatpush.bf16.msra.mxu0 0
    %3102 = vmatpush.bf16.msra.mxu0 0
    %3103 = vmatpush.bf16.msra.mxu0 0
    %3104 = vmatpush.bf16.msra.mxu0 0
    %3105 = vmatpush.bf16.msra.mxu0 0
    %3106 = vmatpush.bf16.msra.mxu0 0
    %3107 = vmatpush.bf16.msra.mxu0 %v3037
    %3108 = vmatpush.bf16.msra.mxu0 %v3021
    %3109 = vmatmul.bf16.gmra.mxu0 %v3085
    %v3110 = vpop.f32.mrf.mxu0
    %v3111 = vadd.f32 %v2893, %v3110
    %v3112 = vpop.f32.mrf.mxu0
    %v3113 = vadd.f32 %v2893, %v3112
    %3114 = vdwg.mxu0
    %3115 = vmatpush.bf16.msra.mxu0 0
    %3116 = vmatpush.bf16.msra.mxu0 0
    %3117 = vmatpush.bf16.msra.mxu0 0
    %3118 = vmatpush.bf16.msra.mxu0 0
    %3119 = vmatpush.bf16.msra.mxu0 0
    %3120 = vmatpush.bf16.msra.mxu0 0
    %3121 = vmatpush.bf16.msra.mxu0 %v3038
    %3122 = vmatpush.bf16.msra.mxu0 %v3022
    %3123 = vmatmul.bf16.gmra.mxu0 %v3085
    %v3124 = vpop.f32.mrf.mxu0
    %v3125 = vadd.f32 %v2894, %v3124
    %v3126 = vpop.f32.mrf.mxu0
    %v3127 = vadd.f32 %v2894, %v3126
    %3128 = vdwg.mxu0
    %3129 = vmatpush.bf16.msra.mxu0 0
    %3130 = vmatpush.bf16.msra.mxu0 0
    %3131 = vmatpush.bf16.msra.mxu0 0
    %3132 = vmatpush.bf16.msra.mxu0 0
    %3133 = vmatpush.bf16.msra.mxu0 0
    %3134 = vmatpush.bf16.msra.mxu0 0
    %3135 = vmatpush.bf16.msra.mxu0 %v3039
    %3136 = vmatpush.bf16.msra.mxu0 %v3023
    %3137 = vmatmul.bf16.gmra.mxu0 %v3085
    %v3138 = vpop.f32.mrf.mxu0
    %v3139 = vadd.f32 %v2895, %v3138
    %v3140 = vpop.f32.mrf.mxu0
    %v3141 = vadd.f32 %v2895, %v3140
    %3142 = vdwg.mxu0
    %3143 = vmatpush.bf16.msra.mxu0 0
    %3144 = vmatpush.bf16.msra.mxu0 0
    %3145 = vmatpush.bf16.msra.mxu0 0
    %3146 = vmatpush.bf16.msra.mxu0 0
    %3147 = vmatpush.bf16.msra.mxu0 0
    %3148 = vmatpush.bf16.msra.mxu0 0
    %3149 = vmatpush.bf16.msra.mxu0 %v3040
    %3150 = vmatpush.bf16.msra.mxu0 %v3024
    %3151 = vmatmul.bf16.gmra.mxu0 %v3085
    %v3152 = vpop.f32.mrf.mxu0
    %v3153 = vadd.f32 %v2896, %v3152
    %v3154 = vpop.f32.mrf.mxu0
    %v3155 = vadd.f32 %v2896, %v3154
    %3156 = vdwg.mxu0
    %3157 = vmatpush.bf16.msra.mxu0 0
    %3158 = vmatpush.bf16.msra.mxu0 0
    %3159 = vmatpush.bf16.msra.mxu0 0
    %3160 = vmatpush.bf16.msra.mxu0 0
    %3161 = vmatpush.bf16.msra.mxu0 0
    %3162 = vmatpush.bf16.msra.mxu0 0
    %3163 = vmatpush.bf16.msra.mxu0 %v3041
    %3164 = vmatpush.bf16.msra.mxu0 %v3025
    %3165 = vmatmul.bf16.gmra.mxu0 %v3085
    %v3166 = vpop.f32.mrf.mxu0
    %v3167 = vadd.f32 %v2897, %v3166
    %v3168 = vpop.f32.mrf.mxu0
    %v3169 = vadd.f32 %v2897, %v3168
    %3170 = vdwg.mxu0
    %3171 = vmatpush.bf16.msra.mxu0 0
    %3172 = vmatpush.bf16.msra.mxu0 0
    %3173 = vmatpush.bf16.msra.mxu0 0
    %3174 = vmatpush.bf16.msra.mxu0 0
    %3175 = vmatpush.bf16.msra.mxu0 0
    %3176 = vmatpush.bf16.msra.mxu0 0
    %3177 = vmatpush.bf16.msra.mxu0 %v3042
    %3178 = vmatpush.bf16.msra.mxu0 %v3026
    %3179 = vmatmul.bf16.gmra.mxu0 %v3085
    %v3180 = vpop.f32.mrf.mxu0
    %v3181 = vadd.f32 %v2898, %v3180
    %v3182 = vpop.f32.mrf.mxu0
    %v3183 = vadd.f32 %v2898, %v3182
    %3184 = vdwg.mxu0
    %3185 = vmatpush.bf16.msra.mxu0 0
    %3186 = vmatpush.bf16.msra.mxu0 0
    %3187 = vmatpush.bf16.msra.mxu0 0
    %3188 = vmatpush.bf16.msra.mxu0 0
    %3189 = vmatpush.bf16.msra.mxu0 0
    %3190 = vmatpush.bf16.msra.mxu0 0
    %3191 = vmatpush.bf16.msra.mxu0 %v3043
    %3192 = vmatpush.bf16.msra.mxu0 %v3027
    %3193 = vmatmul.bf16.gmra.mxu0 %v3085
    %v3194 = vpop.f32.mrf.mxu0
    %v3195 = vadd.f32 %v2899, %v3194
    %v3196 = vpop.f32.mrf.mxu0
    %v3197 = vadd.f32 %v2899, %v3196
    %3198 = vdwg.mxu0
    %3199 = vmatpush.bf16.msra.mxu0 0
    %3200 = vmatpush.bf16.msra.mxu0 0
    %3201 = vmatpush.bf16.msra.mxu0 0
    %3202 = vmatpush.bf16.msra.mxu0 0
    %3203 = vmatpush.bf16.msra.mxu0 0
    %3204 = vmatpush.bf16.msra.mxu0 0
    %3205 = vmatpush.bf16.msra.mxu0 %v3044
    %3206 = vmatpush.bf16.msra.mxu0 %v3028
    %3207 = vmatmul.bf16.gmra.mxu0 %v3085
    %v3208 = vpop.f32.mrf.mxu0
    %v3209 = vadd.f32 %v2900, %v3208
    %v3210 = vpop.f32.mrf.mxu0
    %v3211 = vadd.f32 %v2900, %v3210
    %3212 = vdwg.mxu0
    %3213 = vmatpush.bf16.msra.mxu0 0
    %3214 = vmatpush.bf16.msra.mxu0 0
    %3215 = vmatpush.bf16.msra.mxu0 0
    %3216 = vmatpush.bf16.msra.mxu0 0
    %3217 = vmatpush.bf16.msra.mxu0 0
    %3218 = vmatpush.bf16.msra.mxu0 0
    %3219 = vmatpush.bf16.msra.mxu0 %v3045
    %3220 = vmatpush.bf16.msra.mxu0 %v3029
    %3221 = vmatmul.bf16.gmra.mxu0 %v3085
    %v3222 = vpop.f32.mrf.mxu0
    %v3223 = vadd.f32 %v2901, %v3222
    %v3224 = vpop.f32.mrf.mxu0
    %v3225 = vadd.f32 %v2901, %v3224
    %3226 = vdwg.mxu0
    %3227 = vmatpush.bf16.msra.mxu0 0
    %3228 = vmatpush.bf16.msra.mxu0 0
    %3229 = vmatpush.bf16.msra.mxu0 0
    %3230 = vmatpush.bf16.msra.mxu0 0
    %3231 = vmatpush.bf16.msra.mxu0 0
    %3232 = vmatpush.bf16.msra.mxu0 0
    %3233 = vmatpush.bf16.msra.mxu0 %v3046
    %3234 = vmatpush.bf16.msra.mxu0 %v3030
    %3235 = vmatmul.bf16.gmra.mxu0 %v3085
    %v3236 = vpop.f32.mrf.mxu0
    %v3237 = vadd.f32 %v2902, %v3236
    %v3238 = vpop.f32.mrf.mxu0
    %v3239 = vadd.f32 %v2902, %v3238
    %3240 = vdwg.mxu0
    %3241 = vmatpush.bf16.msra.mxu0 0
    %3242 = vmatpush.bf16.msra.mxu0 0
    %3243 = vmatpush.bf16.msra.mxu0 0
    %3244 = vmatpush.bf16.msra.mxu0 0
    %3245 = vmatpush.bf16.msra.mxu0 0
    %3246 = vmatpush.bf16.msra.mxu0 0
    %3247 = vmatpush.bf16.msra.mxu0 %v3047
    %3248 = vmatpush.bf16.msra.mxu0 %v3031
    %3249 = vmatmul.bf16.gmra.mxu0 %v3085
    %v3250 = vpop.f32.mrf.mxu0
    %v3251 = vadd.f32 %v2903, %v3250
    %v3252 = vpop.f32.mrf.mxu0
    %v3253 = vadd.f32 %v2903, %v3252
    %3254 = vdwg.mxu0
    %3255 = vmatpush.bf16.msra.mxu0 0
    %3256 = vmatpush.bf16.msra.mxu0 0
    %3257 = vmatpush.bf16.msra.mxu0 0
    %3258 = vmatpush.bf16.msra.mxu0 0
    %3259 = vmatpush.bf16.msra.mxu0 0
    %3260 = vmatpush.bf16.msra.mxu0 0
    %3261 = vmatpush.bf16.msra.mxu0 %v3048
    %3262 = vmatpush.bf16.msra.mxu0 %v3032
    %3263 = vmatmul.bf16.gmra.mxu0 %v3085
    %v3264 = vpop.f32.mrf.mxu0
    %v3265 = vadd.f32 %v2904, %v3264
    %v3266 = vpop.f32.mrf.mxu0
    %v3267 = vadd.f32 %v2904, %v3266
    %3268 = vdwg.mxu0
    %3269 = vmatpush.bf16.msra.mxu0 0
    %3270 = vmatpush.bf16.msra.mxu0 0
    %3271 = vmatpush.bf16.msra.mxu0 0
    %3272 = vmatpush.bf16.msra.mxu0 0
    %3273 = vmatpush.bf16.msra.mxu0 0
    %3274 = vmatpush.bf16.msra.mxu0 0
    %3275 = vmatpush.bf16.msra.mxu0 %v3049
    %3276 = vmatpush.bf16.msra.mxu0 %v3033
    %3277 = vmatmul.bf16.gmra.mxu0 %v3085
    %v3278 = vpop.f32.mrf.mxu0
    %v3279 = vadd.f32 %v2905, %v3278
    %v3280 = vpop.f32.mrf.mxu0
    %v3281 = vadd.f32 %v2905, %v3280
    %3282 = vdwg.mxu0
    %3283 = vmatpush.bf16.msra.mxu0 0
    %3284 = vmatpush.bf16.msra.mxu0 0
    %3285 = vmatpush.bf16.msra.mxu0 0
    %3286 = vmatpush.bf16.msra.mxu0 0
    %3287 = vmatpush.bf16.msra.mxu0 0
    %3288 = vmatpush.bf16.msra.mxu0 0
    %3289 = vmatpush.bf16.msra.mxu0 %v3050
    %3290 = vmatpush.bf16.msra.mxu0 %v3034
    %3291 = vmatmul.bf16.gmra.mxu0 %v3085
    %v3292 = vpop.f32.mrf.mxu0
    %v3293 = vadd.f32 %v2906, %v3292
    %v3294 = vpop.f32.mrf.mxu0
    %v3295 = vadd.f32 %v2906, %v3294
    %3296 = vdwg.mxu0
    %3297 = vmatpush.bf16.msra.mxu0 0
    %3298 = vmatpush.bf16.msra.mxu0 0
    %3299 = vmatpush.bf16.msra.mxu0 0
    %3300 = vmatpush.bf16.msra.mxu0 0
    %3301 = vmatpush.bf16.msra.mxu0 0
    %3302 = vmatpush.bf16.msra.mxu0 0
    %3303 = vmatpush.bf16.msra.mxu0 %v3051
    %3304 = vmatpush.bf16.msra.mxu0 %v3035
    %3305 = vmatmul.bf16.gmra.mxu0 %v3085
    %v3306 = vpop.f32.mrf.mxu0
    %v3307 = vadd.f32 %v2907, %v3306
    %v3308 = vpop.f32.mrf.mxu0
    %v3309 = vadd.f32 %v2907, %v3308
    %3310 = vdwg.mxu0
    %v3311 = vmax.f32 %v3097, 0.0
    %v3312 = vmax.f32 %v3111, 0.0
    %v3313 = vmax.f32 %v3125, 0.0
    %v3314 = vmax.f32 %v3139, 0.0
    %v3315 = vmax.f32 %v3153, 0.0
    %v3316 = vmax.f32 %v3167, 0.0
    %v3317 = vmax.f32 %v3181, 0.0
    %v3318 = vmax.f32 %v3195, 0.0
    %v3319 = vmax.f32 %v3209, 0.0
    %v3320 = vmax.f32 %v3223, 0.0
    %v3321 = vmax.f32 %v3237, 0.0
    %v3322 = vmax.f32 %v3251, 0.0
    %v3323 = vmax.f32 %v3265, 0.0
    %v3324 = vmax.f32 %v3279, 0.0
    %v3325 = vmax.f32 %v3293, 0.0
    %v3326 = vmax.f32 %v3307, 0.0
    %v3327 = vmax.f32 %v3099, 0.0
    %v3328 = vmax.f32 %v3113, 0.0
    %v3329 = vmax.f32 %v3127, 0.0
    %v3330 = vmax.f32 %v3141, 0.0
    %v3331 = vmax.f32 %v3155, 0.0
    %v3332 = vmax.f32 %v3169, 0.0
    %v3333 = vmax.f32 %v3183, 0.0
    %v3334 = vmax.f32 %v3197, 0.0
    %v3335 = vmax.f32 %v3211, 0.0
    %v3336 = vmax.f32 %v3225, 0.0
    %v3337 = vmax.f32 %v3239, 0.0
    %v3338 = vmax.f32 %v3253, 0.0
    %v3339 = vmax.f32 %v3267, 0.0
    %v3340 = vmax.f32 %v3281, 0.0
    %v3341 = vmax.f32 %v3295, 0.0
    %v3342 = vmax.f32 %v3309, 0.0
    %v3343 = vpack.c.bf16 %v3327, %v3311
    %v3344 = vpack.c.bf16 %v3328, %v3312
    %v3345 = vpack.c.bf16 %v3329, %v3313
    %v3346 = vpack.c.bf16 %v3330, %v3314
    %v3347 = vpack.c.bf16 %v3331, %v3315
    %v3348 = vpack.c.bf16 %v3332, %v3316
    %v3349 = vpack.c.bf16 %v3333, %v3317
    %v3350 = vpack.c.bf16 %v3334, %v3318
    %v3351 = vpack.c.bf16 %v3335, %v3319
    %v3352 = vpack.c.bf16 %v3336, %v3320
    %v3353 = vpack.c.bf16 %v3337, %v3321
    %v3354 = vpack.c.bf16 %v3338, %v3322
    %v3355 = vpack.c.bf16 %v3339, %v3323
    %v3356 = vpack.c.bf16 %v3340, %v3324
    %v3357 = vpack.c.bf16 %v3341, %v3325
    %v3358 = vpack.c.bf16 %v3342, %v3326
    %s3359 = scalar_lea.vmem %s11, 1024
    %v3360 = vld [vmem:[%s3359] sm:$0xf]
    %v3361 = vld [vmem:[%s3359 + $0x4] sm:$0xf]
    %v3362 = vld [vmem:[%s3359 + $0x8] sm:$0xf]
    %v3363 = vld [vmem:[%s3359 + $0xc] sm:$0xf]
    %v3364 = vld [vmem:[%s3359 + $0x10] sm:$0xf]
    %v3365 = vld [vmem:[%s3359 + $0x14] sm:$0xf]
    %v3366 = vld [vmem:[%s3359 + $0x18] sm:$0xf]
    %v3367 = vld [vmem:[%s3359 + $0x1c] sm:$0xf]
    %v3368 = vld [vmem:[%s3359 + $0x20] sm:$0xf]
    %v3369 = vld [vmem:[%s3359 + $0x24] sm:$0xf]
    %v3370 = vld [vmem:[%s3359 + $0x28] sm:$0xf]
    %v3371 = vld [vmem:[%s3359 + $0x2c] sm:$0xf]
    %v3372 = vld [vmem:[%s3359 + $0x30] sm:$0xf]
    %v3373 = vld [vmem:[%s3359 + $0x34] sm:$0xf]
    %v3374 = vld [vmem:[%s3359 + $0x38] sm:$0xf]
    %v3375 = vld [vmem:[%s3359 + $0x3c] sm:$0xf]
    %v3376 = vld [vmem:[%s3359 + $0x40] sm:$0xf]
    %v3377 = vld [vmem:[%s3359 + $0x44] sm:$0xf]
    %v3378 = vld [vmem:[%s3359 + $0x48] sm:$0xf]
    %v3379 = vld [vmem:[%s3359 + $0x4c] sm:$0xf]
    %v3380 = vld [vmem:[%s3359 + $0x50] sm:$0xf]
    %v3381 = vld [vmem:[%s3359 + $0x54] sm:$0xf]
    %v3382 = vld [vmem:[%s3359 + $0x58] sm:$0xf]
    %v3383 = vld [vmem:[%s3359 + $0x5c] sm:$0xf]
    %v3384 = vld [vmem:[%s3359 + $0x60] sm:$0xf]
    %v3385 = vld [vmem:[%s3359 + $0x64] sm:$0xf]
    %v3386 = vld [vmem:[%s3359 + $0x68] sm:$0xf]
    %v3387 = vld [vmem:[%s3359 + $0x6c] sm:$0xf]
    %v3388 = vld [vmem:[%s3359 + $0x70] sm:$0xf]
    %v3389 = vld [vmem:[%s3359 + $0x74] sm:$0xf]
    %v3390 = vld [vmem:[%s3359 + $0x78] sm:$0xf]
    %v3391 = vld [vmem:[%s3359 + $0x7c] sm:$0xf]
    %v3392 = vld [vmem:[%s3359 + $0x80] sm:$0xf]
    %v3393 = vld [vmem:[%s3359 + $0x84] sm:$0xf]
    %v3394 = vld [vmem:[%s3359 + $0x88] sm:$0xf]
    %v3395 = vld [vmem:[%s3359 + $0x8c] sm:$0xf]
    %v3396 = vld [vmem:[%s3359 + $0x90] sm:$0xf]
    %v3397 = vld [vmem:[%s3359 + $0x94] sm:$0xf]
    %v3398 = vld [vmem:[%s3359 + $0x98] sm:$0xf]
    %v3399 = vld [vmem:[%s3359 + $0x9c] sm:$0xf]
    %v3400 = vld [vmem:[%s3359 + $0xa0] sm:$0xf]
    %v3401 = vld [vmem:[%s3359 + $0xa4] sm:$0xf]
    %v3402 = vld [vmem:[%s3359 + $0xa8] sm:$0xf]
    %v3403 = vld [vmem:[%s3359 + $0xac] sm:$0xf]
    %v3404 = vld [vmem:[%s3359 + $0xb0] sm:$0xf]
    %v3405 = vld [vmem:[%s3359 + $0xb4] sm:$0xf]
    %v3406 = vld [vmem:[%s3359 + $0xb8] sm:$0xf]
    %v3407 = vld [vmem:[%s3359 + $0xbc] sm:$0xf]
    %v3408 = vld [vmem:[%s3359 + $0xc0] sm:$0xf]
    %v3409 = vld [vmem:[%s3359 + $0xc4] sm:$0xf]
    %v3410 = vld [vmem:[%s3359 + $0xc8] sm:$0xf]
    %v3411 = vld [vmem:[%s3359 + $0xcc] sm:$0xf]
    %v3412 = vld [vmem:[%s3359 + $0xd0] sm:$0xf]
    %v3413 = vld [vmem:[%s3359 + $0xd4] sm:$0xf]
    %v3414 = vld [vmem:[%s3359 + $0xd8] sm:$0xf]
    %v3415 = vld [vmem:[%s3359 + $0xdc] sm:$0xf]
    %v3416 = vld [vmem:[%s3359 + $0xe0] sm:$0xf]
    %v3417 = vld [vmem:[%s3359 + $0xe4] sm:$0xf]
    %v3418 = vld [vmem:[%s3359 + $0xe8] sm:$0xf]
    %v3419 = vld [vmem:[%s3359 + $0xec] sm:$0xf]
    %v3420 = vld [vmem:[%s3359 + $0xf0] sm:$0xf]
    %v3421 = vld [vmem:[%s3359 + $0xf4] sm:$0xf]
    %v3422 = vld [vmem:[%s3359 + $0xf8] sm:$0xf]
    %v3423 = vld [vmem:[%s3359 + $0xfc] sm:$0xf]
    %v3424 = vld [vmem:[%s3359 + $0x100] sm:$0xf]
    %v3425 = vld [vmem:[%s3359 + $0x104] sm:$0xf]
    %v3426 = vld [vmem:[%s3359 + $0x108] sm:$0xf]
    %v3427 = vld [vmem:[%s3359 + $0x10c] sm:$0xf]
    %v3428 = vld [vmem:[%s3359 + $0x110] sm:$0xf]
    %v3429 = vld [vmem:[%s3359 + $0x114] sm:$0xf]
    %v3430 = vld [vmem:[%s3359 + $0x118] sm:$0xf]
    %v3431 = vld [vmem:[%s3359 + $0x11c] sm:$0xf]
    %v3432 = vld [vmem:[%s3359 + $0x120] sm:$0xf]
    %v3433 = vld [vmem:[%s3359 + $0x124] sm:$0xf]
    %v3434 = vld [vmem:[%s3359 + $0x128] sm:$0xf]
    %v3435 = vld [vmem:[%s3359 + $0x12c] sm:$0xf]
    %v3436 = vld [vmem:[%s3359 + $0x130] sm:$0xf]
    %v3437 = vld [vmem:[%s3359 + $0x134] sm:$0xf]
    %v3438 = vld [vmem:[%s3359 + $0x138] sm:$0xf]
    %v3439 = vld [vmem:[%s3359 + $0x13c] sm:$0xf]
    %v3440 = vld [vmem:[%s3359 + $0x140] sm:$0xf]
    %v3441 = vld [vmem:[%s3359 + $0x144] sm:$0xf]
    %v3442 = vld [vmem:[%s3359 + $0x148] sm:$0xf]
    %v3443 = vld [vmem:[%s3359 + $0x14c] sm:$0xf]
    %v3444 = vld [vmem:[%s3359 + $0x150] sm:$0xf]
    %v3445 = vld [vmem:[%s3359 + $0x154] sm:$0xf]
    %v3446 = vld [vmem:[%s3359 + $0x158] sm:$0xf]
    %v3447 = vld [vmem:[%s3359 + $0x15c] sm:$0xf]
    %v3448 = vld [vmem:[%s3359 + $0x160] sm:$0xf]
    %v3449 = vld [vmem:[%s3359 + $0x164] sm:$0xf]
    %v3450 = vld [vmem:[%s3359 + $0x168] sm:$0xf]
    %v3451 = vld [vmem:[%s3359 + $0x16c] sm:$0xf]
    %v3452 = vld [vmem:[%s3359 + $0x170] sm:$0xf]
    %v3453 = vld [vmem:[%s3359 + $0x174] sm:$0xf]
    %v3454 = vld [vmem:[%s3359 + $0x178] sm:$0xf]
    %v3455 = vld [vmem:[%s3359 + $0x17c] sm:$0xf]
    %v3456 = vld [vmem:[%s3359 + $0x180] sm:$0xf]
    %v3457 = vld [vmem:[%s3359 + $0x184] sm:$0xf]
    %v3458 = vld [vmem:[%s3359 + $0x188] sm:$0xf]
    %v3459 = vld [vmem:[%s3359 + $0x18c] sm:$0xf]
    %v3460 = vld [vmem:[%s3359 + $0x190] sm:$0xf]
    %v3461 = vld [vmem:[%s3359 + $0x194] sm:$0xf]
    %v3462 = vld [vmem:[%s3359 + $0x198] sm:$0xf]
    %v3463 = vld [vmem:[%s3359 + $0x19c] sm:$0xf]
    %v3464 = vld [vmem:[%s3359 + $0x1a0] sm:$0xf]
    %v3465 = vld [vmem:[%s3359 + $0x1a4] sm:$0xf]
    %v3466 = vld [vmem:[%s3359 + $0x1a8] sm:$0xf]
    %v3467 = vld [vmem:[%s3359 + $0x1ac] sm:$0xf]
    %v3468 = vld [vmem:[%s3359 + $0x1b0] sm:$0xf]
    %v3469 = vld [vmem:[%s3359 + $0x1b4] sm:$0xf]
    %v3470 = vld [vmem:[%s3359 + $0x1b8] sm:$0xf]
    %v3471 = vld [vmem:[%s3359 + $0x1bc] sm:$0xf]
    %v3472 = vld [vmem:[%s3359 + $0x1c0] sm:$0xf]
    %v3473 = vld [vmem:[%s3359 + $0x1c4] sm:$0xf]
    %v3474 = vld [vmem:[%s3359 + $0x1c8] sm:$0xf]
    %v3475 = vld [vmem:[%s3359 + $0x1cc] sm:$0xf]
    %v3476 = vld [vmem:[%s3359 + $0x1d0] sm:$0xf]
    %v3477 = vld [vmem:[%s3359 + $0x1d4] sm:$0xf]
    %v3478 = vld [vmem:[%s3359 + $0x1d8] sm:$0xf]
    %v3479 = vld [vmem:[%s3359 + $0x1dc] sm:$0xf]
    %v3480 = vld [vmem:[%s3359 + $0x1e0] sm:$0xf]
    %v3481 = vld [vmem:[%s3359 + $0x1e4] sm:$0xf]
    %v3482 = vld [vmem:[%s3359 + $0x1e8] sm:$0xf]
    %v3483 = vld [vmem:[%s3359 + $0x1ec] sm:$0xf]
    %v3484 = vld [vmem:[%s3359 + $0x1f0] sm:$0xf]
    %v3485 = vld [vmem:[%s3359 + $0x1f4] sm:$0xf]
    %v3486 = vld [vmem:[%s3359 + $0x1f8] sm:$0xf]
    %v3487 = vld [vmem:[%s3359 + $0x1fc] sm:$0xf]
    %v3488 = vld [vmem:[%s3359 + $0x200] sm:$0xf]
    %v3489 = vld [vmem:[%s3359 + $0x204] sm:$0xf]
    %v3490 = vld [vmem:[%s3359 + $0x208] sm:$0xf]
    %v3491 = vld [vmem:[%s3359 + $0x20c] sm:$0xf]
    %v3492 = vld [vmem:[%s3359 + $0x210] sm:$0xf]
    %v3493 = vld [vmem:[%s3359 + $0x214] sm:$0xf]
    %v3494 = vld [vmem:[%s3359 + $0x218] sm:$0xf]
    %v3495 = vld [vmem:[%s3359 + $0x21c] sm:$0xf]
    %v3496 = vld [vmem:[%s3359 + $0x220] sm:$0xf]
    %v3497 = vld [vmem:[%s3359 + $0x224] sm:$0xf]
    %v3498 = vld [vmem:[%s3359 + $0x228] sm:$0xf]
    %v3499 = vld [vmem:[%s3359 + $0x22c] sm:$0xf]
    %v3500 = vld [vmem:[%s3359 + $0x230] sm:$0xf]
    %v3501 = vld [vmem:[%s3359 + $0x234] sm:$0xf]
    %v3502 = vld [vmem:[%s3359 + $0x238] sm:$0xf]
    %v3503 = vld [vmem:[%s3359 + $0x23c] sm:$0xf]
    %v3504 = vld [vmem:[%s3359 + $0x240] sm:$0xf]
    %v3505 = vld [vmem:[%s3359 + $0x244] sm:$0xf]
    %v3506 = vld [vmem:[%s3359 + $0x248] sm:$0xf]
    %v3507 = vld [vmem:[%s3359 + $0x24c] sm:$0xf]
    %v3508 = vld [vmem:[%s3359 + $0x250] sm:$0xf]
    %v3509 = vld [vmem:[%s3359 + $0x254] sm:$0xf]
    %v3510 = vld [vmem:[%s3359 + $0x258] sm:$0xf]
    %v3511 = vld [vmem:[%s3359 + $0x25c] sm:$0xf]
    %v3512 = vld [vmem:[%s3359 + $0x260] sm:$0xf]
    %v3513 = vld [vmem:[%s3359 + $0x264] sm:$0xf]
    %v3514 = vld [vmem:[%s3359 + $0x268] sm:$0xf]
    %v3515 = vld [vmem:[%s3359 + $0x26c] sm:$0xf]
    %v3516 = vld [vmem:[%s3359 + $0x270] sm:$0xf]
    %v3517 = vld [vmem:[%s3359 + $0x274] sm:$0xf]
    %v3518 = vld [vmem:[%s3359 + $0x278] sm:$0xf]
    %v3519 = vld [vmem:[%s3359 + $0x27c] sm:$0xf]
    %v3520 = vld [vmem:[%s3359 + $0x280] sm:$0xf]
    %v3521 = vld [vmem:[%s3359 + $0x284] sm:$0xf]
    %v3522 = vld [vmem:[%s3359 + $0x288] sm:$0xf]
    %v3523 = vld [vmem:[%s3359 + $0x28c] sm:$0xf]
    %v3524 = vld [vmem:[%s3359 + $0x290] sm:$0xf]
    %v3525 = vld [vmem:[%s3359 + $0x294] sm:$0xf]
    %v3526 = vld [vmem:[%s3359 + $0x298] sm:$0xf]
    %v3527 = vld [vmem:[%s3359 + $0x29c] sm:$0xf]
    %v3528 = vld [vmem:[%s3359 + $0x2a0] sm:$0xf]
    %v3529 = vld [vmem:[%s3359 + $0x2a4] sm:$0xf]
    %v3530 = vld [vmem:[%s3359 + $0x2a8] sm:$0xf]
    %v3531 = vld [vmem:[%s3359 + $0x2ac] sm:$0xf]
    %v3532 = vld [vmem:[%s3359 + $0x2b0] sm:$0xf]
    %v3533 = vld [vmem:[%s3359 + $0x2b4] sm:$0xf]
    %v3534 = vld [vmem:[%s3359 + $0x2b8] sm:$0xf]
    %v3535 = vld [vmem:[%s3359 + $0x2bc] sm:$0xf]
    %v3536 = vld [vmem:[%s3359 + $0x2c0] sm:$0xf]
    %v3537 = vld [vmem:[%s3359 + $0x2c4] sm:$0xf]
    %v3538 = vld [vmem:[%s3359 + $0x2c8] sm:$0xf]
    %v3539 = vld [vmem:[%s3359 + $0x2cc] sm:$0xf]
    %v3540 = vld [vmem:[%s3359 + $0x2d0] sm:$0xf]
    %v3541 = vld [vmem:[%s3359 + $0x2d4] sm:$0xf]
    %v3542 = vld [vmem:[%s3359 + $0x2d8] sm:$0xf]
    %v3543 = vld [vmem:[%s3359 + $0x2dc] sm:$0xf]
    %v3544 = vld [vmem:[%s3359 + $0x2e0] sm:$0xf]
    %v3545 = vld [vmem:[%s3359 + $0x2e4] sm:$0xf]
    %v3546 = vld [vmem:[%s3359 + $0x2e8] sm:$0xf]
    %v3547 = vld [vmem:[%s3359 + $0x2ec] sm:$0xf]
    %v3548 = vld [vmem:[%s3359 + $0x2f0] sm:$0xf]
    %v3549 = vld [vmem:[%s3359 + $0x2f4] sm:$0xf]
    %v3550 = vld [vmem:[%s3359 + $0x2f8] sm:$0xf]
    %v3551 = vld [vmem:[%s3359 + $0x2fc] sm:$0xf]
    %v3552 = vld [vmem:[%s3359 + $0x300] sm:$0xf]
    %v3553 = vld [vmem:[%s3359 + $0x304] sm:$0xf]
    %v3554 = vld [vmem:[%s3359 + $0x308] sm:$0xf]
    %v3555 = vld [vmem:[%s3359 + $0x30c] sm:$0xf]
    %v3556 = vld [vmem:[%s3359 + $0x310] sm:$0xf]
    %v3557 = vld [vmem:[%s3359 + $0x314] sm:$0xf]
    %v3558 = vld [vmem:[%s3359 + $0x318] sm:$0xf]
    %v3559 = vld [vmem:[%s3359 + $0x31c] sm:$0xf]
    %v3560 = vld [vmem:[%s3359 + $0x320] sm:$0xf]
    %v3561 = vld [vmem:[%s3359 + $0x324] sm:$0xf]
    %v3562 = vld [vmem:[%s3359 + $0x328] sm:$0xf]
    %v3563 = vld [vmem:[%s3359 + $0x32c] sm:$0xf]
    %v3564 = vld [vmem:[%s3359 + $0x330] sm:$0xf]
    %v3565 = vld [vmem:[%s3359 + $0x334] sm:$0xf]
    %v3566 = vld [vmem:[%s3359 + $0x338] sm:$0xf]
    %v3567 = vld [vmem:[%s3359 + $0x33c] sm:$0xf]
    %v3568 = vld [vmem:[%s3359 + $0x340] sm:$0xf]
    %v3569 = vld [vmem:[%s3359 + $0x344] sm:$0xf]
    %v3570 = vld [vmem:[%s3359 + $0x348] sm:$0xf]
    %v3571 = vld [vmem:[%s3359 + $0x34c] sm:$0xf]
    %v3572 = vld [vmem:[%s3359 + $0x350] sm:$0xf]
    %v3573 = vld [vmem:[%s3359 + $0x354] sm:$0xf]
    %v3574 = vld [vmem:[%s3359 + $0x358] sm:$0xf]
    %v3575 = vld [vmem:[%s3359 + $0x35c] sm:$0xf]
    %v3576 = vld [vmem:[%s3359 + $0x360] sm:$0xf]
    %v3577 = vld [vmem:[%s3359 + $0x364] sm:$0xf]
    %v3578 = vld [vmem:[%s3359 + $0x368] sm:$0xf]
    %v3579 = vld [vmem:[%s3359 + $0x36c] sm:$0xf]
    %v3580 = vld [vmem:[%s3359 + $0x370] sm:$0xf]
    %v3581 = vld [vmem:[%s3359 + $0x374] sm:$0xf]
    %v3582 = vld [vmem:[%s3359 + $0x378] sm:$0xf]
    %v3583 = vld [vmem:[%s3359 + $0x37c] sm:$0xf]
    %v3584 = vld [vmem:[%s3359 + $0x380] sm:$0xf]
    %v3585 = vld [vmem:[%s3359 + $0x384] sm:$0xf]
    %v3586 = vld [vmem:[%s3359 + $0x388] sm:$0xf]
    %v3587 = vld [vmem:[%s3359 + $0x38c] sm:$0xf]
    %v3588 = vld [vmem:[%s3359 + $0x390] sm:$0xf]
    %v3589 = vld [vmem:[%s3359 + $0x394] sm:$0xf]
    %v3590 = vld [vmem:[%s3359 + $0x398] sm:$0xf]
    %v3591 = vld [vmem:[%s3359 + $0x39c] sm:$0xf]
    %v3592 = vld [vmem:[%s3359 + $0x3a0] sm:$0xf]
    %v3593 = vld [vmem:[%s3359 + $0x3a4] sm:$0xf]
    %v3594 = vld [vmem:[%s3359 + $0x3a8] sm:$0xf]
    %v3595 = vld [vmem:[%s3359 + $0x3ac] sm:$0xf]
    %v3596 = vld [vmem:[%s3359 + $0x3b0] sm:$0xf]
    %v3597 = vld [vmem:[%s3359 + $0x3b4] sm:$0xf]
    %v3598 = vld [vmem:[%s3359 + $0x3b8] sm:$0xf]
    %v3599 = vld [vmem:[%s3359 + $0x3bc] sm:$0xf]
    %v3600 = vld [vmem:[%s3359 + $0x3c0] sm:$0xf]
    %v3601 = vld [vmem:[%s3359 + $0x3c4] sm:$0xf]
    %v3602 = vld [vmem:[%s3359 + $0x3c8] sm:$0xf]
    %v3603 = vld [vmem:[%s3359 + $0x3cc] sm:$0xf]
    %v3604 = vld [vmem:[%s3359 + $0x3d0] sm:$0xf]
    %v3605 = vld [vmem:[%s3359 + $0x3d4] sm:$0xf]
    %v3606 = vld [vmem:[%s3359 + $0x3d8] sm:$0xf]
    %v3607 = vld [vmem:[%s3359 + $0x3dc] sm:$0xf]
    %v3608 = vld [vmem:[%s3359 + $0x3e0] sm:$0xf]
    %v3609 = vld [vmem:[%s3359 + $0x3e4] sm:$0xf]
    %v3610 = vld [vmem:[%s3359 + $0x3e8] sm:$0xf]
    %v3611 = vld [vmem:[%s3359 + $0x3ec] sm:$0xf]
    %v3612 = vld [vmem:[%s3359 + $0x3f0] sm:$0xf]
    %v3613 = vld [vmem:[%s3359 + $0x3f4] sm:$0xf]
    %v3614 = vld [vmem:[%s3359 + $0x3f8] sm:$0xf]
    %v3615 = vld [vmem:[%s3359 + $0x3fc] sm:$0xf]
    %s3616 = scalar_lea.vmem %s12, 1
    %v3617 = vld [vmem:[%s3616] sm:$0x1]
    %v3619 = vperm.slane %v3617, 0
    %v3877 = vunpack.c.l.b16 %v3360
    %v3878 = vunpack.c.l.b16 %v3361
    %v3879 = vunpack.c.l.b16 %v3362
    %v3880 = vunpack.c.l.b16 %v3363
    %v3881 = vunpack.c.l.b16 %v3364
    %v3882 = vunpack.c.l.b16 %v3365
    %v3883 = vunpack.c.l.b16 %v3366
    %v3884 = vunpack.c.l.b16 %v3367
    %v3885 = vunpack.c.l.b16 %v3368
    %v3886 = vunpack.c.l.b16 %v3369
    %v3887 = vunpack.c.l.b16 %v3370
    %v3888 = vunpack.c.l.b16 %v3371
    %v3889 = vunpack.c.l.b16 %v3372
    %v3890 = vunpack.c.l.b16 %v3373
    %v3891 = vunpack.c.l.b16 %v3374
    %v3892 = vunpack.c.l.b16 %v3375
    %v3893 = vunpack.c.l.b16 %v3376
    %v3894 = vunpack.c.l.b16 %v3377
    %v3895 = vunpack.c.l.b16 %v3378
    %v3896 = vunpack.c.l.b16 %v3379
    %v3897 = vunpack.c.l.b16 %v3380
    %v3898 = vunpack.c.l.b16 %v3381
    %v3899 = vunpack.c.l.b16 %v3382
    %v3900 = vunpack.c.l.b16 %v3383
    %v3901 = vunpack.c.l.b16 %v3384
    %v3902 = vunpack.c.l.b16 %v3385
    %v3903 = vunpack.c.l.b16 %v3386
    %v3904 = vunpack.c.l.b16 %v3387
    %v3905 = vunpack.c.l.b16 %v3388
    %v3906 = vunpack.c.l.b16 %v3389
    %v3907 = vunpack.c.l.b16 %v3390
    %v3908 = vunpack.c.l.b16 %v3391
    %v3909 = vunpack.c.l.b16 %v3392
    %v3910 = vunpack.c.l.b16 %v3393
    %v3911 = vunpack.c.l.b16 %v3394
    %v3912 = vunpack.c.l.b16 %v3395
    %v3913 = vunpack.c.l.b16 %v3396
    %v3914 = vunpack.c.l.b16 %v3397
    %v3915 = vunpack.c.l.b16 %v3398
    %v3916 = vunpack.c.l.b16 %v3399
    %v3917 = vunpack.c.l.b16 %v3400
    %v3918 = vunpack.c.l.b16 %v3401
    %v3919 = vunpack.c.l.b16 %v3402
    %v3920 = vunpack.c.l.b16 %v3403
    %v3921 = vunpack.c.l.b16 %v3404
    %v3922 = vunpack.c.l.b16 %v3405
    %v3923 = vunpack.c.l.b16 %v3406
    %v3924 = vunpack.c.l.b16 %v3407
    %v3925 = vunpack.c.l.b16 %v3408
    %v3926 = vunpack.c.l.b16 %v3409
    %v3927 = vunpack.c.l.b16 %v3410
    %v3928 = vunpack.c.l.b16 %v3411
    %v3929 = vunpack.c.l.b16 %v3412
    %v3930 = vunpack.c.l.b16 %v3413
    %v3931 = vunpack.c.l.b16 %v3414
    %v3932 = vunpack.c.l.b16 %v3415
    %v3933 = vunpack.c.l.b16 %v3416
    %v3934 = vunpack.c.l.b16 %v3417
    %v3935 = vunpack.c.l.b16 %v3418
    %v3936 = vunpack.c.l.b16 %v3419
    %v3937 = vunpack.c.l.b16 %v3420
    %v3938 = vunpack.c.l.b16 %v3421
    %v3939 = vunpack.c.l.b16 %v3422
    %v3940 = vunpack.c.l.b16 %v3423
    %v3941 = vunpack.c.l.b16 %v3424
    %v3942 = vunpack.c.l.b16 %v3425
    %v3943 = vunpack.c.l.b16 %v3426
    %v3944 = vunpack.c.l.b16 %v3427
    %v3945 = vunpack.c.l.b16 %v3428
    %v3946 = vunpack.c.l.b16 %v3429
    %v3947 = vunpack.c.l.b16 %v3430
    %v3948 = vunpack.c.l.b16 %v3431
    %v3949 = vunpack.c.l.b16 %v3432
    %v3950 = vunpack.c.l.b16 %v3433
    %v3951 = vunpack.c.l.b16 %v3434
    %v3952 = vunpack.c.l.b16 %v3435
    %v3953 = vunpack.c.l.b16 %v3436
    %v3954 = vunpack.c.l.b16 %v3437
    %v3955 = vunpack.c.l.b16 %v3438
    %v3956 = vunpack.c.l.b16 %v3439
    %v3957 = vunpack.c.l.b16 %v3440
    %v3958 = vunpack.c.l.b16 %v3441
    %v3959 = vunpack.c.l.b16 %v3442
    %v3960 = vunpack.c.l.b16 %v3443
    %v3961 = vunpack.c.l.b16 %v3444
    %v3962 = vunpack.c.l.b16 %v3445
    %v3963 = vunpack.c.l.b16 %v3446
    %v3964 = vunpack.c.l.b16 %v3447
    %v3965 = vunpack.c.l.b16 %v3448
    %v3966 = vunpack.c.l.b16 %v3449
    %v3967 = vunpack.c.l.b16 %v3450
    %v3968 = vunpack.c.l.b16 %v3451
    %v3969 = vunpack.c.l.b16 %v3452
    %v3970 = vunpack.c.l.b16 %v3453
    %v3971 = vunpack.c.l.b16 %v3454
    %v3972 = vunpack.c.l.b16 %v3455
    %v3973 = vunpack.c.l.b16 %v3456
    %v3974 = vunpack.c.l.b16 %v3457
    %v3975 = vunpack.c.l.b16 %v3458
    %v3976 = vunpack.c.l.b16 %v3459
    %v3977 = vunpack.c.l.b16 %v3460
    %v3978 = vunpack.c.l.b16 %v3461
    %v3979 = vunpack.c.l.b16 %v3462
    %v3980 = vunpack.c.l.b16 %v3463
    %v3981 = vunpack.c.l.b16 %v3464
    %v3982 = vunpack.c.l.b16 %v3465
    %v3983 = vunpack.c.l.b16 %v3466
    %v3984 = vunpack.c.l.b16 %v3467
    %v3985 = vunpack.c.l.b16 %v3468
    %v3986 = vunpack.c.l.b16 %v3469
    %v3987 = vunpack.c.l.b16 %v3470
    %v3988 = vunpack.c.l.b16 %v3471
    %v3989 = vunpack.c.l.b16 %v3472
    %v3990 = vunpack.c.l.b16 %v3473
    %v3991 = vunpack.c.l.b16 %v3474
    %v3992 = vunpack.c.l.b16 %v3475
    %v3993 = vunpack.c.l.b16 %v3476
    %v3994 = vunpack.c.l.b16 %v3477
    %v3995 = vunpack.c.l.b16 %v3478
    %v3996 = vunpack.c.l.b16 %v3479
    %v3997 = vunpack.c.l.b16 %v3480
    %v3998 = vunpack.c.l.b16 %v3481
    %v3999 = vunpack.c.l.b16 %v3482
    %v4000 = vunpack.c.l.b16 %v3483
    %v4001 = vunpack.c.l.b16 %v3484
    %v4002 = vunpack.c.l.b16 %v3485
    %v4003 = vunpack.c.l.b16 %v3486
    %v4004 = vunpack.c.l.b16 %v3487
    %v4005 = vunpack.c.l.b16 %v3488
    %v4006 = vunpack.c.l.b16 %v3489
    %v4007 = vunpack.c.l.b16 %v3490
    %v4008 = vunpack.c.l.b16 %v3491
    %v4009 = vunpack.c.l.b16 %v3492
    %v4010 = vunpack.c.l.b16 %v3493
    %v4011 = vunpack.c.l.b16 %v3494
    %v4012 = vunpack.c.l.b16 %v3495
    %v4013 = vunpack.c.l.b16 %v3496
    %v4014 = vunpack.c.l.b16 %v3497
    %v4015 = vunpack.c.l.b16 %v3498
    %v4016 = vunpack.c.l.b16 %v3499
    %v4017 = vunpack.c.l.b16 %v3500
    %v4018 = vunpack.c.l.b16 %v3501
    %v4019 = vunpack.c.l.b16 %v3502
    %v4020 = vunpack.c.l.b16 %v3503
    %v4021 = vunpack.c.l.b16 %v3504
    %v4022 = vunpack.c.l.b16 %v3505
    %v4023 = vunpack.c.l.b16 %v3506
    %v4024 = vunpack.c.l.b16 %v3507
    %v4025 = vunpack.c.l.b16 %v3508
    %v4026 = vunpack.c.l.b16 %v3509
    %v4027 = vunpack.c.l.b16 %v3510
    %v4028 = vunpack.c.l.b16 %v3511
    %v4029 = vunpack.c.l.b16 %v3512
    %v4030 = vunpack.c.l.b16 %v3513
    %v4031 = vunpack.c.l.b16 %v3514
    %v4032 = vunpack.c.l.b16 %v3515
    %v4033 = vunpack.c.l.b16 %v3516
    %v4034 = vunpack.c.l.b16 %v3517
    %v4035 = vunpack.c.l.b16 %v3518
    %v4036 = vunpack.c.l.b16 %v3519
    %v4037 = vunpack.c.l.b16 %v3520
    %v4038 = vunpack.c.l.b16 %v3521
    %v4039 = vunpack.c.l.b16 %v3522
    %v4040 = vunpack.c.l.b16 %v3523
    %v4041 = vunpack.c.l.b16 %v3524
    %v4042 = vunpack.c.l.b16 %v3525
    %v4043 = vunpack.c.l.b16 %v3526
    %v4044 = vunpack.c.l.b16 %v3527
    %v4045 = vunpack.c.l.b16 %v3528
    %v4046 = vunpack.c.l.b16 %v3529
    %v4047 = vunpack.c.l.b16 %v3530
    %v4048 = vunpack.c.l.b16 %v3531
    %v4049 = vunpack.c.l.b16 %v3532
    %v4050 = vunpack.c.l.b16 %v3533
    %v4051 = vunpack.c.l.b16 %v3534
    %v4052 = vunpack.c.l.b16 %v3535
    %v4053 = vunpack.c.l.b16 %v3536
    %v4054 = vunpack.c.l.b16 %v3537
    %v4055 = vunpack.c.l.b16 %v3538
    %v4056 = vunpack.c.l.b16 %v3539
    %v4057 = vunpack.c.l.b16 %v3540
    %v4058 = vunpack.c.l.b16 %v3541
    %v4059 = vunpack.c.l.b16 %v3542
    %v4060 = vunpack.c.l.b16 %v3543
    %v4061 = vunpack.c.l.b16 %v3544
    %v4062 = vunpack.c.l.b16 %v3545
    %v4063 = vunpack.c.l.b16 %v3546
    %v4064 = vunpack.c.l.b16 %v3547
    %v4065 = vunpack.c.l.b16 %v3548
    %v4066 = vunpack.c.l.b16 %v3549
    %v4067 = vunpack.c.l.b16 %v3550
    %v4068 = vunpack.c.l.b16 %v3551
    %v4069 = vunpack.c.l.b16 %v3552
    %v4070 = vunpack.c.l.b16 %v3553
    %v4071 = vunpack.c.l.b16 %v3554
    %v4072 = vunpack.c.l.b16 %v3555
    %v4073 = vunpack.c.l.b16 %v3556
    %v4074 = vunpack.c.l.b16 %v3557
    %v4075 = vunpack.c.l.b16 %v3558
    %v4076 = vunpack.c.l.b16 %v3559
    %v4077 = vunpack.c.l.b16 %v3560
    %v4078 = vunpack.c.l.b16 %v3561
    %v4079 = vunpack.c.l.b16 %v3562
    %v4080 = vunpack.c.l.b16 %v3563
    %v4081 = vunpack.c.l.b16 %v3564
    %v4082 = vunpack.c.l.b16 %v3565
    %v4083 = vunpack.c.l.b16 %v3566
    %v4084 = vunpack.c.l.b16 %v3567
    %v4085 = vunpack.c.l.b16 %v3568
    %v4086 = vunpack.c.l.b16 %v3569
    %v4087 = vunpack.c.l.b16 %v3570
    %v4088 = vunpack.c.l.b16 %v3571
    %v4089 = vunpack.c.l.b16 %v3572
    %v4090 = vunpack.c.l.b16 %v3573
    %v4091 = vunpack.c.l.b16 %v3574
    %v4092 = vunpack.c.l.b16 %v3575
    %v4093 = vunpack.c.l.b16 %v3576
    %v4094 = vunpack.c.l.b16 %v3577
    %v4095 = vunpack.c.l.b16 %v3578
    %v4096 = vunpack.c.l.b16 %v3579
    %v4097 = vunpack.c.l.b16 %v3580
    %v4098 = vunpack.c.l.b16 %v3581
    %v4099 = vunpack.c.l.b16 %v3582
    %v4100 = vunpack.c.l.b16 %v3583
    %v4101 = vunpack.c.l.b16 %v3584
    %v4102 = vunpack.c.l.b16 %v3585
    %v4103 = vunpack.c.l.b16 %v3586
    %v4104 = vunpack.c.l.b16 %v3587
    %v4105 = vunpack.c.l.b16 %v3588
    %v4106 = vunpack.c.l.b16 %v3589
    %v4107 = vunpack.c.l.b16 %v3590
    %v4108 = vunpack.c.l.b16 %v3591
    %v4109 = vunpack.c.l.b16 %v3592
    %v4110 = vunpack.c.l.b16 %v3593
    %v4111 = vunpack.c.l.b16 %v3594
    %v4112 = vunpack.c.l.b16 %v3595
    %v4113 = vunpack.c.l.b16 %v3596
    %v4114 = vunpack.c.l.b16 %v3597
    %v4115 = vunpack.c.l.b16 %v3598
    %v4116 = vunpack.c.l.b16 %v3599
    %v4117 = vunpack.c.l.b16 %v3600
    %v4118 = vunpack.c.l.b16 %v3601
    %v4119 = vunpack.c.l.b16 %v3602
    %v4120 = vunpack.c.l.b16 %v3603
    %v4121 = vunpack.c.l.b16 %v3604
    %v4122 = vunpack.c.l.b16 %v3605
    %v4123 = vunpack.c.l.b16 %v3606
    %v4124 = vunpack.c.l.b16 %v3607
    %v4125 = vunpack.c.l.b16 %v3608
    %v4126 = vunpack.c.l.b16 %v3609
    %v4127 = vunpack.c.l.b16 %v3610
    %v4128 = vunpack.c.l.b16 %v3611
    %v4129 = vunpack.c.l.b16 %v3612
    %v4130 = vunpack.c.l.b16 %v3613
    %v4131 = vunpack.c.l.b16 %v3614
    %v4132 = vunpack.c.l.b16 %v3615
    %v4133 = vpack.c.b16 %v3878, %v3877
    %v4134 = vpack.c.b16 %v3880, %v3879
    %v4135 = vpack.c.b16 %v3882, %v3881
    %v4136 = vpack.c.b16 %v3884, %v3883
    %v4137 = vpack.c.b16 %v3886, %v3885
    %v4138 = vpack.c.b16 %v3888, %v3887
    %v4139 = vpack.c.b16 %v3890, %v3889
    %v4140 = vpack.c.b16 %v3892, %v3891
    %v4141 = vpack.c.b16 %v3894, %v3893
    %v4142 = vpack.c.b16 %v3896, %v3895
    %v4143 = vpack.c.b16 %v3898, %v3897
    %v4144 = vpack.c.b16 %v3900, %v3899
    %v4145 = vpack.c.b16 %v3902, %v3901
    %v4146 = vpack.c.b16 %v3904, %v3903
    %v4147 = vpack.c.b16 %v3906, %v3905
    %v4148 = vpack.c.b16 %v3908, %v3907
    %v4149 = vpack.c.b16 %v3910, %v3909
    %v4150 = vpack.c.b16 %v3912, %v3911
    %v4151 = vpack.c.b16 %v3914, %v3913
    %v4152 = vpack.c.b16 %v3916, %v3915
    %v4153 = vpack.c.b16 %v3918, %v3917
    %v4154 = vpack.c.b16 %v3920, %v3919
    %v4155 = vpack.c.b16 %v3922, %v3921
    %v4156 = vpack.c.b16 %v3924, %v3923
    %v4157 = vpack.c.b16 %v3926, %v3925
    %v4158 = vpack.c.b16 %v3928, %v3927
    %v4159 = vpack.c.b16 %v3930, %v3929
    %v4160 = vpack.c.b16 %v3932, %v3931
    %v4161 = vpack.c.b16 %v3934, %v3933
    %v4162 = vpack.c.b16 %v3936, %v3935
    %v4163 = vpack.c.b16 %v3938, %v3937
    %v4164 = vpack.c.b16 %v3940, %v3939
    %v4165 = vpack.c.b16 %v3942, %v3941
    %v4166 = vpack.c.b16 %v3944, %v3943
    %v4167 = vpack.c.b16 %v3946, %v3945
    %v4168 = vpack.c.b16 %v3948, %v3947
    %v4169 = vpack.c.b16 %v3950, %v3949
    %v4170 = vpack.c.b16 %v3952, %v3951
    %v4171 = vpack.c.b16 %v3954, %v3953
    %v4172 = vpack.c.b16 %v3956, %v3955
    %v4173 = vpack.c.b16 %v3958, %v3957
    %v4174 = vpack.c.b16 %v3960, %v3959
    %v4175 = vpack.c.b16 %v3962, %v3961
    %v4176 = vpack.c.b16 %v3964, %v3963
    %v4177 = vpack.c.b16 %v3966, %v3965
    %v4178 = vpack.c.b16 %v3968, %v3967
    %v4179 = vpack.c.b16 %v3970, %v3969
    %v4180 = vpack.c.b16 %v3972, %v3971
    %v4181 = vpack.c.b16 %v3974, %v3973
    %v4182 = vpack.c.b16 %v3976, %v3975
    %v4183 = vpack.c.b16 %v3978, %v3977
    %v4184 = vpack.c.b16 %v3980, %v3979
    %v4185 = vpack.c.b16 %v3982, %v3981
    %v4186 = vpack.c.b16 %v3984, %v3983
    %v4187 = vpack.c.b16 %v3986, %v3985
    %v4188 = vpack.c.b16 %v3988, %v3987
    %v4189 = vpack.c.b16 %v3990, %v3989
    %v4190 = vpack.c.b16 %v3992, %v3991
    %v4191 = vpack.c.b16 %v3994, %v3993
    %v4192 = vpack.c.b16 %v3996, %v3995
    %v4193 = vpack.c.b16 %v3998, %v3997
    %v4194 = vpack.c.b16 %v4000, %v3999
    %v4195 = vpack.c.b16 %v4002, %v4001
    %v4196 = vpack.c.b16 %v4004, %v4003
    %v4197 = vpack.c.b16 %v4006, %v4005
    %v4198 = vpack.c.b16 %v4008, %v4007
    %v4199 = vpack.c.b16 %v4010, %v4009
    %v4200 = vpack.c.b16 %v4012, %v4011
    %v4201 = vpack.c.b16 %v4014, %v4013
    %v4202 = vpack.c.b16 %v4016, %v4015
    %v4203 = vpack.c.b16 %v4018, %v4017
    %v4204 = vpack.c.b16 %v4020, %v4019
    %v4205 = vpack.c.b16 %v4022, %v4021
    %v4206 = vpack.c.b16 %v4024, %v4023
    %v4207 = vpack.c.b16 %v4026, %v4025
    %v4208 = vpack.c.b16 %v4028, %v4027
    %v4209 = vpack.c.b16 %v4030, %v4029
    %v4210 = vpack.c.b16 %v4032, %v4031
    %v4211 = vpack.c.b16 %v4034, %v4033
    %v4212 = vpack.c.b16 %v4036, %v4035
    %v4213 = vpack.c.b16 %v4038, %v4037
    %v4214 = vpack.c.b16 %v4040, %v4039
    %v4215 = vpack.c.b16 %v4042, %v4041
    %v4216 = vpack.c.b16 %v4044, %v4043
    %v4217 = vpack.c.b16 %v4046, %v4045
    %v4218 = vpack.c.b16 %v4048, %v4047
    %v4219 = vpack.c.b16 %v4050, %v4049
    %v4220 = vpack.c.b16 %v4052, %v4051
    %v4221 = vpack.c.b16 %v4054, %v4053
    %v4222 = vpack.c.b16 %v4056, %v4055
    %v4223 = vpack.c.b16 %v4058, %v4057
    %v4224 = vpack.c.b16 %v4060, %v4059
    %v4225 = vpack.c.b16 %v4062, %v4061
    %v4226 = vpack.c.b16 %v4064, %v4063
    %v4227 = vpack.c.b16 %v4066, %v4065
    %v4228 = vpack.c.b16 %v4068, %v4067
    %v4229 = vpack.c.b16 %v4070, %v4069
    %v4230 = vpack.c.b16 %v4072, %v4071
    %v4231 = vpack.c.b16 %v4074, %v4073
    %v4232 = vpack.c.b16 %v4076, %v4075
    %v4233 = vpack.c.b16 %v4078, %v4077
    %v4234 = vpack.c.b16 %v4080, %v4079
    %v4235 = vpack.c.b16 %v4082, %v4081
    %v4236 = vpack.c.b16 %v4084, %v4083
    %v4237 = vpack.c.b16 %v4086, %v4085
    %v4238 = vpack.c.b16 %v4088, %v4087
    %v4239 = vpack.c.b16 %v4090, %v4089
    %v4240 = vpack.c.b16 %v4092, %v4091
    %v4241 = vpack.c.b16 %v4094, %v4093
    %v4242 = vpack.c.b16 %v4096, %v4095
    %v4243 = vpack.c.b16 %v4098, %v4097
    %v4244 = vpack.c.b16 %v4100, %v4099
    %v4245 = vpack.c.b16 %v4102, %v4101
    %v4246 = vpack.c.b16 %v4104, %v4103
    %v4247 = vpack.c.b16 %v4106, %v4105
    %v4248 = vpack.c.b16 %v4108, %v4107
    %v4249 = vpack.c.b16 %v4110, %v4109
    %v4250 = vpack.c.b16 %v4112, %v4111
    %v4251 = vpack.c.b16 %v4114, %v4113
    %v4252 = vpack.c.b16 %v4116, %v4115
    %v4253 = vpack.c.b16 %v4118, %v4117
    %v4254 = vpack.c.b16 %v4120, %v4119
    %v4255 = vpack.c.b16 %v4122, %v4121
    %v4256 = vpack.c.b16 %v4124, %v4123
    %v4257 = vpack.c.b16 %v4126, %v4125
    %v4258 = vpack.c.b16 %v4128, %v4127
    %v4259 = vpack.c.b16 %v4130, %v4129
    %v4260 = vpack.c.b16 %v4132, %v4131
    %4389 = vmatpush.bf16.msra.mxu0 %v4140
    %4390 = vmatpush.bf16.msra.mxu0 %v4139
    %4391 = vmatpush.bf16.msra.mxu0 %v4138
    %4392 = vmatpush.bf16.msra.mxu0 %v4137
    %4393 = vmatpush.bf16.msra.mxu0 %v4136
    %4394 = vmatpush.bf16.msra.mxu0 %v4135
    %4395 = vmatpush.bf16.msra.mxu0 %v4134
    %4396 = vmatpush.bf16.msra.mxu0 %v4133
    %4397 = vmatmul.bf16.gmra.mxu0 %v3343
    %v4398 = vpop.f32.mrf.mxu0
    %v4399 = vadd.f32 %v3619, %v4398
    %v4400 = vpop.f32.mrf.mxu0
    %v4401 = vadd.f32 %v3619, %v4400
    %4402 = vdwg.mxu0
    %4403 = vmatpush.bf16.msra.mxu0 %v4148
    %4404 = vmatpush.bf16.msra.mxu0 %v4147
    %4405 = vmatpush.bf16.msra.mxu0 %v4146
    %4406 = vmatpush.bf16.msra.mxu0 %v4145
    %4407 = vmatpush.bf16.msra.mxu0 %v4144
    %4408 = vmatpush.bf16.msra.mxu0 %v4143
    %4409 = vmatpush.bf16.msra.mxu0 %v4142
    %4410 = vmatpush.bf16.msra.mxu0 %v4141
    %4411 = vmatmul.bf16.gmra.mxu0 %v3344
    %v4412 = vpop.f32.mrf.mxu0
    %v4413 = vadd.f32 %v4399, %v4412
    %v4414 = vpop.f32.mrf.mxu0
    %v4415 = vadd.f32 %v4401, %v4414
    %4416 = vdwg.mxu0
    %4417 = vmatpush.bf16.msra.mxu0 %v4156
    %4418 = vmatpush.bf16.msra.mxu0 %v4155
    %4419 = vmatpush.bf16.msra.mxu0 %v4154
    %4420 = vmatpush.bf16.msra.mxu0 %v4153
    %4421 = vmatpush.bf16.msra.mxu0 %v4152
    %4422 = vmatpush.bf16.msra.mxu0 %v4151
    %4423 = vmatpush.bf16.msra.mxu0 %v4150
    %4424 = vmatpush.bf16.msra.mxu0 %v4149
    %4425 = vmatmul.bf16.gmra.mxu0 %v3345
    %v4426 = vpop.f32.mrf.mxu0
    %v4427 = vadd.f32 %v4413, %v4426
    %v4428 = vpop.f32.mrf.mxu0
    %v4429 = vadd.f32 %v4415, %v4428
    %4430 = vdwg.mxu0
    %4431 = vmatpush.bf16.msra.mxu0 %v4164
    %4432 = vmatpush.bf16.msra.mxu0 %v4163
    %4433 = vmatpush.bf16.msra.mxu0 %v4162
    %4434 = vmatpush.bf16.msra.mxu0 %v4161
    %4435 = vmatpush.bf16.msra.mxu0 %v4160
    %4436 = vmatpush.bf16.msra.mxu0 %v4159
    %4437 = vmatpush.bf16.msra.mxu0 %v4158
    %4438 = vmatpush.bf16.msra.mxu0 %v4157
    %4439 = vmatmul.bf16.gmra.mxu0 %v3346
    %v4440 = vpop.f32.mrf.mxu0
    %v4441 = vadd.f32 %v4427, %v4440
    %v4442 = vpop.f32.mrf.mxu0
    %v4443 = vadd.f32 %v4429, %v4442
    %4444 = vdwg.mxu0
    %4445 = vmatpush.bf16.msra.mxu0 %v4172
    %4446 = vmatpush.bf16.msra.mxu0 %v4171
    %4447 = vmatpush.bf16.msra.mxu0 %v4170
    %4448 = vmatpush.bf16.msra.mxu0 %v4169
    %4449 = vmatpush.bf16.msra.mxu0 %v4168
    %4450 = vmatpush.bf16.msra.mxu0 %v4167
    %4451 = vmatpush.bf16.msra.mxu0 %v4166
    %4452 = vmatpush.bf16.msra.mxu0 %v4165
    %4453 = vmatmul.bf16.gmra.mxu0 %v3347
    %v4454 = vpop.f32.mrf.mxu0
    %v4455 = vadd.f32 %v4441, %v4454
    %v4456 = vpop.f32.mrf.mxu0
    %v4457 = vadd.f32 %v4443, %v4456
    %4458 = vdwg.mxu0
    %4459 = vmatpush.bf16.msra.mxu0 %v4180
    %4460 = vmatpush.bf16.msra.mxu0 %v4179
    %4461 = vmatpush.bf16.msra.mxu0 %v4178
    %4462 = vmatpush.bf16.msra.mxu0 %v4177
    %4463 = vmatpush.bf16.msra.mxu0 %v4176
    %4464 = vmatpush.bf16.msra.mxu0 %v4175
    %4465 = vmatpush.bf16.msra.mxu0 %v4174
    %4466 = vmatpush.bf16.msra.mxu0 %v4173
    %4467 = vmatmul.bf16.gmra.mxu0 %v3348
    %v4468 = vpop.f32.mrf.mxu0
    %v4469 = vadd.f32 %v4455, %v4468
    %v4470 = vpop.f32.mrf.mxu0
    %v4471 = vadd.f32 %v4457, %v4470
    %4472 = vdwg.mxu0
    %4473 = vmatpush.bf16.msra.mxu0 %v4188
    %4474 = vmatpush.bf16.msra.mxu0 %v4187
    %4475 = vmatpush.bf16.msra.mxu0 %v4186
    %4476 = vmatpush.bf16.msra.mxu0 %v4185
    %4477 = vmatpush.bf16.msra.mxu0 %v4184
    %4478 = vmatpush.bf16.msra.mxu0 %v4183
    %4479 = vmatpush.bf16.msra.mxu0 %v4182
    %4480 = vmatpush.bf16.msra.mxu0 %v4181
    %4481 = vmatmul.bf16.gmra.mxu0 %v3349
    %v4482 = vpop.f32.mrf.mxu0
    %v4483 = vadd.f32 %v4469, %v4482
    %v4484 = vpop.f32.mrf.mxu0
    %v4485 = vadd.f32 %v4471, %v4484
    %4486 = vdwg.mxu0
    %4487 = vmatpush.bf16.msra.mxu0 %v4196
    %4488 = vmatpush.bf16.msra.mxu0 %v4195
    %4489 = vmatpush.bf16.msra.mxu0 %v4194
    %4490 = vmatpush.bf16.msra.mxu0 %v4193
    %4491 = vmatpush.bf16.msra.mxu0 %v4192
    %4492 = vmatpush.bf16.msra.mxu0 %v4191
    %4493 = vmatpush.bf16.msra.mxu0 %v4190
    %4494 = vmatpush.bf16.msra.mxu0 %v4189
    %4495 = vmatmul.bf16.gmra.mxu0 %v3350
    %v4496 = vpop.f32.mrf.mxu0
    %v4497 = vadd.f32 %v4483, %v4496
    %v4498 = vpop.f32.mrf.mxu0
    %v4499 = vadd.f32 %v4485, %v4498
    %4500 = vdwg.mxu0
    %4501 = vmatpush.bf16.msra.mxu0 %v4204
    %4502 = vmatpush.bf16.msra.mxu0 %v4203
    %4503 = vmatpush.bf16.msra.mxu0 %v4202
    %4504 = vmatpush.bf16.msra.mxu0 %v4201
    %4505 = vmatpush.bf16.msra.mxu0 %v4200
    %4506 = vmatpush.bf16.msra.mxu0 %v4199
    %4507 = vmatpush.bf16.msra.mxu0 %v4198
    %4508 = vmatpush.bf16.msra.mxu0 %v4197
    %4509 = vmatmul.bf16.gmra.mxu0 %v3351
    %v4510 = vpop.f32.mrf.mxu0
    %v4511 = vadd.f32 %v4497, %v4510
    %v4512 = vpop.f32.mrf.mxu0
    %v4513 = vadd.f32 %v4499, %v4512
    %4514 = vdwg.mxu0
    %4515 = vmatpush.bf16.msra.mxu0 %v4212
    %4516 = vmatpush.bf16.msra.mxu0 %v4211
    %4517 = vmatpush.bf16.msra.mxu0 %v4210
    %4518 = vmatpush.bf16.msra.mxu0 %v4209
    %4519 = vmatpush.bf16.msra.mxu0 %v4208
    %4520 = vmatpush.bf16.msra.mxu0 %v4207
    %4521 = vmatpush.bf16.msra.mxu0 %v4206
    %4522 = vmatpush.bf16.msra.mxu0 %v4205
    %4523 = vmatmul.bf16.gmra.mxu0 %v3352
    %v4524 = vpop.f32.mrf.mxu0
    %v4525 = vadd.f32 %v4511, %v4524
    %v4526 = vpop.f32.mrf.mxu0
    %v4527 = vadd.f32 %v4513, %v4526
    %4528 = vdwg.mxu0
    %4529 = vmatpush.bf16.msra.mxu0 %v4220
    %4530 = vmatpush.bf16.msra.mxu0 %v4219
    %4531 = vmatpush.bf16.msra.mxu0 %v4218
    %4532 = vmatpush.bf16.msra.mxu0 %v4217
    %4533 = vmatpush.bf16.msra.mxu0 %v4216
    %4534 = vmatpush.bf16.msra.mxu0 %v4215
    %4535 = vmatpush.bf16.msra.mxu0 %v4214
    %4536 = vmatpush.bf16.msra.mxu0 %v4213
    %4537 = vmatmul.bf16.gmra.mxu0 %v3353
    %v4538 = vpop.f32.mrf.mxu0
    %v4539 = vadd.f32 %v4525, %v4538
    %v4540 = vpop.f32.mrf.mxu0
    %v4541 = vadd.f32 %v4527, %v4540
    %4542 = vdwg.mxu0
    %4543 = vmatpush.bf16.msra.mxu0 %v4228
    %4544 = vmatpush.bf16.msra.mxu0 %v4227
    %4545 = vmatpush.bf16.msra.mxu0 %v4226
    %4546 = vmatpush.bf16.msra.mxu0 %v4225
    %4547 = vmatpush.bf16.msra.mxu0 %v4224
    %4548 = vmatpush.bf16.msra.mxu0 %v4223
    %4549 = vmatpush.bf16.msra.mxu0 %v4222
    %4550 = vmatpush.bf16.msra.mxu0 %v4221
    %4551 = vmatmul.bf16.gmra.mxu0 %v3354
    %v4552 = vpop.f32.mrf.mxu0
    %v4553 = vadd.f32 %v4539, %v4552
    %v4554 = vpop.f32.mrf.mxu0
    %v4555 = vadd.f32 %v4541, %v4554
    %4556 = vdwg.mxu0
    %4557 = vmatpush.bf16.msra.mxu0 %v4236
    %4558 = vmatpush.bf16.msra.mxu0 %v4235
    %4559 = vmatpush.bf16.msra.mxu0 %v4234
    %4560 = vmatpush.bf16.msra.mxu0 %v4233
    %4561 = vmatpush.bf16.msra.mxu0 %v4232
    %4562 = vmatpush.bf16.msra.mxu0 %v4231
    %4563 = vmatpush.bf16.msra.mxu0 %v4230
    %4564 = vmatpush.bf16.msra.mxu0 %v4229
    %4565 = vmatmul.bf16.gmra.mxu0 %v3355
    %v4566 = vpop.f32.mrf.mxu0
    %v4567 = vadd.f32 %v4553, %v4566
    %v4568 = vpop.f32.mrf.mxu0
    %v4569 = vadd.f32 %v4555, %v4568
    %4570 = vdwg.mxu0
    %4571 = vmatpush.bf16.msra.mxu0 %v4244
    %4572 = vmatpush.bf16.msra.mxu0 %v4243
    %4573 = vmatpush.bf16.msra.mxu0 %v4242
    %4574 = vmatpush.bf16.msra.mxu0 %v4241
    %4575 = vmatpush.bf16.msra.mxu0 %v4240
    %4576 = vmatpush.bf16.msra.mxu0 %v4239
    %4577 = vmatpush.bf16.msra.mxu0 %v4238
    %4578 = vmatpush.bf16.msra.mxu0 %v4237
    %4579 = vmatmul.bf16.gmra.mxu0 %v3356
    %v4580 = vpop.f32.mrf.mxu0
    %v4581 = vadd.f32 %v4567, %v4580
    %v4582 = vpop.f32.mrf.mxu0
    %v4583 = vadd.f32 %v4569, %v4582
    %4584 = vdwg.mxu0
    %4585 = vmatpush.bf16.msra.mxu0 %v4252
    %4586 = vmatpush.bf16.msra.mxu0 %v4251
    %4587 = vmatpush.bf16.msra.mxu0 %v4250
    %4588 = vmatpush.bf16.msra.mxu0 %v4249
    %4589 = vmatpush.bf16.msra.mxu0 %v4248
    %4590 = vmatpush.bf16.msra.mxu0 %v4247
    %4591 = vmatpush.bf16.msra.mxu0 %v4246
    %4592 = vmatpush.bf16.msra.mxu0 %v4245
    %4593 = vmatmul.bf16.gmra.mxu0 %v3357
    %v4594 = vpop.f32.mrf.mxu0
    %v4595 = vadd.f32 %v4581, %v4594
    %v4596 = vpop.f32.mrf.mxu0
    %v4597 = vadd.f32 %v4583, %v4596
    %4598 = vdwg.mxu0
    %4599 = vmatpush.bf16.msra.mxu0 %v4260
    %4600 = vmatpush.bf16.msra.mxu0 %v4259
    %4601 = vmatpush.bf16.msra.mxu0 %v4258
    %4602 = vmatpush.bf16.msra.mxu0 %v4257
    %4603 = vmatpush.bf16.msra.mxu0 %v4256
    %4604 = vmatpush.bf16.msra.mxu0 %v4255
    %4605 = vmatpush.bf16.msra.mxu0 %v4254
    %4606 = vmatpush.bf16.msra.mxu0 %v4253
    %4607 = vmatmul.bf16.gmra.mxu0 %v3358
    %v4608 = vpop.f32.mrf.mxu0
    %v4609 = vadd.f32 %v4595, %v4608
    %v4610 = vpop.f32.mrf.mxu0
    %v4611 = vadd.f32 %v4597, %v4610
    %4612 = vdwg.mxu0
    %v4613 = vadd.f32 %v2851, %v4609
    %v4614 = vadd.f32 %v2852, %v4611
    %v4615 = vsel %vm87, %v4613, 0.0
    %4616 = vadd.xlane.f32.xlu0 %v4615
    %v4617 = vpop.xlane.xlu0 %4616
    %v4618 = vsel %vm87, %v4614, 0.0
    %4619 = vadd.xlane.f32.xlu0 %v4618
    %v4620 = vpop.xlane.xlu0 %4619
    %v4621 = vmul.f32 %v4617, %v504
    %v4622 = vmul.f32 %v4620, %v504
    %v4623 = vsub.f32 %v4613, %v4621
    %v4624 = vsub.f32 %v4614, %v4622
    %v4625 = vmul.f32 %v4623, %v4623
    %v4626 = vmul.f32 %v4624, %v4624
    %v4627 = vsel %vm87, %v4625, 0.0
    %4628 = vadd.xlane.f32.xlu0 %v4627
    %v4629 = vpop.xlane.xlu0 %4628
    %v4630 = vsel %vm87, %v4626, 0.0
    %4631 = vadd.xlane.f32.xlu0 %v4630
    %v4632 = vpop.xlane.xlu0 %4631
    %v4633 = vmul.f32 %v4629, %v504
    %v4634 = vmul.f32 %v4632, %v504
    %v4635 = vadd.f32 %v4633, 1e-05
    %v4636 = vadd.f32 %v4634, 1e-05
    %v4637 = vrsqrt.pop %v4635
    %v4638 = vmul.f32 %v4637, %v4635
    %v4639 = vmul.f32 %v4638, %v4637
    %v4640 = vmul.f32 0.5, %v4639
    %v4641 = vsub.f32 1.5, %v4640
    %v4642 = vmul.f32 %v4637, %v4641
    %vm4643 = vweird.f32 %v4635
    %vm4644 = vweird.f32 %v4637
    %vm4645 = vmor %vm4643, %vm4644
    %v4646 = vsel %vm4645, %v4637, %v4642
    %v4647 = vrsqrt.pop %v4636
    %v4648 = vmul.f32 %v4647, %v4636
    %v4649 = vmul.f32 %v4648, %v4647
    %v4650 = vmul.f32 0.5, %v4649
    %v4651 = vsub.f32 1.5, %v4650
    %v4652 = vmul.f32 %v4647, %v4651
    %vm4653 = vweird.f32 %v4636
    %vm4654 = vweird.f32 %v4647
    %vm4655 = vmor %vm4653, %vm4654
    %v4656 = vsel %vm4655, %v4647, %v4652
    %v4657 = vmul.f32 %v4623, %v4646
    %v4658 = vmul.f32 %v4624, %v4656
    %s4659 = scalar_lea.vmem %s13, 1
    %v4660 = vld [vmem:[%s4659] sm:$0x1]
    %v4662 = vperm.slane %v4660, 0
    %v4664 = vmul.f32 %v4657, %v4662
    %v4665 = vmul.f32 %v4658, %v4662
    %s4666 = scalar_lea.vmem %s14, 1
    %v4667 = vld [vmem:[%s4666] sm:$0x1]
    %v4669 = vperm.slane %v4667, 0
    %v4671 = vadd.f32 %v4664, %v4669
    %v4672 = vadd.f32 %v4665, %v4669
    %v4673 = vpack.c.bf16 %v4671, %v4671
    %v4674 = vld [vmem:[%s15] sm:$0xf]
    %v4675 = vld [vmem:[%s15 + $0x4] sm:$0xf]
    %v4676 = vld [vmem:[%s15 + $0x8] sm:$0xf]
    %v4677 = vld [vmem:[%s15 + $0xc] sm:$0xf]
    %s4678 = scalar_lea.vmem %s15, 16
    %v4679 = vld [vmem:[%s4678] sm:$0xf]
    %v4680 = vld [vmem:[%s4678 + $0x4] sm:$0xf]
    %v4681 = vld [vmem:[%s4678 + $0x8] sm:$0xf]
    %v4682 = vld [vmem:[%s4678 + $0xc] sm:$0xf]
    %v4684 = vshrl.u32 %v4673, 16
    %v4690 = vunpack.c.l.b16 %v4679
    %v4691 = vunpack.c.l.b16 %v4680
    %v4692 = vunpack.c.l.b16 %v4681
    %v4693 = vunpack.c.l.b16 %v4682
    %v4694 = vpack.c.b16 %v4691, %v4690
    %v4695 = vpack.c.b16 %v4693, %v4692
    %v4699 = vsel %vm87, %v4684, 0
    %4701 = vmatpush.bf16.msra.mxu0 0
    %4702 = vmatpush.bf16.msra.mxu0 0
    %4703 = vmatpush.bf16.msra.mxu0 0
    %4704 = vmatpush.bf16.msra.mxu0 0
    %4705 = vmatpush.bf16.msra.mxu0 0
    %4706 = vmatpush.bf16.msra.mxu0 0
    %4707 = vmatpush.bf16.msra.mxu0 %v4695
    %4708 = vmatpush.bf16.msra.mxu0 %v4694
    %4709 = vmatmul.bf16.gmra.mxu0 %v4699
    %v4710 = vpop.f32.mrf.mxu0
    %v4711 = vadd.f32 0.0, %v4710
    %v4712 = vpop.f32.mrf.mxu0
    %4713 = vdwg.mxu0
    %v4718 = vunpack.c.l.b16 %v4674
    %v4719 = vunpack.c.l.b16 %v4675
    %v4720 = vunpack.c.l.b16 %v4676
    %v4721 = vunpack.c.l.b16 %v4677
    %v4722 = vpack.c.b16 %v4719, %v4718
    %v4723 = vpack.c.b16 %v4721, %v4720
    %v4726 = vsel %vm87, %v4673, 0
    %4728 = vmatpush.bf16.msra.mxu0 0
    %4729 = vmatpush.bf16.msra.mxu0 0
    %4730 = vmatpush.bf16.msra.mxu0 0
    %4731 = vmatpush.bf16.msra.mxu0 0
    %4732 = vmatpush.bf16.msra.mxu0 0
    %4733 = vmatpush.bf16.msra.mxu0 0
    %4734 = vmatpush.bf16.msra.mxu0 %v4723
    %4735 = vmatpush.bf16.msra.mxu0 %v4722
    %4736 = vmatmul.bf16.gmra.mxu0 %v4726
    %v4737 = vpop.f32.mrf.mxu0
    %v4738 = vadd.f32 %v4711, %v4737
    %v4739 = vpop.f32.mrf.mxu0
    %4740 = vdwg.mxu0
    %s4741 = scalar_lea.vmem %s15, 32
    %v4742 = vld [vmem:[%s4741] sm:$0xf]
    %v4743 = vld [vmem:[%s4741 + $0x4] sm:$0xf]
    %v4744 = vld [vmem:[%s4741 + $0x8] sm:$0xf]
    %v4745 = vld [vmem:[%s4741 + $0xc] sm:$0xf]
    %v4747 = vrot.slane %v4673, 1
    %v4752 = vunpack.c.l.b16 %v4742
    %v4753 = vunpack.c.l.b16 %v4743
    %v4754 = vunpack.c.l.b16 %v4744
    %v4755 = vunpack.c.l.b16 %v4745
    %v4756 = vpack.c.b16 %v4753, %v4752
    %v4757 = vpack.c.b16 %v4755, %v4754
    %v4761 = vsel %vm87, %v4747, 0
    %4763 = vmatpush.bf16.msra.mxu0 0
    %4764 = vmatpush.bf16.msra.mxu0 0
    %4765 = vmatpush.bf16.msra.mxu0 0
    %4766 = vmatpush.bf16.msra.mxu0 0
    %4767 = vmatpush.bf16.msra.mxu0 0
    %4768 = vmatpush.bf16.msra.mxu0 0
    %4769 = vmatpush.bf16.msra.mxu0 %v4757
    %4770 = vmatpush.bf16.msra.mxu0 %v4756
    %4771 = vmatmul.bf16.gmra.mxu0 %v4761
    %v4772 = vpop.f32.mrf.mxu0
    %v4773 = vadd.f32 0.0, %v4772
    %v4774 = vpop.f32.mrf.mxu0
    %4775 = vdwg.mxu0
    %v4776 = vadd.f32 %v4738, %v4773
    %s4777 = scalar_lea.vmem %s15, 48
    %v4778 = vld [vmem:[%s4777] sm:$0xf]
    %v4779 = vld [vmem:[%s4777 + $0x4] sm:$0xf]
    %v4780 = vld [vmem:[%s4777 + $0x8] sm:$0xf]
    %v4781 = vld [vmem:[%s4777 + $0xc] sm:$0xf]
    %v4782 = vrot.slane %v4684, 1
    %v4787 = vunpack.c.l.b16 %v4778
    %v4788 = vunpack.c.l.b16 %v4779
    %v4789 = vunpack.c.l.b16 %v4780
    %v4790 = vunpack.c.l.b16 %v4781
    %v4791 = vpack.c.b16 %v4788, %v4787
    %v4792 = vpack.c.b16 %v4790, %v4789
    %v4796 = vsel %vm87, %v4782, 0
    %4798 = vmatpush.bf16.msra.mxu0 0
    %4799 = vmatpush.bf16.msra.mxu0 0
    %4800 = vmatpush.bf16.msra.mxu0 0
    %4801 = vmatpush.bf16.msra.mxu0 0
    %4802 = vmatpush.bf16.msra.mxu0 0
    %4803 = vmatpush.bf16.msra.mxu0 0
    %4804 = vmatpush.bf16.msra.mxu0 %v4792
    %4805 = vmatpush.bf16.msra.mxu0 %v4791
    %4806 = vmatmul.bf16.gmra.mxu0 %v4796
    %v4807 = vpop.f32.mrf.mxu0
    %v4808 = vadd.f32 0.0, %v4807
    %v4809 = vpop.f32.mrf.mxu0
    %4810 = vdwg.mxu0
    %v4811 = vadd.f32 %v4776, %v4808
    %s4812 = scalar_lea.vmem %s15, 64
    %v4813 = vld [vmem:[%s4812] sm:$0xf]
    %v4814 = vld [vmem:[%s4812 + $0x4] sm:$0xf]
    %v4815 = vld [vmem:[%s4812 + $0x8] sm:$0xf]
    %v4816 = vld [vmem:[%s4812 + $0xc] sm:$0xf]
    %v4817 = vrot.slane %v4673, 2
    %v4822 = vunpack.c.l.b16 %v4813
    %v4823 = vunpack.c.l.b16 %v4814
    %v4824 = vunpack.c.l.b16 %v4815
    %v4825 = vunpack.c.l.b16 %v4816
    %v4826 = vpack.c.b16 %v4823, %v4822
    %v4827 = vpack.c.b16 %v4825, %v4824
    %v4831 = vsel %vm87, %v4817, 0
    %4833 = vmatpush.bf16.msra.mxu0 0
    %4834 = vmatpush.bf16.msra.mxu0 0
    %4835 = vmatpush.bf16.msra.mxu0 0
    %4836 = vmatpush.bf16.msra.mxu0 0
    %4837 = vmatpush.bf16.msra.mxu0 0
    %4838 = vmatpush.bf16.msra.mxu0 0
    %4839 = vmatpush.bf16.msra.mxu0 %v4827
    %4840 = vmatpush.bf16.msra.mxu0 %v4826
    %4841 = vmatmul.bf16.gmra.mxu0 %v4831
    %v4842 = vpop.f32.mrf.mxu0
    %v4843 = vadd.f32 0.0, %v4842
    %v4844 = vpop.f32.mrf.mxu0
    %4845 = vdwg.mxu0
    %v4846 = vadd.f32 %v4811, %v4843
    %s4847 = scalar_lea.vmem %s15, 80
    %v4848 = vld [vmem:[%s4847] sm:$0xf]
    %v4849 = vld [vmem:[%s4847 + $0x4] sm:$0xf]
    %v4850 = vld [vmem:[%s4847 + $0x8] sm:$0xf]
    %v4851 = vld [vmem:[%s4847 + $0xc] sm:$0xf]
    %v4852 = vrot.slane %v4684, 2
    %v4857 = vunpack.c.l.b16 %v4848
    %v4858 = vunpack.c.l.b16 %v4849
    %v4859 = vunpack.c.l.b16 %v4850
    %v4860 = vunpack.c.l.b16 %v4851
    %v4861 = vpack.c.b16 %v4858, %v4857
    %v4862 = vpack.c.b16 %v4860, %v4859
    %v4866 = vsel %vm87, %v4852, 0
    %4868 = vmatpush.bf16.msra.mxu0 0
    %4869 = vmatpush.bf16.msra.mxu0 0
    %4870 = vmatpush.bf16.msra.mxu0 0
    %4871 = vmatpush.bf16.msra.mxu0 0
    %4872 = vmatpush.bf16.msra.mxu0 0
    %4873 = vmatpush.bf16.msra.mxu0 0
    %4874 = vmatpush.bf16.msra.mxu0 %v4862
    %4875 = vmatpush.bf16.msra.mxu0 %v4861
    %4876 = vmatmul.bf16.gmra.mxu0 %v4866
    %v4877 = vpop.f32.mrf.mxu0
    %v4878 = vadd.f32 0.0, %v4877
    %v4879 = vpop.f32.mrf.mxu0
    %4880 = vdwg.mxu0
    %v4881 = vadd.f32 %v4846, %v4878
    %s4882 = scalar_lea.vmem %s15, 96
    %v4883 = vld [vmem:[%s4882] sm:$0xf]
    %v4884 = vld [vmem:[%s4882 + $0x4] sm:$0xf]
    %v4885 = vld [vmem:[%s4882 + $0x8] sm:$0xf]
    %v4886 = vld [vmem:[%s4882 + $0xc] sm:$0xf]
    %v4887 = vrot.slane %v4673, 3
    %v4892 = vunpack.c.l.b16 %v4883
    %v4893 = vunpack.c.l.b16 %v4884
    %v4894 = vunpack.c.l.b16 %v4885
    %v4895 = vunpack.c.l.b16 %v4886
    %v4896 = vpack.c.b16 %v4893, %v4892
    %v4897 = vpack.c.b16 %v4895, %v4894
    %v4901 = vsel %vm87, %v4887, 0
    %4903 = vmatpush.bf16.msra.mxu0 0
    %4904 = vmatpush.bf16.msra.mxu0 0
    %4905 = vmatpush.bf16.msra.mxu0 0
    %4906 = vmatpush.bf16.msra.mxu0 0
    %4907 = vmatpush.bf16.msra.mxu0 0
    %4908 = vmatpush.bf16.msra.mxu0 0
    %4909 = vmatpush.bf16.msra.mxu0 %v4897
    %4910 = vmatpush.bf16.msra.mxu0 %v4896
    %4911 = vmatmul.bf16.gmra.mxu0 %v4901
    %v4912 = vpop.f32.mrf.mxu0
    %v4913 = vadd.f32 0.0, %v4912
    %v4914 = vpop.f32.mrf.mxu0
    %4915 = vdwg.mxu0
    %v4916 = vadd.f32 %v4881, %v4913
    %s4917 = scalar_lea.vmem %s15, 112
    %v4918 = vld [vmem:[%s4917] sm:$0xf]
    %v4919 = vld [vmem:[%s4917 + $0x4] sm:$0xf]
    %v4920 = vld [vmem:[%s4917 + $0x8] sm:$0xf]
    %v4921 = vld [vmem:[%s4917 + $0xc] sm:$0xf]
    %v4922 = vrot.slane %v4684, 3
    %v4927 = vunpack.c.l.b16 %v4918
    %v4928 = vunpack.c.l.b16 %v4919
    %v4929 = vunpack.c.l.b16 %v4920
    %v4930 = vunpack.c.l.b16 %v4921
    %v4931 = vpack.c.b16 %v4928, %v4927
    %v4932 = vpack.c.b16 %v4930, %v4929
    %v4936 = vsel %vm87, %v4922, 0
    %4938 = vmatpush.bf16.msra.mxu0 0
    %4939 = vmatpush.bf16.msra.mxu0 0
    %4940 = vmatpush.bf16.msra.mxu0 0
    %4941 = vmatpush.bf16.msra.mxu0 0
    %4942 = vmatpush.bf16.msra.mxu0 0
    %4943 = vmatpush.bf16.msra.mxu0 0
    %4944 = vmatpush.bf16.msra.mxu0 %v4932
    %4945 = vmatpush.bf16.msra.mxu0 %v4931
    %4946 = vmatmul.bf16.gmra.mxu0 %v4936
    %v4947 = vpop.f32.mrf.mxu0
    %v4948 = vadd.f32 0.0, %v4947
    %v4949 = vpop.f32.mrf.mxu0
    %4950 = vdwg.mxu0
    %v4951 = vadd.f32 %v4916, %v4948
    %v4952 = vpack.c.bf16 %v4672, %v4672
    %v4954 = vshrl.u32 %v4952, 16
    %v4957 = vsel %vm87, %v4954, 0
    %4959 = vmatpush.bf16.msra.mxu0 0
    %4960 = vmatpush.bf16.msra.mxu0 0
    %4961 = vmatpush.bf16.msra.mxu0 0
    %4962 = vmatpush.bf16.msra.mxu0 0
    %4963 = vmatpush.bf16.msra.mxu0 0
    %4964 = vmatpush.bf16.msra.mxu0 0
    %4965 = vmatpush.bf16.msra.mxu0 %v4695
    %4966 = vmatpush.bf16.msra.mxu0 %v4694
    %4967 = vmatmul.bf16.gmra.mxu0 %v4957
    %v4968 = vpop.f32.mrf.mxu0
    %v4969 = vadd.f32 0.0, %v4968
    %v4970 = vpop.f32.mrf.mxu0
    %4971 = vdwg.mxu0
    %v4972 = vsel %vm87, %v4952, 0
    %4974 = vmatpush.bf16.msra.mxu0 0
    %4975 = vmatpush.bf16.msra.mxu0 0
    %4976 = vmatpush.bf16.msra.mxu0 0
    %4977 = vmatpush.bf16.msra.mxu0 0
    %4978 = vmatpush.bf16.msra.mxu0 0
    %4979 = vmatpush.bf16.msra.mxu0 0
    %4980 = vmatpush.bf16.msra.mxu0 %v4723
    %4981 = vmatpush.bf16.msra.mxu0 %v4722
    %4982 = vmatmul.bf16.gmra.mxu0 %v4972
    %v4983 = vpop.f32.mrf.mxu0
    %v4984 = vadd.f32 %v4969, %v4983
    %v4985 = vpop.f32.mrf.mxu0
    %4986 = vdwg.mxu0
    %v4988 = vrot.slane %v4952, 1
    %v4990 = vsel %vm87, %v4988, 0
    %4992 = vmatpush.bf16.msra.mxu0 0
    %4993 = vmatpush.bf16.msra.mxu0 0
    %4994 = vmatpush.bf16.msra.mxu0 0
    %4995 = vmatpush.bf16.msra.mxu0 0
    %4996 = vmatpush.bf16.msra.mxu0 0
    %4997 = vmatpush.bf16.msra.mxu0 0
    %4998 = vmatpush.bf16.msra.mxu0 %v4757
    %4999 = vmatpush.bf16.msra.mxu0 %v4756
    %5000 = vmatmul.bf16.gmra.mxu0 %v4990
    %v5001 = vpop.f32.mrf.mxu0
    %v5002 = vadd.f32 0.0, %v5001
    %v5003 = vpop.f32.mrf.mxu0
    %5004 = vdwg.mxu0
    %v5005 = vadd.f32 %v4984, %v5002
    %v5006 = vrot.slane %v4954, 1
    %v5008 = vsel %vm87, %v5006, 0
    %5010 = vmatpush.bf16.msra.mxu0 0
    %5011 = vmatpush.bf16.msra.mxu0 0
    %5012 = vmatpush.bf16.msra.mxu0 0
    %5013 = vmatpush.bf16.msra.mxu0 0
    %5014 = vmatpush.bf16.msra.mxu0 0
    %5015 = vmatpush.bf16.msra.mxu0 0
    %5016 = vmatpush.bf16.msra.mxu0 %v4792
    %5017 = vmatpush.bf16.msra.mxu0 %v4791
    %5018 = vmatmul.bf16.gmra.mxu0 %v5008
    %v5019 = vpop.f32.mrf.mxu0
    %v5020 = vadd.f32 0.0, %v5019
    %v5021 = vpop.f32.mrf.mxu0
    %5022 = vdwg.mxu0
    %v5023 = vadd.f32 %v5005, %v5020
    %v5024 = vrot.slane %v4952, 2
    %v5026 = vsel %vm87, %v5024, 0
    %5028 = vmatpush.bf16.msra.mxu0 0
    %5029 = vmatpush.bf16.msra.mxu0 0
    %5030 = vmatpush.bf16.msra.mxu0 0
    %5031 = vmatpush.bf16.msra.mxu0 0
    %5032 = vmatpush.bf16.msra.mxu0 0
    %5033 = vmatpush.bf16.msra.mxu0 0
    %5034 = vmatpush.bf16.msra.mxu0 %v4827
    %5035 = vmatpush.bf16.msra.mxu0 %v4826
    %5036 = vmatmul.bf16.gmra.mxu0 %v5026
    %v5037 = vpop.f32.mrf.mxu0
    %v5038 = vadd.f32 0.0, %v5037
    %v5039 = vpop.f32.mrf.mxu0
    %5040 = vdwg.mxu0
    %v5041 = vadd.f32 %v5023, %v5038
    %v5042 = vrot.slane %v4954, 2
    %v5044 = vsel %vm87, %v5042, 0
    %5046 = vmatpush.bf16.msra.mxu0 0
    %5047 = vmatpush.bf16.msra.mxu0 0
    %5048 = vmatpush.bf16.msra.mxu0 0
    %5049 = vmatpush.bf16.msra.mxu0 0
    %5050 = vmatpush.bf16.msra.mxu0 0
    %5051 = vmatpush.bf16.msra.mxu0 0
    %5052 = vmatpush.bf16.msra.mxu0 %v4862
    %5053 = vmatpush.bf16.msra.mxu0 %v4861
    %5054 = vmatmul.bf16.gmra.mxu0 %v5044
    %v5055 = vpop.f32.mrf.mxu0
    %v5056 = vadd.f32 0.0, %v5055
    %v5057 = vpop.f32.mrf.mxu0
    %5058 = vdwg.mxu0
    %v5059 = vadd.f32 %v5041, %v5056
    %v5060 = vrot.slane %v4952, 3
    %v5062 = vsel %vm87, %v5060, 0
    %5064 = vmatpush.bf16.msra.mxu0 0
    %5065 = vmatpush.bf16.msra.mxu0 0
    %5066 = vmatpush.bf16.msra.mxu0 0
    %5067 = vmatpush.bf16.msra.mxu0 0
    %5068 = vmatpush.bf16.msra.mxu0 0
    %5069 = vmatpush.bf16.msra.mxu0 0
    %5070 = vmatpush.bf16.msra.mxu0 %v4897
    %5071 = vmatpush.bf16.msra.mxu0 %v4896
    %5072 = vmatmul.bf16.gmra.mxu0 %v5062
    %v5073 = vpop.f32.mrf.mxu0
    %v5074 = vadd.f32 0.0, %v5073
    %v5075 = vpop.f32.mrf.mxu0
    %5076 = vdwg.mxu0
    %v5077 = vadd.f32 %v5059, %v5074
    %v5078 = vrot.slane %v4954, 3
    %v5080 = vsel %vm87, %v5078, 0
    %5082 = vmatpush.bf16.msra.mxu0 0
    %5083 = vmatpush.bf16.msra.mxu0 0
    %5084 = vmatpush.bf16.msra.mxu0 0
    %5085 = vmatpush.bf16.msra.mxu0 0
    %5086 = vmatpush.bf16.msra.mxu0 0
    %5087 = vmatpush.bf16.msra.mxu0 0
    %5088 = vmatpush.bf16.msra.mxu0 %v4932
    %5089 = vmatpush.bf16.msra.mxu0 %v4931
    %5090 = vmatmul.bf16.gmra.mxu0 %v5080
    %v5091 = vpop.f32.mrf.mxu0
    %v5092 = vadd.f32 0.0, %v5091
    %v5093 = vpop.f32.mrf.mxu0
    %5094 = vdwg.mxu0
    %v5095 = vadd.f32 %v5077, %v5092
    %v5097 = vrot.slane %v5095, 7
    %vm5099 = vcmask 1040384
    %v5100 = vsel %vm5099, %v4951, %v5097
    %v5101 = vld [vmem:[%s16] sm:$0x1]
    %v5103 = vperm.slane %v5101, 0
    %v5105 = vadd.f32 %v5100, %v5103
    %5106 = vst [vmem:[#allocation2] sm:$0x3] %v5105
    // Predicated region
    $region70: #{modelo_forward.1} parent=1 // pred_check
      _
    $region71: #{modelo_forward.1} parent=1 // pred_check_branch
      %5108 = sbr.rel (0) target = $region73
    $region72: #{modelo_forward.1} parent=1 // pred_region
      %5110 = vsyncadd [#allocation3], 0
      %s5112 = sshll.u32 [#allocation2], 4
      %s5113 = int_to_ptr.vmem [resolvable:$true] %s5112
      %s5114 = sshll.u32 %s17, 4
      %s5115 = int_to_ptr.hbm [resolvable:$true] %s5114
      %5117 = dma.vmem_to_hbm [thread:$0]  %s5113, 32, %s5115, [#allocation3]
    $region73: #{modelo_forward.1} parent=1 // pred_fallthru
      _
    // Predicated region
    $region74: #{modelo_forward.1} parent=1 // pred_check
      _
    $region75: #{modelo_forward.1} parent=1 // pred_check_branch
      %5119 = sbr.rel (0) target = $region77
    $region76: #{modelo_forward.1} parent=1 // pred_region
      %5121 = dma.done [#allocation3], 32
    $region77: #{modelo_forward.1} parent=1 // pred_fallthru
      _
    %5122 = vsyncpa [#allocation3], 1

</llo_original>
